<compile_context>
chip_gen: v7x
topology: tpu7x:2x2x1
jax: 0.10.0
libtpu: 0.0.40
codegen_flags: <defaults>
</compile_context>

<pallas_src>
import jax
import jax.numpy as jnp
from jax import lax
from jax.experimental import pallas as pl
from jax.experimental.pallas import tpu as pltpu

KSIZE = 3          # 3x3 convolutions
NEG_SLOPE = 0.01   # LeakyReLU default slope
_OFFSETS = tuple((ky - 1, kx - 1) for ky in range(KSIZE) for kx in range(KSIZE))


def _make_kernel(H, W, CH):
    HW = H * W

    def kernel(x_ref, w1_ref, b1_ref, w2_ref, b2_ref, s_ref, t_ref):
        """One block of BB batch elements per grid step.

        x_ref  : (BB, H*W)   VMEM, flattened torus, lane-dense
        w1_ref : (9, CH)     SMEM scalars (conv1 taps)
        b1_ref : (CH,)       SMEM scalars
        w2_ref : (2, 9*CH)   SMEM scalars (conv2 taps, [out_ch, tap*CH + in_ch])
        b2_ref : (2,)        SMEM scalars
        s_ref, t_ref : (BB, H*W)  VMEM outputs (the two affine-coupling parameter maps)
        """
        BB = x_ref.shape[0]
        x = x_ref[...]                                    # (BB, HW) f32

        # Column-within-row index of every lane; used to patch the W-wrap of a flat roll.
        col = lax.broadcasted_iota(jnp.int32, (BB, HW), 1) % W
        last_col = col == (W - 1)
        first_col = col == 0

        def tshift(v, dy, dx):
            """out[.., h*W+w] = v[.., ((h+dy)%H)*W + (w+dx)%W]  (circular 3x3 tap halo).

            A flat roll of the H*W torus handles the H-wrap exactly; only the W-wrap
            column needs a second roll + select.
            """
            s = (-(dy * W + dx)) % HW
            r = pltpu.roll(v, s, axis=1) if s else v
            if dx == 1:
                alt = pltpu.roll(v, (s + W) % HW, axis=1)
                r = jnp.where(last_col, alt, r)
            elif dx == -1:
                alt = pltpu.roll(v, (s - W) % HW, axis=1)
                r = jnp.where(first_col, alt, r)
            return r

        # ---- Conv layer 1 (1 -> CH), circular 3x3, as a VPU stencil over rolled copies.
        h = [None] * CH
        for k, (dy, dx) in enumerate(_OFFSETS):
            xs = tshift(x, dy, dx)
            for c in range(CH):
                term = w1_ref[k, c] * xs
                h[c] = term if h[c] is None else h[c] + term
        for c in range(CH):
            hc = h[c] + b1_ref[c]
            h[c] = jnp.maximum(hc, NEG_SLOPE * hc)        # LeakyReLU(0.01)

        # ---- Conv layer 2 (CH -> 2), circular 3x3; each rolled copy feeds both outputs.
        acc_s = None
        acc_t = None
        for k, (dy, dx) in enumerate(_OFFSETS):
            for c in range(CH):
                sh = tshift(h[c], dy, dx)
                idx = k * CH + c
                ts = w2_ref[0, idx] * sh
                tt = w2_ref[1, idx] * sh
                acc_s = ts if acc_s is None else acc_s + ts
                acc_t = tt if acc_t is None else acc_t + tt
        s_ref[...] = acc_s + b2_ref[0]
        t_ref[...] = acc_t + b2_ref[1]

    return kernel


def _pick_block_b(B, max_bb=16):
    """Divisor of B (no padded/wasted block), multiple of 8 (sublane tile) when possible,
    preferring >=2 grid steps so v7x can shard the parallel batch axis over both cores."""
    cands = [d for d in range(8, min(B, max_bb) + 1, 8) if B % d == 0]
    if cands:
        two_step = [d for d in cands if B // d >= 2]
        return max(two_step) if two_step else max(cands)
    return B   # small / awkward batch: one block covering the whole (full-dim) batch axis


def affine_scalar_net_conditioner(x, w1, b1, w2, b2, *, block_b=None):
    """x: (B, H, W) float32 -> (s, t), each (B, H, W)  (== PyTorch out[:, 0], out[:, 1])."""
    B, H, W = x.shape
    CH = w1.shape[1]
    HW = H * W

    BB = block_b if block_b is not None else _pick_block_b(B)
    assert B % BB == 0, "block_b must divide the batch size"
    nb = B // BB

    # Lane-dense flattening + SMEM-friendly scalar weight layouts (tiny one-time XLA glue).
    x2 = x.reshape(B, HW).astype(jnp.float32)
    w1s = w1.astype(jnp.float32)                              # (9, CH)
    b1s = b1.reshape(CH).astype(jnp.float32)                  # (CH,)
    w2s = w2.reshape(KSIZE * KSIZE * CH, 2).T.astype(jnp.float32)  # (2, 9*CH)
    b2s = b2.reshape(2).astype(jnp.float32)                   # (2,)

    macs = 3 * B * HW * KSIZE * KSIZE * CH                    # conv1 + conv2 (2 out channels)
    bytes_accessed = 4 * (3 * B * HW + w1.size + b1.size + w2.size + b2.size)

    s2, t2 = pl.pallas_call(
        _make_kernel(H, W, CH),
        out_shape=(jax.ShapeDtypeStruct((B, HW), jnp.float32),
                   jax.ShapeDtypeStruct((B, HW), jnp.float32)),
        grid=(nb,),
        in_specs=[
            pl.BlockSpec((BB, HW), lambda i: (i, 0)),
            pl.BlockSpec(memory_space=pltpu.MemorySpace.SMEM),
            pl.BlockSpec(memory_space=pltpu.MemorySpace.SMEM),
            pl.BlockSpec(memory_space=pltpu.MemorySpace.SMEM),
            pl.BlockSpec(memory_space=pltpu.MemorySpace.SMEM),
        ],
        out_specs=(pl.BlockSpec((BB, HW), lambda i: (i, 0)),
                   pl.BlockSpec((BB, HW), lambda i: (i, 0))),
        compiler_params=pltpu.CompilerParams(
            dimension_semantics=("parallel",)),
        cost_estimate=pl.CostEstimate(flops=2 * macs, transcendentals=0,
                                      bytes_accessed=bytes_accessed),
    )(x2, w1s, b1s, w2s, b2s)

    # Equivalent of PyTorch's (out[:, 0], out[:, 1]).
    return s2.reshape(B, H, W), t2.reshape(B, H, W)


def _reference_forward(x, w1, b1, w2, b2):
    """Pure-JAX reference (lax conv) of the same synthetic net, channels-last."""
    CH = w1.shape[1]
    xi = x[..., None]                                            # (B, H, W, 1)
    xp = jnp.pad(xi, ((0, 0), (1, 1), (1, 1), (0, 0)), mode="wrap")
    k1 = w1.reshape(KSIZE, KSIZE, 1, CH)
    h = jax.lax.conv_general_dilated(
        xp, k1, (1, 1), "VALID",
        dimension_numbers=("NHWC", "HWIO", "NHWC")) + b1.reshape(1, 1, 1, CH)
    h = jnp.where(h > 0, h, NEG_SLOPE * h)
    hp = jnp.pad(h, ((0, 0), (1, 1), (1, 1), (0, 0)), mode="wrap")
    k2 = w2.reshape(KSIZE, KSIZE, CH, 2)
    o = jax.lax.conv_general_dilated(
        hp, k2, (1, 1), "VALID",
        dimension_numbers=("NHWC", "HWIO", "NHWC")) + b2.reshape(1, 1, 1, 2)
    return o[..., 0], o[..., 1]


if __name__ == "__main__":
    B, H, W = 16, 16, 16
    CH = 8

    key = jax.random.PRNGKey(0)
    kx, kw1, kb1, kw2, kb2 = jax.random.split(key, 5)

    x = jax.random.normal(kx, (B, H, W), dtype=jnp.float32)
    w1 = 0.3 * jax.random.normal(kw1, (KSIZE * KSIZE, CH), dtype=jnp.float32)
    b1 = 0.1 * jax.random.normal(kb1, (1, CH), dtype=jnp.float32)
    w2 = 0.3 * jax.random.normal(kw2, (KSIZE * KSIZE, CH, 2), dtype=jnp.float32)
    b2 = 0.1 * jax.random.normal(kb2, (1, 2), dtype=jnp.float32)

    s, t = affine_scalar_net_conditioner(x, w1, b1, w2, b2)
    s, t = jax.block_until_ready((s, t))

    s_ref, t_ref = _reference_forward(x, w1, b1, w2, b2)
    assert s.shape == (B, H, W) and t.shape == (B, H, W)
    assert jnp.allclose(s, s_ref, atol=1e-4, rtol=1e-4)
    assert jnp.allclose(t, t_ref, atol=1e-4, rtol=1e-4)

    print("KERNEL_OK")
</pallas_src>

<mosaic_0001>
module attributes {stable_mosaic.version = 11 : i64} {
  func.func @kernel(%arg0: i32, %arg1: memref<8x256xf32, #tpu.memory_space<vmem>>, %arg2: memref<9x8xf32, #tpu.memory_space<smem>>, %arg3: memref<8xf32, #tpu.memory_space<smem>>, %arg4: memref<2x72xf32, #tpu.memory_space<smem>>, %arg5: memref<2xf32, #tpu.memory_space<smem>>, %arg6: memref<8x256xf32, #tpu.memory_space<vmem>>, %arg7: memref<8x256xf32, #tpu.memory_space<vmem>>) attributes {dimension_semantics = [#tpu.dimension_semantics<parallel>], iteration_bounds = array<i64: 2>, scalar_prefetch = 0 : i64, scratch_operands = 0 : i64, tpu.core_type = #tpu.core_type<tc>, window_params = [{transform_indices = @transform_0, window_bounds = array<i64: 8, 256>}, {transform_indices = @transform_1, window_bounds = array<i64: 9, 8>}, {transform_indices = @transform_2, window_bounds = array<i64: 8>}, {transform_indices = @transform_3, window_bounds = array<i64: 2, 72>}, {transform_indices = @transform_4, window_bounds = array<i64: 2>}, {transform_indices = @transform_5, window_bounds = array<i64: 8, 256>}, {transform_indices = @transform_6, window_bounds = array<i64: 8, 256>}]} {
    %c0 = arith.constant 0 : index
    %c0_0 = arith.constant 0 : index
    %0 = vector.load %arg1[%c0, %c0_0] : memref<8x256xf32, #tpu.memory_space<vmem>>, vector<8x256xf32>
    %1 = tpu.iota {dimensions = array<i32: 1>} : vector<8x256xi32>
    %c16_i32 = arith.constant 16 : i32
    %c0_i32 = arith.constant 0 : i32
    %2 = arith.cmpi eq, %c16_i32, %c0_i32 : i32
    %c1_i32 = arith.constant 1 : i32
    %3 = arith.select %2, %c1_i32, %c16_i32 : i32
    %4 = vector.broadcast %3 : i32 to vector<8x256xi32>
    %5 = arith.remsi %1, %4 : vector<8x256xi32>
    %c0_i32_1 = arith.constant 0 : i32
    %6 = vector.broadcast %c0_i32_1 : i32 to vector<8x256xi32>
    %7 = arith.cmpi ne, %5, %6 : vector<8x256xi32>
    %c0_i32_2 = arith.constant 0 : i32
    %8 = vector.broadcast %c0_i32_2 : i32 to vector<8x256xi32>
    %9 = arith.cmpi slt, %5, %8 : vector<8x256xi32>
    %c0_i32_3 = arith.constant 0 : i32
    %10 = arith.cmpi slt, %3, %c0_i32_3 : i32
    %11 = vector.broadcast %10 : i1 to vector<8x256xi1>
    %12 = vector.broadcast %11 : vector<8x256xi1> to vector<8x256xi1>
    %13 = arith.xori %9, %12 : vector<8x256xi1>
    %14 = arith.andi %13, %7 : vector<8x256xi1>
    %15 = vector.broadcast %3 : i32 to vector<8x256xi32>
    %16 = arith.addi %5, %15 : vector<8x256xi32>
    %17 = arith.select %14, %16, %5 : vector<8x256xi1>, vector<8x256xi32>
    %c15_i32 = arith.constant 15 : i32
    %18 = vector.broadcast %c15_i32 : i32 to vector<8x256xi32>
    %19 = arith.cmpi eq, %17, %18 : vector<8x256xi32>
    %c0_i32_4 = arith.constant 0 : i32
    %20 = vector.broadcast %c0_i32_4 : i32 to vector<8x256xi32>
    %21 = arith.cmpi eq, %17, %20 : vector<8x256xi32>
    %c17_i32 = arith.constant 17 : i32
    %22 = tpu.dynamic_rotate %0 by %c17_i32 dim 1 : vector<8x256xf32>, i32 -> vector<8x256xf32>
    %c1_i32_5 = arith.constant 1 : i32
    %23 = tpu.dynamic_rotate %0 by %c1_i32_5 dim 1 : vector<8x256xf32>, i32 -> vector<8x256xf32>
    %24 = arith.select %21, %23, %22 : vector<8x256xi1>, vector<8x256xf32>
    %c0_6 = arith.constant 0 : index
    %c0_7 = arith.constant 0 : index
    %25 = memref.load %arg2[%c0_6, %c0_7] : memref<9x8xf32, #tpu.memory_space<smem>>
    %26 = vector.broadcast %25 : f32 to vector<8x256xf32>
    %27 = arith.mulf %26, %24 : vector<8x256xf32>
    %c0_8 = arith.constant 0 : index
    %c1 = arith.constant 1 : index
    %28 = memref.load %arg2[%c0_8, %c1] : memref<9x8xf32, #tpu.memory_space<smem>>
    %29 = vector.broadcast %28 : f32 to vector<8x256xf32>
    %30 = arith.mulf %29, %24 : vector<8x256xf32>
    %c0_9 = arith.constant 0 : index
    %c2 = arith.constant 2 : index
    %31 = memref.load %arg2[%c0_9, %c2] : memref<9x8xf32, #tpu.memory_space<smem>>
    %32 = vector.broadcast %31 : f32 to vector<8x256xf32>
    %33 = arith.mulf %32, %24 : vector<8x256xf32>
    %c0_10 = arith.constant 0 : index
    %c3 = arith.constant 3 : index
    %34 = memref.load %arg2[%c0_10, %c3] : memref<9x8xf32, #tpu.memory_space<smem>>
    %35 = vector.broadcast %34 : f32 to vector<8x256xf32>
    %36 = arith.mulf %35, %24 : vector<8x256xf32>
    %c0_11 = arith.constant 0 : index
    %c4 = arith.constant 4 : index
    %37 = memref.load %arg2[%c0_11, %c4] : memref<9x8xf32, #tpu.memory_space<smem>>
    %38 = vector.broadcast %37 : f32 to vector<8x256xf32>
    %39 = arith.mulf %38, %24 : vector<8x256xf32>
    %c0_12 = arith.constant 0 : index
    %c5 = arith.constant 5 : index
    %40 = memref.load %arg2[%c0_12, %c5] : memref<9x8xf32, #tpu.memory_space<smem>>
    %41 = vector.broadcast %40 : f32 to vector<8x256xf32>
    %42 = arith.mulf %41, %24 : vector<8x256xf32>
    %c0_13 = arith.constant 0 : index
    %c6 = arith.constant 6 : index
    %43 = memref.load %arg2[%c0_13, %c6] : memref<9x8xf32, #tpu.memory_space<smem>>
    %44 = vector.broadcast %43 : f32 to vector<8x256xf32>
    %45 = arith.mulf %44, %24 : vector<8x256xf32>
    %c0_14 = arith.constant 0 : index
    %c7 = arith.constant 7 : index
    %46 = memref.load %arg2[%c0_14, %c7] : memref<9x8xf32, #tpu.memory_space<smem>>
    %47 = vector.broadcast %46 : f32 to vector<8x256xf32>
    %48 = arith.mulf %47, %24 : vector<8x256xf32>
    %c16_i32_15 = arith.constant 16 : i32
    %49 = tpu.dynamic_rotate %0 by %c16_i32_15 dim 1 : vector<8x256xf32>, i32 -> vector<8x256xf32>
    %c1_16 = arith.constant 1 : index
    %c0_17 = arith.constant 0 : index
    %50 = memref.load %arg2[%c1_16, %c0_17] : memref<9x8xf32, #tpu.memory_space<smem>>
    %51 = vector.broadcast %50 : f32 to vector<8x256xf32>
    %52 = arith.mulf %51, %49 : vector<8x256xf32>
    %53 = arith.addf %27, %52 : vector<8x256xf32>
    %c1_18 = arith.constant 1 : index
    %c1_19 = arith.constant 1 : index
    %54 = memref.load %arg2[%c1_18, %c1_19] : memref<9x8xf32, #tpu.memory_space<smem>>
    %55 = vector.broadcast %54 : f32 to vector<8x256xf32>
    %56 = arith.mulf %55, %49 : vector<8x256xf32>
    %57 = arith.addf %30, %56 : vector<8x256xf32>
    %c1_20 = arith.constant 1 : index
    %c2_21 = arith.constant 2 : index
    %58 = memref.load %arg2[%c1_20, %c2_21] : memref<9x8xf32, #tpu.memory_space<smem>>
    %59 = vector.broadcast %58 : f32 to vector<8x256xf32>
    %60 = arith.mulf %59, %49 : vector<8x256xf32>
    %61 = arith.addf %33, %60 : vector<8x256xf32>
    %c1_22 = arith.constant 1 : index
    %c3_23 = arith.constant 3 : index
    %62 = memref.load %arg2[%c1_22, %c3_23] : memref<9x8xf32, #tpu.memory_space<smem>>
    %63 = vector.broadcast %62 : f32 to vector<8x256xf32>
    %64 = arith.mulf %63, %49 : vector<8x256xf32>
    %65 = arith.addf %36, %64 : vector<8x256xf32>
    %c1_24 = arith.constant 1 : index
    %c4_25 = arith.constant 4 : index
    %66 = memref.load %arg2[%c1_24, %c4_25] : memref<9x8xf32, #tpu.memory_space<smem>>
    %67 = vector.broadcast %66 : f32 to vector<8x256xf32>
    %68 = arith.mulf %67, %49 : vector<8x256xf32>
    %69 = arith.addf %39, %68 : vector<8x256xf32>
    %c1_26 = arith.constant 1 : index
    %c5_27 = arith.constant 5 : index
    %70 = memref.load %arg2[%c1_26, %c5_27] : memref<9x8xf32, #tpu.memory_space<smem>>
    %71 = vector.broadcast %70 : f32 to vector<8x256xf32>
    %72 = arith.mulf %71, %49 : vector<8x256xf32>
    %73 = arith.addf %42, %72 : vector<8x256xf32>
    %c1_28 = arith.constant 1 : index
    %c6_29 = arith.constant 6 : index
    %74 = memref.load %arg2[%c1_28, %c6_29] : memref<9x8xf32, #tpu.memory_space<smem>>
    %75 = vector.broadcast %74 : f32 to vector<8x256xf32>
    %76 = arith.mulf %75, %49 : vector<8x256xf32>
    %77 = arith.addf %45, %76 : vector<8x256xf32>
    %c1_30 = arith.constant 1 : index
    %c7_31 = arith.constant 7 : index
    %78 = memref.load %arg2[%c1_30, %c7_31] : memref<9x8xf32, #tpu.memory_space<smem>>
    %79 = vector.broadcast %78 : f32 to vector<8x256xf32>
    %80 = arith.mulf %79, %49 : vector<8x256xf32>
    %81 = arith.addf %48, %80 : vector<8x256xf32>
    %c15_i32_32 = arith.constant 15 : i32
    %82 = tpu.dynamic_rotate %0 by %c15_i32_32 dim 1 : vector<8x256xf32>, i32 -> vector<8x256xf32>
    %c31_i32 = arith.constant 31 : i32
    %83 = tpu.dynamic_rotate %0 by %c31_i32 dim 1 : vector<8x256xf32>, i32 -> vector<8x256xf32>
    %84 = arith.select %19, %83, %82 : vector<8x256xi1>, vector<8x256xf32>
    %c2_33 = arith.constant 2 : index
    %c0_34 = arith.constant 0 : index
    %85 = memref.load %arg2[%c2_33, %c0_34] : memref<9x8xf32, #tpu.memory_space<smem>>
    %86 = vector.broadcast %85 : f32 to vector<8x256xf32>
    %87 = arith.mulf %86, %84 : vector<8x256xf32>
    %88 = arith.addf %53, %87 : vector<8x256xf32>
    %c2_35 = arith.constant 2 : index
    %c1_36 = arith.constant 1 : index
    %89 = memref.load %arg2[%c2_35, %c1_36] : memref<9x8xf32, #tpu.memory_space<smem>>
    %90 = vector.broadcast %89 : f32 to vector<8x256xf32>
    %91 = arith.mulf %90, %84 : vector<8x256xf32>
    %92 = arith.addf %57, %91 : vector<8x256xf32>
    %c2_37 = arith.constant 2 : index
    %c2_38 = arith.constant 2 : index
    %93 = memref.load %arg2[%c2_37, %c2_38] : memref<9x8xf32, #tpu.memory_space<smem>>
    %94 = vector.broadcast %93 : f32 to vector<8x256xf32>
    %95 = arith.mulf %94, %84 : vector<8x256xf32>
    %96 = arith.addf %61, %95 : vector<8x256xf32>
    %c2_39 = arith.constant 2 : index
    %c3_40 = arith.constant 3 : index
    %97 = memref.load %arg2[%c2_39, %c3_40] : memref<9x8xf32, #tpu.memory_space<smem>>
    %98 = vector.broadcast %97 : f32 to vector<8x256xf32>
    %99 = arith.mulf %98, %84 : vector<8x256xf32>
    %100 = arith.addf %65, %99 : vector<8x256xf32>
    %c2_41 = arith.constant 2 : index
    %c4_42 = arith.constant 4 : index
    %101 = memref.load %arg2[%c2_41, %c4_42] : memref<9x8xf32, #tpu.memory_space<smem>>
    %102 = vector.broadcast %101 : f32 to vector<8x256xf32>
    %103 = arith.mulf %102, %84 : vector<8x256xf32>
    %104 = arith.addf %69, %103 : vector<8x256xf32>
    %c2_43 = arith.constant 2 : index
    %c5_44 = arith.constant 5 : index
    %105 = memref.load %arg2[%c2_43, %c5_44] : memref<9x8xf32, #tpu.memory_space<smem>>
    %106 = vector.broadcast %105 : f32 to vector<8x256xf32>
    %107 = arith.mulf %106, %84 : vector<8x256xf32>
    %108 = arith.addf %73, %107 : vector<8x256xf32>
    %c2_45 = arith.constant 2 : index
    %c6_46 = arith.constant 6 : index
    %109 = memref.load %arg2[%c2_45, %c6_46] : memref<9x8xf32, #tpu.memory_space<smem>>
    %110 = vector.broadcast %109 : f32 to vector<8x256xf32>
    %111 = arith.mulf %110, %84 : vector<8x256xf32>
    %112 = arith.addf %77, %111 : vector<8x256xf32>
    %c2_47 = arith.constant 2 : index
    %c7_48 = arith.constant 7 : index
    %113 = memref.load %arg2[%c2_47, %c7_48] : memref<9x8xf32, #tpu.memory_space<smem>>
    %114 = vector.broadcast %113 : f32 to vector<8x256xf32>
    %115 = arith.mulf %114, %84 : vector<8x256xf32>
    %116 = arith.addf %81, %115 : vector<8x256xf32>
    %c1_i32_49 = arith.constant 1 : i32
    %117 = tpu.dynamic_rotate %0 by %c1_i32_49 dim 1 : vector<8x256xf32>, i32 -> vector<8x256xf32>
    %c241_i32 = arith.constant 241 : i32
    %118 = tpu.dynamic_rotate %0 by %c241_i32 dim 1 : vector<8x256xf32>, i32 -> vector<8x256xf32>
    %119 = arith.select %21, %118, %117 : vector<8x256xi1>, vector<8x256xf32>
    %c3_50 = arith.constant 3 : index
    %c0_51 = arith.constant 0 : index
    %120 = memref.load %arg2[%c3_50, %c0_51] : memref<9x8xf32, #tpu.memory_space<smem>>
    %121 = vector.broadcast %120 : f32 to vector<8x256xf32>
    %122 = arith.mulf %121, %119 : vector<8x256xf32>
    %123 = arith.addf %88, %122 : vector<8x256xf32>
    %c3_52 = arith.constant 3 : index
    %c1_53 = arith.constant 1 : index
    %124 = memref.load %arg2[%c3_52, %c1_53] : memref<9x8xf32, #tpu.memory_space<smem>>
    %125 = vector.broadcast %124 : f32 to vector<8x256xf32>
    %126 = arith.mulf %125, %119 : vector<8x256xf32>
    %127 = arith.addf %92, %126 : vector<8x256xf32>
    %c3_54 = arith.constant 3 : index
    %c2_55 = arith.constant 2 : index
    %128 = memref.load %arg2[%c3_54, %c2_55] : memref<9x8xf32, #tpu.memory_space<smem>>
    %129 = vector.broadcast %128 : f32 to vector<8x256xf32>
    %130 = arith.mulf %129, %119 : vector<8x256xf32>
    %131 = arith.addf %96, %130 : vector<8x256xf32>
    %c3_56 = arith.constant 3 : index
    %c3_57 = arith.constant 3 : index
    %132 = memref.load %arg2[%c3_56, %c3_57] : memref<9x8xf32, #tpu.memory_space<smem>>
    %133 = vector.broadcast %132 : f32 to vector<8x256xf32>
    %134 = arith.mulf %133, %119 : vector<8x256xf32>
    %135 = arith.addf %100, %134 : vector<8x256xf32>
    %c3_58 = arith.constant 3 : index
    %c4_59 = arith.constant 4 : index
    %136 = memref.load %arg2[%c3_58, %c4_59] : memref<9x8xf32, #tpu.memory_space<smem>>
    %137 = vector.broadcast %136 : f32 to vector<8x256xf32>
    %138 = arith.mulf %137, %119 : vector<8x256xf32>
    %139 = arith.addf %104, %138 : vector<8x256xf32>
    %c3_60 = arith.constant 3 : index
    %c5_61 = arith.constant 5 : index
    %140 = memref.load %arg2[%c3_60, %c5_61] : memref<9x8xf32, #tpu.memory_space<smem>>
    %141 = vector.broadcast %140 : f32 to vector<8x256xf32>
    %142 = arith.mulf %141, %119 : vector<8x256xf32>
    %143 = arith.addf %108, %142 : vector<8x256xf32>
    %c3_62 = arith.constant 3 : index
    %c6_63 = arith.constant 6 : index
    %144 = memref.load %arg2[%c3_62, %c6_63] : memref<9x8xf32, #tpu.memory_space<smem>>
    %145 = vector.broadcast %144 : f32 to vector<8x256xf32>
    %146 = arith.mulf %145, %119 : vector<8x256xf32>
    %147 = arith.addf %112, %146 : vector<8x256xf32>
    %c3_64 = arith.constant 3 : index
    %c7_65 = arith.constant 7 : index
    %148 = memref.load %arg2[%c3_64, %c7_65] : memref<9x8xf32, #tpu.memory_space<smem>>
    %149 = vector.broadcast %148 : f32 to vector<8x256xf32>
    %150 = arith.mulf %149, %119 : vector<8x256xf32>
    %151 = arith.addf %116, %150 : vector<8x256xf32>
    %c4_66 = arith.constant 4 : index
    %c0_67 = arith.constant 0 : index
    %152 = memref.load %arg2[%c4_66, %c0_67] : memref<9x8xf32, #tpu.memory_space<smem>>
    %153 = vector.broadcast %152 : f32 to vector<8x256xf32>
    %154 = arith.mulf %153, %0 : vector<8x256xf32>
    %155 = arith.addf %123, %154 : vector<8x256xf32>
    %c4_68 = arith.constant 4 : index
    %c1_69 = arith.constant 1 : index
    %156 = memref.load %arg2[%c4_68, %c1_69] : memref<9x8xf32, #tpu.memory_space<smem>>
    %157 = vector.broadcast %156 : f32 to vector<8x256xf32>
    %158 = arith.mulf %157, %0 : vector<8x256xf32>
    %159 = arith.addf %127, %158 : vector<8x256xf32>
    %c4_70 = arith.constant 4 : index
    %c2_71 = arith.constant 2 : index
    %160 = memref.load %arg2[%c4_70, %c2_71] : memref<9x8xf32, #tpu.memory_space<smem>>
    %161 = vector.broadcast %160 : f32 to vector<8x256xf32>
    %162 = arith.mulf %161, %0 : vector<8x256xf32>
    %163 = arith.addf %131, %162 : vector<8x256xf32>
    %c4_72 = arith.constant 4 : index
    %c3_73 = arith.constant 3 : index
    %164 = memref.load %arg2[%c4_72, %c3_73] : memref<9x8xf32, #tpu.memory_space<smem>>
    %165 = vector.broadcast %164 : f32 to vector<8x256xf32>
    %166 = arith.mulf %165, %0 : vector<8x256xf32>
    %167 = arith.addf %135, %166 : vector<8x256xf32>
    %c4_74 = arith.constant 4 : index
    %c4_75 = arith.constant 4 : index
    %168 = memref.load %arg2[%c4_74, %c4_75] : memref<9x8xf32, #tpu.memory_space<smem>>
    %169 = vector.broadcast %168 : f32 to vector<8x256xf32>
    %170 = arith.mulf %169, %0 : vector<8x256xf32>
    %171 = arith.addf %139, %170 : vector<8x256xf32>
    %c4_76 = arith.constant 4 : index
    %c5_77 = arith.constant 5 : index
    %172 = memref.load %arg2[%c4_76, %c5_77] : memref<9x8xf32, #tpu.memory_space<smem>>
    %173 = vector.broadcast %172 : f32 to vector<8x256xf32>
    %174 = arith.mulf %173, %0 : vector<8x256xf32>
    %175 = arith.addf %143, %174 : vector<8x256xf32>
    %c4_78 = arith.constant 4 : index
    %c6_79 = arith.constant 6 : index
    %176 = memref.load %arg2[%c4_78, %c6_79] : memref<9x8xf32, #tpu.memory_space<smem>>
    %177 = vector.broadcast %176 : f32 to vector<8x256xf32>
    %178 = arith.mulf %177, %0 : vector<8x256xf32>
    %179 = arith.addf %147, %178 : vector<8x256xf32>
    %c4_80 = arith.constant 4 : index
    %c7_81 = arith.constant 7 : index
    %180 = memref.load %arg2[%c4_80, %c7_81] : memref<9x8xf32, #tpu.memory_space<smem>>
    %181 = vector.broadcast %180 : f32 to vector<8x256xf32>
    %182 = arith.mulf %181, %0 : vector<8x256xf32>
    %183 = arith.addf %151, %182 : vector<8x256xf32>
    %c255_i32 = arith.constant 255 : i32
    %184 = tpu.dynamic_rotate %0 by %c255_i32 dim 1 : vector<8x256xf32>, i32 -> vector<8x256xf32>
    %c15_i32_82 = arith.constant 15 : i32
    %185 = tpu.dynamic_rotate %0 by %c15_i32_82 dim 1 : vector<8x256xf32>, i32 -> vector<8x256xf32>
    %186 = arith.select %19, %185, %184 : vector<8x256xi1>, vector<8x256xf32>
    %c5_83 = arith.constant 5 : index
    %c0_84 = arith.constant 0 : index
    %187 = memref.load %arg2[%c5_83, %c0_84] : memref<9x8xf32, #tpu.memory_space<smem>>
    %188 = vector.broadcast %187 : f32 to vector<8x256xf32>
    %189 = arith.mulf %188, %186 : vector<8x256xf32>
    %190 = arith.addf %155, %189 : vector<8x256xf32>
    %c5_85 = arith.constant 5 : index
    %c1_86 = arith.constant 1 : index
    %191 = memref.load %arg2[%c5_85, %c1_86] : memref<9x8xf32, #tpu.memory_space<smem>>
    %192 = vector.broadcast %191 : f32 to vector<8x256xf32>
    %193 = arith.mulf %192, %186 : vector<8x256xf32>
    %194 = arith.addf %159, %193 : vector<8x256xf32>
    %c5_87 = arith.constant 5 : index
    %c2_88 = arith.constant 2 : index
    %195 = memref.load %arg2[%c5_87, %c2_88] : memref<9x8xf32, #tpu.memory_space<smem>>
    %196 = vector.broadcast %195 : f32 to vector<8x256xf32>
    %197 = arith.mulf %196, %186 : vector<8x256xf32>
    %198 = arith.addf %163, %197 : vector<8x256xf32>
    %c5_89 = arith.constant 5 : index
    %c3_90 = arith.constant 3 : index
    %199 = memref.load %arg2[%c5_89, %c3_90] : memref<9x8xf32, #tpu.memory_space<smem>>
    %200 = vector.broadcast %199 : f32 to vector<8x256xf32>
    %201 = arith.mulf %200, %186 : vector<8x256xf32>
    %202 = arith.addf %167, %201 : vector<8x256xf32>
    %c5_91 = arith.constant 5 : index
    %c4_92 = arith.constant 4 : index
    %203 = memref.load %arg2[%c5_91, %c4_92] : memref<9x8xf32, #tpu.memory_space<smem>>
    %204 = vector.broadcast %203 : f32 to vector<8x256xf32>
    %205 = arith.mulf %204, %186 : vector<8x256xf32>
    %206 = arith.addf %171, %205 : vector<8x256xf32>
    %c5_93 = arith.constant 5 : index
    %c5_94 = arith.constant 5 : index
    %207 = memref.load %arg2[%c5_93, %c5_94] : memref<9x8xf32, #tpu.memory_space<smem>>
    %208 = vector.broadcast %207 : f32 to vector<8x256xf32>
    %209 = arith.mulf %208, %186 : vector<8x256xf32>
    %210 = arith.addf %175, %209 : vector<8x256xf32>
    %c5_95 = arith.constant 5 : index
    %c6_96 = arith.constant 6 : index
    %211 = memref.load %arg2[%c5_95, %c6_96] : memref<9x8xf32, #tpu.memory_space<smem>>
    %212 = vector.broadcast %211 : f32 to vector<8x256xf32>
    %213 = arith.mulf %212, %186 : vector<8x256xf32>
    %214 = arith.addf %179, %213 : vector<8x256xf32>
    %c5_97 = arith.constant 5 : index
    %c7_98 = arith.constant 7 : index
    %215 = memref.load %arg2[%c5_97, %c7_98] : memref<9x8xf32, #tpu.memory_space<smem>>
    %216 = vector.broadcast %215 : f32 to vector<8x256xf32>
    %217 = arith.mulf %216, %186 : vector<8x256xf32>
    %218 = arith.addf %183, %217 : vector<8x256xf32>
    %c241_i32_99 = arith.constant 241 : i32
    %219 = tpu.dynamic_rotate %0 by %c241_i32_99 dim 1 : vector<8x256xf32>, i32 -> vector<8x256xf32>
    %c225_i32 = arith.constant 225 : i32
    %220 = tpu.dynamic_rotate %0 by %c225_i32 dim 1 : vector<8x256xf32>, i32 -> vector<8x256xf32>
    %221 = arith.select %21, %220, %219 : vector<8x256xi1>, vector<8x256xf32>
    %c6_100 = arith.constant 6 : index
    %c0_101 = arith.constant 0 : index
    %222 = memref.load %arg2[%c6_100, %c0_101] : memref<9x8xf32, #tpu.memory_space<smem>>
    %223 = vector.broadcast %222 : f32 to vector<8x256xf32>
    %224 = arith.mulf %223, %221 : vector<8x256xf32>
    %225 = arith.addf %190, %224 : vector<8x256xf32>
    %c6_102 = arith.constant 6 : index
    %c1_103 = arith.constant 1 : index
    %226 = memref.load %arg2[%c6_102, %c1_103] : memref<9x8xf32, #tpu.memory_space<smem>>
    %227 = vector.broadcast %226 : f32 to vector<8x256xf32>
    %228 = arith.mulf %227, %221 : vector<8x256xf32>
    %229 = arith.addf %194, %228 : vector<8x256xf32>
    %c6_104 = arith.constant 6 : index
    %c2_105 = arith.constant 2 : index
    %230 = memref.load %arg2[%c6_104, %c2_105] : memref<9x8xf32, #tpu.memory_space<smem>>
    %231 = vector.broadcast %230 : f32 to vector<8x256xf32>
    %232 = arith.mulf %231, %221 : vector<8x256xf32>
    %233 = arith.addf %198, %232 : vector<8x256xf32>
    %c6_106 = arith.constant 6 : index
    %c3_107 = arith.constant 3 : index
    %234 = memref.load %arg2[%c6_106, %c3_107] : memref<9x8xf32, #tpu.memory_space<smem>>
    %235 = vector.broadcast %234 : f32 to vector<8x256xf32>
    %236 = arith.mulf %235, %221 : vector<8x256xf32>
    %237 = arith.addf %202, %236 : vector<8x256xf32>
    %c6_108 = arith.constant 6 : index
    %c4_109 = arith.constant 4 : index
    %238 = memref.load %arg2[%c6_108, %c4_109] : memref<9x8xf32, #tpu.memory_space<smem>>
    %239 = vector.broadcast %238 : f32 to vector<8x256xf32>
    %240 = arith.mulf %239, %221 : vector<8x256xf32>
    %241 = arith.addf %206, %240 : vector<8x256xf32>
    %c6_110 = arith.constant 6 : index
    %c5_111 = arith.constant 5 : index
    %242 = memref.load %arg2[%c6_110, %c5_111] : memref<9x8xf32, #tpu.memory_space<smem>>
    %243 = vector.broadcast %242 : f32 to vector<8x256xf32>
    %244 = arith.mulf %243, %221 : vector<8x256xf32>
    %245 = arith.addf %210, %244 : vector<8x256xf32>
    %c6_112 = arith.constant 6 : index
    %c6_113 = arith.constant 6 : index
    %246 = memref.load %arg2[%c6_112, %c6_113] : memref<9x8xf32, #tpu.memory_space<smem>>
    %247 = vector.broadcast %246 : f32 to vector<8x256xf32>
    %248 = arith.mulf %247, %221 : vector<8x256xf32>
    %249 = arith.addf %214, %248 : vector<8x256xf32>
    %c6_114 = arith.constant 6 : index
    %c7_115 = arith.constant 7 : index
    %250 = memref.load %arg2[%c6_114, %c7_115] : memref<9x8xf32, #tpu.memory_space<smem>>
    %251 = vector.broadcast %250 : f32 to vector<8x256xf32>
    %252 = arith.mulf %251, %221 : vector<8x256xf32>
    %253 = arith.addf %218, %252 : vector<8x256xf32>
    %c240_i32 = arith.constant 240 : i32
    %254 = tpu.dynamic_rotate %0 by %c240_i32 dim 1 : vector<8x256xf32>, i32 -> vector<8x256xf32>
    %c7_116 = arith.constant 7 : index
    %c0_117 = arith.constant 0 : index
    %255 = memref.load %arg2[%c7_116, %c0_117] : memref<9x8xf32, #tpu.memory_space<smem>>
    %256 = vector.broadcast %255 : f32 to vector<8x256xf32>
    %257 = arith.mulf %256, %254 : vector<8x256xf32>
    %258 = arith.addf %225, %257 : vector<8x256xf32>
    %c7_118 = arith.constant 7 : index
    %c1_119 = arith.constant 1 : index
    %259 = memref.load %arg2[%c7_118, %c1_119] : memref<9x8xf32, #tpu.memory_space<smem>>
    %260 = vector.broadcast %259 : f32 to vector<8x256xf32>
    %261 = arith.mulf %260, %254 : vector<8x256xf32>
    %262 = arith.addf %229, %261 : vector<8x256xf32>
    %c7_120 = arith.constant 7 : index
    %c2_121 = arith.constant 2 : index
    %263 = memref.load %arg2[%c7_120, %c2_121] : memref<9x8xf32, #tpu.memory_space<smem>>
    %264 = vector.broadcast %263 : f32 to vector<8x256xf32>
    %265 = arith.mulf %264, %254 : vector<8x256xf32>
    %266 = arith.addf %233, %265 : vector<8x256xf32>
    %c7_122 = arith.constant 7 : index
    %c3_123 = arith.constant 3 : index
    %267 = memref.load %arg2[%c7_122, %c3_123] : memref<9x8xf32, #tpu.memory_space<smem>>
    %268 = vector.broadcast %267 : f32 to vector<8x256xf32>
    %269 = arith.mulf %268, %254 : vector<8x256xf32>
    %270 = arith.addf %237, %269 : vector<8x256xf32>
    %c7_124 = arith.constant 7 : index
    %c4_125 = arith.constant 4 : index
    %271 = memref.load %arg2[%c7_124, %c4_125] : memref<9x8xf32, #tpu.memory_space<smem>>
    %272 = vector.broadcast %271 : f32 to vector<8x256xf32>
    %273 = arith.mulf %272, %254 : vector<8x256xf32>
    %274 = arith.addf %241, %273 : vector<8x256xf32>
    %c7_126 = arith.constant 7 : index
    %c5_127 = arith.constant 5 : index
    %275 = memref.load %arg2[%c7_126, %c5_127] : memref<9x8xf32, #tpu.memory_space<smem>>
    %276 = vector.broadcast %275 : f32 to vector<8x256xf32>
    %277 = arith.mulf %276, %254 : vector<8x256xf32>
    %278 = arith.addf %245, %277 : vector<8x256xf32>
    %c7_128 = arith.constant 7 : index
    %c6_129 = arith.constant 6 : index
    %279 = memref.load %arg2[%c7_128, %c6_129] : memref<9x8xf32, #tpu.memory_space<smem>>
    %280 = vector.broadcast %279 : f32 to vector<8x256xf32>
    %281 = arith.mulf %280, %254 : vector<8x256xf32>
    %282 = arith.addf %249, %281 : vector<8x256xf32>
    %c7_130 = arith.constant 7 : index
    %c7_131 = arith.constant 7 : index
    %283 = memref.load %arg2[%c7_130, %c7_131] : memref<9x8xf32, #tpu.memory_space<smem>>
    %284 = vector.broadcast %283 : f32 to vector<8x256xf32>
    %285 = arith.mulf %284, %254 : vector<8x256xf32>
    %286 = arith.addf %253, %285 : vector<8x256xf32>
    %c239_i32 = arith.constant 239 : i32
    %287 = tpu.dynamic_rotate %0 by %c239_i32 dim 1 : vector<8x256xf32>, i32 -> vector<8x256xf32>
    %c255_i32_132 = arith.constant 255 : i32
    %288 = tpu.dynamic_rotate %0 by %c255_i32_132 dim 1 : vector<8x256xf32>, i32 -> vector<8x256xf32>
    %289 = arith.select %19, %288, %287 : vector<8x256xi1>, vector<8x256xf32>
    %c8 = arith.constant 8 : index
    %c0_133 = arith.constant 0 : index
    %290 = memref.load %arg2[%c8, %c0_133] : memref<9x8xf32, #tpu.memory_space<smem>>
    %291 = vector.broadcast %290 : f32 to vector<8x256xf32>
    %292 = arith.mulf %291, %289 : vector<8x256xf32>
    %293 = arith.addf %258, %292 : vector<8x256xf32>
    %c8_134 = arith.constant 8 : index
    %c1_135 = arith.constant 1 : index
    %294 = memref.load %arg2[%c8_134, %c1_135] : memref<9x8xf32, #tpu.memory_space<smem>>
    %295 = vector.broadcast %294 : f32 to vector<8x256xf32>
    %296 = arith.mulf %295, %289 : vector<8x256xf32>
    %297 = arith.addf %262, %296 : vector<8x256xf32>
    %c8_136 = arith.constant 8 : index
    %c2_137 = arith.constant 2 : index
    %298 = memref.load %arg2[%c8_136, %c2_137] : memref<9x8xf32, #tpu.memory_space<smem>>
    %299 = vector.broadcast %298 : f32 to vector<8x256xf32>
    %300 = arith.mulf %299, %289 : vector<8x256xf32>
    %301 = arith.addf %266, %300 : vector<8x256xf32>
    %c8_138 = arith.constant 8 : index
    %c3_139 = arith.constant 3 : index
    %302 = memref.load %arg2[%c8_138, %c3_139] : memref<9x8xf32, #tpu.memory_space<smem>>
    %303 = vector.broadcast %302 : f32 to vector<8x256xf32>
    %304 = arith.mulf %303, %289 : vector<8x256xf32>
    %305 = arith.addf %270, %304 : vector<8x256xf32>
    %c8_140 = arith.constant 8 : index
    %c4_141 = arith.constant 4 : index
    %306 = memref.load %arg2[%c8_140, %c4_141] : memref<9x8xf32, #tpu.memory_space<smem>>
    %307 = vector.broadcast %306 : f32 to vector<8x256xf32>
    %308 = arith.mulf %307, %289 : vector<8x256xf32>
    %309 = arith.addf %274, %308 : vector<8x256xf32>
    %c8_142 = arith.constant 8 : index
    %c5_143 = arith.constant 5 : index
    %310 = memref.load %arg2[%c8_142, %c5_143] : memref<9x8xf32, #tpu.memory_space<smem>>
    %311 = vector.broadcast %310 : f32 to vector<8x256xf32>
    %312 = arith.mulf %311, %289 : vector<8x256xf32>
    %313 = arith.addf %278, %312 : vector<8x256xf32>
    %c8_144 = arith.constant 8 : index
    %c6_145 = arith.constant 6 : index
    %314 = memref.load %arg2[%c8_144, %c6_145] : memref<9x8xf32, #tpu.memory_space<smem>>
    %315 = vector.broadcast %314 : f32 to vector<8x256xf32>
    %316 = arith.mulf %315, %289 : vector<8x256xf32>
    %317 = arith.addf %282, %316 : vector<8x256xf32>
    %c8_146 = arith.constant 8 : index
    %c7_147 = arith.constant 7 : index
    %318 = memref.load %arg2[%c8_146, %c7_147] : memref<9x8xf32, #tpu.memory_space<smem>>
    %319 = vector.broadcast %318 : f32 to vector<8x256xf32>
    %320 = arith.mulf %319, %289 : vector<8x256xf32>
    %321 = arith.addf %286, %320 : vector<8x256xf32>
    %c0_148 = arith.constant 0 : index
    %322 = memref.load %arg3[%c0_148] : memref<8xf32, #tpu.memory_space<smem>>
    %323 = vector.broadcast %322 : f32 to vector<8x256xf32>
    %324 = arith.addf %293, %323 : vector<8x256xf32>
    %cst = arith.constant 0.00999999977 : f32
    %325 = vector.broadcast %cst : f32 to vector<8x256xf32>
    %326 = arith.mulf %325, %324 : vector<8x256xf32>
    %327 = arith.maximumf %324, %326 : vector<8x256xf32>
    %c1_149 = arith.constant 1 : index
    %328 = memref.load %arg3[%c1_149] : memref<8xf32, #tpu.memory_space<smem>>
    %329 = vector.broadcast %328 : f32 to vector<8x256xf32>
    %330 = arith.addf %297, %329 : vector<8x256xf32>
    %cst_150 = arith.constant 0.00999999977 : f32
    %331 = vector.broadcast %cst_150 : f32 to vector<8x256xf32>
    %332 = arith.mulf %331, %330 : vector<8x256xf32>
    %333 = arith.maximumf %330, %332 : vector<8x256xf32>
    %c2_151 = arith.constant 2 : index
    %334 = memref.load %arg3[%c2_151] : memref<8xf32, #tpu.memory_space<smem>>
    %335 = vector.broadcast %334 : f32 to vector<8x256xf32>
    %336 = arith.addf %301, %335 : vector<8x256xf32>
    %cst_152 = arith.constant 0.00999999977 : f32
    %337 = vector.broadcast %cst_152 : f32 to vector<8x256xf32>
    %338 = arith.mulf %337, %336 : vector<8x256xf32>
    %339 = arith.maximumf %336, %338 : vector<8x256xf32>
    %c3_153 = arith.constant 3 : index
    %340 = memref.load %arg3[%c3_153] : memref<8xf32, #tpu.memory_space<smem>>
    %341 = vector.broadcast %340 : f32 to vector<8x256xf32>
    %342 = arith.addf %305, %341 : vector<8x256xf32>
    %cst_154 = arith.constant 0.00999999977 : f32
    %343 = vector.broadcast %cst_154 : f32 to vector<8x256xf32>
    %344 = arith.mulf %343, %342 : vector<8x256xf32>
    %345 = arith.maximumf %342, %344 : vector<8x256xf32>
    %c4_155 = arith.constant 4 : index
    %346 = memref.load %arg3[%c4_155] : memref<8xf32, #tpu.memory_space<smem>>
    %347 = vector.broadcast %346 : f32 to vector<8x256xf32>
    %348 = arith.addf %309, %347 : vector<8x256xf32>
    %cst_156 = arith.constant 0.00999999977 : f32
    %349 = vector.broadcast %cst_156 : f32 to vector<8x256xf32>
    %350 = arith.mulf %349, %348 : vector<8x256xf32>
    %351 = arith.maximumf %348, %350 : vector<8x256xf32>
    %c5_157 = arith.constant 5 : index
    %352 = memref.load %arg3[%c5_157] : memref<8xf32, #tpu.memory_space<smem>>
    %353 = vector.broadcast %352 : f32 to vector<8x256xf32>
    %354 = arith.addf %313, %353 : vector<8x256xf32>
    %cst_158 = arith.constant 0.00999999977 : f32
    %355 = vector.broadcast %cst_158 : f32 to vector<8x256xf32>
    %356 = arith.mulf %355, %354 : vector<8x256xf32>
    %357 = arith.maximumf %354, %356 : vector<8x256xf32>
    %c6_159 = arith.constant 6 : index
    %358 = memref.load %arg3[%c6_159] : memref<8xf32, #tpu.memory_space<smem>>
    %359 = vector.broadcast %358 : f32 to vector<8x256xf32>
    %360 = arith.addf %317, %359 : vector<8x256xf32>
    %cst_160 = arith.constant 0.00999999977 : f32
    %361 = vector.broadcast %cst_160 : f32 to vector<8x256xf32>
    %362 = arith.mulf %361, %360 : vector<8x256xf32>
    %363 = arith.maximumf %360, %362 : vector<8x256xf32>
    %c7_161 = arith.constant 7 : index
    %364 = memref.load %arg3[%c7_161] : memref<8xf32, #tpu.memory_space<smem>>
    %365 = vector.broadcast %364 : f32 to vector<8x256xf32>
    %366 = arith.addf %321, %365 : vector<8x256xf32>
    %cst_162 = arith.constant 0.00999999977 : f32
    %367 = vector.broadcast %cst_162 : f32 to vector<8x256xf32>
    %368 = arith.mulf %367, %366 : vector<8x256xf32>
    %369 = arith.maximumf %366, %368 : vector<8x256xf32>
    %c17_i32_163 = arith.constant 17 : i32
    %370 = tpu.dynamic_rotate %327 by %c17_i32_163 dim 1 : vector<8x256xf32>, i32 -> vector<8x256xf32>
    %c1_i32_164 = arith.constant 1 : i32
    %371 = tpu.dynamic_rotate %327 by %c1_i32_164 dim 1 : vector<8x256xf32>, i32 -> vector<8x256xf32>
    %372 = arith.select %21, %371, %370 : vector<8x256xi1>, vector<8x256xf32>
    %c0_165 = arith.constant 0 : index
    %c0_166 = arith.constant 0 : index
    %373 = memref.load %arg4[%c0_165, %c0_166] : memref<2x72xf32, #tpu.memory_space<smem>>
    %374 = vector.broadcast %373 : f32 to vector<8x256xf32>
    %375 = arith.mulf %374, %372 : vector<8x256xf32>
    %c1_167 = arith.constant 1 : index
    %c0_168 = arith.constant 0 : index
    %376 = memref.load %arg4[%c1_167, %c0_168] : memref<2x72xf32, #tpu.memory_space<smem>>
    %377 = vector.broadcast %376 : f32 to vector<8x256xf32>
    %378 = arith.mulf %377, %372 : vector<8x256xf32>
    %c17_i32_169 = arith.constant 17 : i32
    %379 = tpu.dynamic_rotate %333 by %c17_i32_169 dim 1 : vector<8x256xf32>, i32 -> vector<8x256xf32>
    %c1_i32_170 = arith.constant 1 : i32
    %380 = tpu.dynamic_rotate %333 by %c1_i32_170 dim 1 : vector<8x256xf32>, i32 -> vector<8x256xf32>
    %381 = arith.select %21, %380, %379 : vector<8x256xi1>, vector<8x256xf32>
    %c0_171 = arith.constant 0 : index
    %c1_172 = arith.constant 1 : index
    %382 = memref.load %arg4[%c0_171, %c1_172] : memref<2x72xf32, #tpu.memory_space<smem>>
    %383 = vector.broadcast %382 : f32 to vector<8x256xf32>
    %384 = arith.mulf %383, %381 : vector<8x256xf32>
    %c1_173 = arith.constant 1 : index
    %c1_174 = arith.constant 1 : index
    %385 = memref.load %arg4[%c1_173, %c1_174] : memref<2x72xf32, #tpu.memory_space<smem>>
    %386 = vector.broadcast %385 : f32 to vector<8x256xf32>
    %387 = arith.mulf %386, %381 : vector<8x256xf32>
    %388 = arith.addf %375, %384 : vector<8x256xf32>
    %389 = arith.addf %378, %387 : vector<8x256xf32>
    %c17_i32_175 = arith.constant 17 : i32
    %390 = tpu.dynamic_rotate %339 by %c17_i32_175 dim 1 : vector<8x256xf32>, i32 -> vector<8x256xf32>
    %c1_i32_176 = arith.constant 1 : i32
    %391 = tpu.dynamic_rotate %339 by %c1_i32_176 dim 1 : vector<8x256xf32>, i32 -> vector<8x256xf32>
    %392 = arith.select %21, %391, %390 : vector<8x256xi1>, vector<8x256xf32>
    %c0_177 = arith.constant 0 : index
    %c2_178 = arith.constant 2 : index
    %393 = memref.load %arg4[%c0_177, %c2_178] : memref<2x72xf32, #tpu.memory_space<smem>>
    %394 = vector.broadcast %393 : f32 to vector<8x256xf32>
    %395 = arith.mulf %394, %392 : vector<8x256xf32>
    %c1_179 = arith.constant 1 : index
    %c2_180 = arith.constant 2 : index
    %396 = memref.load %arg4[%c1_179, %c2_180] : memref<2x72xf32, #tpu.memory_space<smem>>
    %397 = vector.broadcast %396 : f32 to vector<8x256xf32>
    %398 = arith.mulf %397, %392 : vector<8x256xf32>
    %399 = arith.addf %388, %395 : vector<8x256xf32>
    %400 = arith.addf %389, %398 : vector<8x256xf32>
    %c17_i32_181 = arith.constant 17 : i32
    %401 = tpu.dynamic_rotate %345 by %c17_i32_181 dim 1 : vector<8x256xf32>, i32 -> vector<8x256xf32>
    %c1_i32_182 = arith.constant 1 : i32
    %402 = tpu.dynamic_rotate %345 by %c1_i32_182 dim 1 : vector<8x256xf32>, i32 -> vector<8x256xf32>
    %403 = arith.select %21, %402, %401 : vector<8x256xi1>, vector<8x256xf32>
    %c0_183 = arith.constant 0 : index
    %c3_184 = arith.constant 3 : index
    %404 = memref.load %arg4[%c0_183, %c3_184] : memref<2x72xf32, #tpu.memory_space<smem>>
    %405 = vector.broadcast %404 : f32 to vector<8x256xf32>
    %406 = arith.mulf %405, %403 : vector<8x256xf32>
    %c1_185 = arith.constant 1 : index
    %c3_186 = arith.constant 3 : index
    %407 = memref.load %arg4[%c1_185, %c3_186] : memref<2x72xf32, #tpu.memory_space<smem>>
    %408 = vector.broadcast %407 : f32 to vector<8x256xf32>
    %409 = arith.mulf %408, %403 : vector<8x256xf32>
    %410 = arith.addf %399, %406 : vector<8x256xf32>
    %411 = arith.addf %400, %409 : vector<8x256xf32>
    %c17_i32_187 = arith.constant 17 : i32
    %412 = tpu.dynamic_rotate %351 by %c17_i32_187 dim 1 : vector<8x256xf32>, i32 -> vector<8x256xf32>
    %c1_i32_188 = arith.constant 1 : i32
    %413 = tpu.dynamic_rotate %351 by %c1_i32_188 dim 1 : vector<8x256xf32>, i32 -> vector<8x256xf32>
    %414 = arith.select %21, %413, %412 : vector<8x256xi1>, vector<8x256xf32>
    %c0_189 = arith.constant 0 : index
    %c4_190 = arith.constant 4 : index
    %415 = memref.load %arg4[%c0_189, %c4_190] : memref<2x72xf32, #tpu.memory_space<smem>>
    %416 = vector.broadcast %415 : f32 to vector<8x256xf32>
    %417 = arith.mulf %416, %414 : vector<8x256xf32>
    %c1_191 = arith.constant 1 : index
    %c4_192 = arith.constant 4 : index
    %418 = memref.load %arg4[%c1_191, %c4_192] : memref<2x72xf32, #tpu.memory_space<smem>>
    %419 = vector.broadcast %418 : f32 to vector<8x256xf32>
    %420 = arith.mulf %419, %414 : vector<8x256xf32>
    %421 = arith.addf %410, %417 : vector<8x256xf32>
    %422 = arith.addf %411, %420 : vector<8x256xf32>
    %c17_i32_193 = arith.constant 17 : i32
    %423 = tpu.dynamic_rotate %357 by %c17_i32_193 dim 1 : vector<8x256xf32>, i32 -> vector<8x256xf32>
    %c1_i32_194 = arith.constant 1 : i32
    %424 = tpu.dynamic_rotate %357 by %c1_i32_194 dim 1 : vector<8x256xf32>, i32 -> vector<8x256xf32>
    %425 = arith.select %21, %424, %423 : vector<8x256xi1>, vector<8x256xf32>
    %c0_195 = arith.constant 0 : index
    %c5_196 = arith.constant 5 : index
    %426 = memref.load %arg4[%c0_195, %c5_196] : memref<2x72xf32, #tpu.memory_space<smem>>
    %427 = vector.broadcast %426 : f32 to vector<8x256xf32>
    %428 = arith.mulf %427, %425 : vector<8x256xf32>
    %c1_197 = arith.constant 1 : index
    %c5_198 = arith.constant 5 : index
    %429 = memref.load %arg4[%c1_197, %c5_198] : memref<2x72xf32, #tpu.memory_space<smem>>
    %430 = vector.broadcast %429 : f32 to vector<8x256xf32>
    %431 = arith.mulf %430, %425 : vector<8x256xf32>
    %432 = arith.addf %421, %428 : vector<8x256xf32>
    %433 = arith.addf %422, %431 : vector<8x256xf32>
    %c17_i32_199 = arith.constant 17 : i32
    %434 = tpu.dynamic_rotate %363 by %c17_i32_199 dim 1 : vector<8x256xf32>, i32 -> vector<8x256xf32>
    %c1_i32_200 = arith.constant 1 : i32
    %435 = tpu.dynamic_rotate %363 by %c1_i32_200 dim 1 : vector<8x256xf32>, i32 -> vector<8x256xf32>
    %436 = arith.select %21, %435, %434 : vector<8x256xi1>, vector<8x256xf32>
    %c0_201 = arith.constant 0 : index
    %c6_202 = arith.constant 6 : index
    %437 = memref.load %arg4[%c0_201, %c6_202] : memref<2x72xf32, #tpu.memory_space<smem>>
    %438 = vector.broadcast %437 : f32 to vector<8x256xf32>
    %439 = arith.mulf %438, %436 : vector<8x256xf32>
    %c1_203 = arith.constant 1 : index
    %c6_204 = arith.constant 6 : index
    %440 = memref.load %arg4[%c1_203, %c6_204] : memref<2x72xf32, #tpu.memory_space<smem>>
    %441 = vector.broadcast %440 : f32 to vector<8x256xf32>
    %442 = arith.mulf %441, %436 : vector<8x256xf32>
    %443 = arith.addf %432, %439 : vector<8x256xf32>
    %444 = arith.addf %433, %442 : vector<8x256xf32>
    %c17_i32_205 = arith.constant 17 : i32
    %445 = tpu.dynamic_rotate %369 by %c17_i32_205 dim 1 : vector<8x256xf32>, i32 -> vector<8x256xf32>
    %c1_i32_206 = arith.constant 1 : i32
    %446 = tpu.dynamic_rotate %369 by %c1_i32_206 dim 1 : vector<8x256xf32>, i32 -> vector<8x256xf32>
    %447 = arith.select %21, %446, %445 : vector<8x256xi1>, vector<8x256xf32>
    %c0_207 = arith.constant 0 : index
    %c7_208 = arith.constant 7 : index
    %448 = memref.load %arg4[%c0_207, %c7_208] : memref<2x72xf32, #tpu.memory_space<smem>>
    %449 = vector.broadcast %448 : f32 to vector<8x256xf32>
    %450 = arith.mulf %449, %447 : vector<8x256xf32>
    %c1_209 = arith.constant 1 : index
    %c7_210 = arith.constant 7 : index
    %451 = memref.load %arg4[%c1_209, %c7_210] : memref<2x72xf32, #tpu.memory_space<smem>>
    %452 = vector.broadcast %451 : f32 to vector<8x256xf32>
    %453 = arith.mulf %452, %447 : vector<8x256xf32>
    %454 = arith.addf %443, %450 : vector<8x256xf32>
    %455 = arith.addf %444, %453 : vector<8x256xf32>
    %c16_i32_211 = arith.constant 16 : i32
    %456 = tpu.dynamic_rotate %327 by %c16_i32_211 dim 1 : vector<8x256xf32>, i32 -> vector<8x256xf32>
    %c0_212 = arith.constant 0 : index
    %c8_213 = arith.constant 8 : index
    %457 = memref.load %arg4[%c0_212, %c8_213] : memref<2x72xf32, #tpu.memory_space<smem>>
    %458 = vector.broadcast %457 : f32 to vector<8x256xf32>
    %459 = arith.mulf %458, %456 : vector<8x256xf32>
    %c1_214 = arith.constant 1 : index
    %c8_215 = arith.constant 8 : index
    %460 = memref.load %arg4[%c1_214, %c8_215] : memref<2x72xf32, #tpu.memory_space<smem>>
    %461 = vector.broadcast %460 : f32 to vector<8x256xf32>
    %462 = arith.mulf %461, %456 : vector<8x256xf32>
    %463 = arith.addf %454, %459 : vector<8x256xf32>
    %464 = arith.addf %455, %462 : vector<8x256xf32>
    %c16_i32_216 = arith.constant 16 : i32
    %465 = tpu.dynamic_rotate %333 by %c16_i32_216 dim 1 : vector<8x256xf32>, i32 -> vector<8x256xf32>
    %c0_217 = arith.constant 0 : index
    %c9 = arith.constant 9 : index
    %466 = memref.load %arg4[%c0_217, %c9] : memref<2x72xf32, #tpu.memory_space<smem>>
    %467 = vector.broadcast %466 : f32 to vector<8x256xf32>
    %468 = arith.mulf %467, %465 : vector<8x256xf32>
    %c1_218 = arith.constant 1 : index
    %c9_219 = arith.constant 9 : index
    %469 = memref.load %arg4[%c1_218, %c9_219] : memref<2x72xf32, #tpu.memory_space<smem>>
    %470 = vector.broadcast %469 : f32 to vector<8x256xf32>
    %471 = arith.mulf %470, %465 : vector<8x256xf32>
    %472 = arith.addf %463, %468 : vector<8x256xf32>
    %473 = arith.addf %464, %471 : vector<8x256xf32>
    %c16_i32_220 = arith.constant 16 : i32
    %474 = tpu.dynamic_rotate %339 by %c16_i32_220 dim 1 : vector<8x256xf32>, i32 -> vector<8x256xf32>
    %c0_221 = arith.constant 0 : index
    %c10 = arith.constant 10 : index
    %475 = memref.load %arg4[%c0_221, %c10] : memref<2x72xf32, #tpu.memory_space<smem>>
    %476 = vector.broadcast %475 : f32 to vector<8x256xf32>
    %477 = arith.mulf %476, %474 : vector<8x256xf32>
    %c1_222 = arith.constant 1 : index
    %c10_223 = arith.constant 10 : index
    %478 = memref.load %arg4[%c1_222, %c10_223] : memref<2x72xf32, #tpu.memory_space<smem>>
    %479 = vector.broadcast %478 : f32 to vector<8x256xf32>
    %480 = arith.mulf %479, %474 : vector<8x256xf32>
    %481 = arith.addf %472, %477 : vector<8x256xf32>
    %482 = arith.addf %473, %480 : vector<8x256xf32>
    %c16_i32_224 = arith.constant 16 : i32
    %483 = tpu.dynamic_rotate %345 by %c16_i32_224 dim 1 : vector<8x256xf32>, i32 -> vector<8x256xf32>
    %c0_225 = arith.constant 0 : index
    %c11 = arith.constant 11 : index
    %484 = memref.load %arg4[%c0_225, %c11] : memref<2x72xf32, #tpu.memory_space<smem>>
    %485 = vector.broadcast %484 : f32 to vector<8x256xf32>
    %486 = arith.mulf %485, %483 : vector<8x256xf32>
    %c1_226 = arith.constant 1 : index
    %c11_227 = arith.constant 11 : index
    %487 = memref.load %arg4[%c1_226, %c11_227] : memref<2x72xf32, #tpu.memory_space<smem>>
    %488 = vector.broadcast %487 : f32 to vector<8x256xf32>
    %489 = arith.mulf %488, %483 : vector<8x256xf32>
    %490 = arith.addf %481, %486 : vector<8x256xf32>
    %491 = arith.addf %482, %489 : vector<8x256xf32>
    %c16_i32_228 = arith.constant 16 : i32
    %492 = tpu.dynamic_rotate %351 by %c16_i32_228 dim 1 : vector<8x256xf32>, i32 -> vector<8x256xf32>
    %c0_229 = arith.constant 0 : index
    %c12 = arith.constant 12 : index
    %493 = memref.load %arg4[%c0_229, %c12] : memref<2x72xf32, #tpu.memory_space<smem>>
    %494 = vector.broadcast %493 : f32 to vector<8x256xf32>
    %495 = arith.mulf %494, %492 : vector<8x256xf32>
    %c1_230 = arith.constant 1 : index
    %c12_231 = arith.constant 12 : index
    %496 = memref.load %arg4[%c1_230, %c12_231] : memref<2x72xf32, #tpu.memory_space<smem>>
    %497 = vector.broadcast %496 : f32 to vector<8x256xf32>
    %498 = arith.mulf %497, %492 : vector<8x256xf32>
    %499 = arith.addf %490, %495 : vector<8x256xf32>
    %500 = arith.addf %491, %498 : vector<8x256xf32>
    %c16_i32_232 = arith.constant 16 : i32
    %501 = tpu.dynamic_rotate %357 by %c16_i32_232 dim 1 : vector<8x256xf32>, i32 -> vector<8x256xf32>
    %c0_233 = arith.constant 0 : index
    %c13 = arith.constant 13 : index
    %502 = memref.load %arg4[%c0_233, %c13] : memref<2x72xf32, #tpu.memory_space<smem>>
    %503 = vector.broadcast %502 : f32 to vector<8x256xf32>
    %504 = arith.mulf %503, %501 : vector<8x256xf32>
    %c1_234 = arith.constant 1 : index
    %c13_235 = arith.constant 13 : index
    %505 = memref.load %arg4[%c1_234, %c13_235] : memref<2x72xf32, #tpu.memory_space<smem>>
    %506 = vector.broadcast %505 : f32 to vector<8x256xf32>
    %507 = arith.mulf %506, %501 : vector<8x256xf32>
    %508 = arith.addf %499, %504 : vector<8x256xf32>
    %509 = arith.addf %500, %507 : vector<8x256xf32>
    %c16_i32_236 = arith.constant 16 : i32
    %510 = tpu.dynamic_rotate %363 by %c16_i32_236 dim 1 : vector<8x256xf32>, i32 -> vector<8x256xf32>
    %c0_237 = arith.constant 0 : index
    %c14 = arith.constant 14 : index
    %511 = memref.load %arg4[%c0_237, %c14] : memref<2x72xf32, #tpu.memory_space<smem>>
    %512 = vector.broadcast %511 : f32 to vector<8x256xf32>
    %513 = arith.mulf %512, %510 : vector<8x256xf32>
    %c1_238 = arith.constant 1 : index
    %c14_239 = arith.constant 14 : index
    %514 = memref.load %arg4[%c1_238, %c14_239] : memref<2x72xf32, #tpu.memory_space<smem>>
    %515 = vector.broadcast %514 : f32 to vector<8x256xf32>
    %516 = arith.mulf %515, %510 : vector<8x256xf32>
    %517 = arith.addf %508, %513 : vector<8x256xf32>
    %518 = arith.addf %509, %516 : vector<8x256xf32>
    %c16_i32_240 = arith.constant 16 : i32
    %519 = tpu.dynamic_rotate %369 by %c16_i32_240 dim 1 : vector<8x256xf32>, i32 -> vector<8x256xf32>
    %c0_241 = arith.constant 0 : index
    %c15 = arith.constant 15 : index
    %520 = memref.load %arg4[%c0_241, %c15] : memref<2x72xf32, #tpu.memory_space<smem>>
    %521 = vector.broadcast %520 : f32 to vector<8x256xf32>
    %522 = arith.mulf %521, %519 : vector<8x256xf32>
    %c1_242 = arith.constant 1 : index
    %c15_243 = arith.constant 15 : index
    %523 = memref.load %arg4[%c1_242, %c15_243] : memref<2x72xf32, #tpu.memory_space<smem>>
    %524 = vector.broadcast %523 : f32 to vector<8x256xf32>
    %525 = arith.mulf %524, %519 : vector<8x256xf32>
    %526 = arith.addf %517, %522 : vector<8x256xf32>
    %527 = arith.addf %518, %525 : vector<8x256xf32>
    %c15_i32_244 = arith.constant 15 : i32
    %528 = tpu.dynamic_rotate %327 by %c15_i32_244 dim 1 : vector<8x256xf32>, i32 -> vector<8x256xf32>
    %c31_i32_245 = arith.constant 31 : i32
    %529 = tpu.dynamic_rotate %327 by %c31_i32_245 dim 1 : vector<8x256xf32>, i32 -> vector<8x256xf32>
    %530 = arith.select %19, %529, %528 : vector<8x256xi1>, vector<8x256xf32>
    %c0_246 = arith.constant 0 : index
    %c16 = arith.constant 16 : index
    %531 = memref.load %arg4[%c0_246, %c16] : memref<2x72xf32, #tpu.memory_space<smem>>
    %532 = vector.broadcast %531 : f32 to vector<8x256xf32>
    %533 = arith.mulf %532, %530 : vector<8x256xf32>
    %c1_247 = arith.constant 1 : index
    %c16_248 = arith.constant 16 : index
    %534 = memref.load %arg4[%c1_247, %c16_248] : memref<2x72xf32, #tpu.memory_space<smem>>
    %535 = vector.broadcast %534 : f32 to vector<8x256xf32>
    %536 = arith.mulf %535, %530 : vector<8x256xf32>
    %537 = arith.addf %526, %533 : vector<8x256xf32>
    %538 = arith.addf %527, %536 : vector<8x256xf32>
    %c15_i32_249 = arith.constant 15 : i32
    %539 = tpu.dynamic_rotate %333 by %c15_i32_249 dim 1 : vector<8x256xf32>, i32 -> vector<8x256xf32>
    %c31_i32_250 = arith.constant 31 : i32
    %540 = tpu.dynamic_rotate %333 by %c31_i32_250 dim 1 : vector<8x256xf32>, i32 -> vector<8x256xf32>
    %541 = arith.select %19, %540, %539 : vector<8x256xi1>, vector<8x256xf32>
    %c0_251 = arith.constant 0 : index
    %c17 = arith.constant 17 : index
    %542 = memref.load %arg4[%c0_251, %c17] : memref<2x72xf32, #tpu.memory_space<smem>>
    %543 = vector.broadcast %542 : f32 to vector<8x256xf32>
    %544 = arith.mulf %543, %541 : vector<8x256xf32>
    %c1_252 = arith.constant 1 : index
    %c17_253 = arith.constant 17 : index
    %545 = memref.load %arg4[%c1_252, %c17_253] : memref<2x72xf32, #tpu.memory_space<smem>>
    %546 = vector.broadcast %545 : f32 to vector<8x256xf32>
    %547 = arith.mulf %546, %541 : vector<8x256xf32>
    %548 = arith.addf %537, %544 : vector<8x256xf32>
    %549 = arith.addf %538, %547 : vector<8x256xf32>
    %c15_i32_254 = arith.constant 15 : i32
    %550 = tpu.dynamic_rotate %339 by %c15_i32_254 dim 1 : vector<8x256xf32>, i32 -> vector<8x256xf32>
    %c31_i32_255 = arith.constant 31 : i32
    %551 = tpu.dynamic_rotate %339 by %c31_i32_255 dim 1 : vector<8x256xf32>, i32 -> vector<8x256xf32>
    %552 = arith.select %19, %551, %550 : vector<8x256xi1>, vector<8x256xf32>
    %c0_256 = arith.constant 0 : index
    %c18 = arith.constant 18 : index
    %553 = memref.load %arg4[%c0_256, %c18] : memref<2x72xf32, #tpu.memory_space<smem>>
    %554 = vector.broadcast %553 : f32 to vector<8x256xf32>
    %555 = arith.mulf %554, %552 : vector<8x256xf32>
    %c1_257 = arith.constant 1 : index
    %c18_258 = arith.constant 18 : index
    %556 = memref.load %arg4[%c1_257, %c18_258] : memref<2x72xf32, #tpu.memory_space<smem>>
    %557 = vector.broadcast %556 : f32 to vector<8x256xf32>
    %558 = arith.mulf %557, %552 : vector<8x256xf32>
    %559 = arith.addf %548, %555 : vector<8x256xf32>
    %560 = arith.addf %549, %558 : vector<8x256xf32>
    %c15_i32_259 = arith.constant 15 : i32
    %561 = tpu.dynamic_rotate %345 by %c15_i32_259 dim 1 : vector<8x256xf32>, i32 -> vector<8x256xf32>
    %c31_i32_260 = arith.constant 31 : i32
    %562 = tpu.dynamic_rotate %345 by %c31_i32_260 dim 1 : vector<8x256xf32>, i32 -> vector<8x256xf32>
    %563 = arith.select %19, %562, %561 : vector<8x256xi1>, vector<8x256xf32>
    %c0_261 = arith.constant 0 : index
    %c19 = arith.constant 19 : index
    %564 = memref.load %arg4[%c0_261, %c19] : memref<2x72xf32, #tpu.memory_space<smem>>
    %565 = vector.broadcast %564 : f32 to vector<8x256xf32>
    %566 = arith.mulf %565, %563 : vector<8x256xf32>
    %c1_262 = arith.constant 1 : index
    %c19_263 = arith.constant 19 : index
    %567 = memref.load %arg4[%c1_262, %c19_263] : memref<2x72xf32, #tpu.memory_space<smem>>
    %568 = vector.broadcast %567 : f32 to vector<8x256xf32>
    %569 = arith.mulf %568, %563 : vector<8x256xf32>
    %570 = arith.addf %559, %566 : vector<8x256xf32>
    %571 = arith.addf %560, %569 : vector<8x256xf32>
    %c15_i32_264 = arith.constant 15 : i32
    %572 = tpu.dynamic_rotate %351 by %c15_i32_264 dim 1 : vector<8x256xf32>, i32 -> vector<8x256xf32>
    %c31_i32_265 = arith.constant 31 : i32
    %573 = tpu.dynamic_rotate %351 by %c31_i32_265 dim 1 : vector<8x256xf32>, i32 -> vector<8x256xf32>
    %574 = arith.select %19, %573, %572 : vector<8x256xi1>, vector<8x256xf32>
    %c0_266 = arith.constant 0 : index
    %c20 = arith.constant 20 : index
    %575 = memref.load %arg4[%c0_266, %c20] : memref<2x72xf32, #tpu.memory_space<smem>>
    %576 = vector.broadcast %575 : f32 to vector<8x256xf32>
    %577 = arith.mulf %576, %574 : vector<8x256xf32>
    %c1_267 = arith.constant 1 : index
    %c20_268 = arith.constant 20 : index
    %578 = memref.load %arg4[%c1_267, %c20_268] : memref<2x72xf32, #tpu.memory_space<smem>>
    %579 = vector.broadcast %578 : f32 to vector<8x256xf32>
    %580 = arith.mulf %579, %574 : vector<8x256xf32>
    %581 = arith.addf %570, %577 : vector<8x256xf32>
    %582 = arith.addf %571, %580 : vector<8x256xf32>
    %c15_i32_269 = arith.constant 15 : i32
    %583 = tpu.dynamic_rotate %357 by %c15_i32_269 dim 1 : vector<8x256xf32>, i32 -> vector<8x256xf32>
    %c31_i32_270 = arith.constant 31 : i32
    %584 = tpu.dynamic_rotate %357 by %c31_i32_270 dim 1 : vector<8x256xf32>, i32 -> vector<8x256xf32>
    %585 = arith.select %19, %584, %583 : vector<8x256xi1>, vector<8x256xf32>
    %c0_271 = arith.constant 0 : index
    %c21 = arith.constant 21 : index
    %586 = memref.load %arg4[%c0_271, %c21] : memref<2x72xf32, #tpu.memory_space<smem>>
    %587 = vector.broadcast %586 : f32 to vector<8x256xf32>
    %588 = arith.mulf %587, %585 : vector<8x256xf32>
    %c1_272 = arith.constant 1 : index
    %c21_273 = arith.constant 21 : index
    %589 = memref.load %arg4[%c1_272, %c21_273] : memref<2x72xf32, #tpu.memory_space<smem>>
    %590 = vector.broadcast %589 : f32 to vector<8x256xf32>
    %591 = arith.mulf %590, %585 : vector<8x256xf32>
    %592 = arith.addf %581, %588 : vector<8x256xf32>
    %593 = arith.addf %582, %591 : vector<8x256xf32>
    %c15_i32_274 = arith.constant 15 : i32
    %594 = tpu.dynamic_rotate %363 by %c15_i32_274 dim 1 : vector<8x256xf32>, i32 -> vector<8x256xf32>
    %c31_i32_275 = arith.constant 31 : i32
    %595 = tpu.dynamic_rotate %363 by %c31_i32_275 dim 1 : vector<8x256xf32>, i32 -> vector<8x256xf32>
    %596 = arith.select %19, %595, %594 : vector<8x256xi1>, vector<8x256xf32>
    %c0_276 = arith.constant 0 : index
    %c22 = arith.constant 22 : index
    %597 = memref.load %arg4[%c0_276, %c22] : memref<2x72xf32, #tpu.memory_space<smem>>
    %598 = vector.broadcast %597 : f32 to vector<8x256xf32>
    %599 = arith.mulf %598, %596 : vector<8x256xf32>
    %c1_277 = arith.constant 1 : index
    %c22_278 = arith.constant 22 : index
    %600 = memref.load %arg4[%c1_277, %c22_278] : memref<2x72xf32, #tpu.memory_space<smem>>
    %601 = vector.broadcast %600 : f32 to vector<8x256xf32>
    %602 = arith.mulf %601, %596 : vector<8x256xf32>
    %603 = arith.addf %592, %599 : vector<8x256xf32>
    %604 = arith.addf %593, %602 : vector<8x256xf32>
    %c15_i32_279 = arith.constant 15 : i32
    %605 = tpu.dynamic_rotate %369 by %c15_i32_279 dim 1 : vector<8x256xf32>, i32 -> vector<8x256xf32>
    %c31_i32_280 = arith.constant 31 : i32
    %606 = tpu.dynamic_rotate %369 by %c31_i32_280 dim 1 : vector<8x256xf32>, i32 -> vector<8x256xf32>
    %607 = arith.select %19, %606, %605 : vector<8x256xi1>, vector<8x256xf32>
    %c0_281 = arith.constant 0 : index
    %c23 = arith.constant 23 : index
    %608 = memref.load %arg4[%c0_281, %c23] : memref<2x72xf32, #tpu.memory_space<smem>>
    %609 = vector.broadcast %608 : f32 to vector<8x256xf32>
    %610 = arith.mulf %609, %607 : vector<8x256xf32>
    %c1_282 = arith.constant 1 : index
    %c23_283 = arith.constant 23 : index
    %611 = memref.load %arg4[%c1_282, %c23_283] : memref<2x72xf32, #tpu.memory_space<smem>>
    %612 = vector.broadcast %611 : f32 to vector<8x256xf32>
    %613 = arith.mulf %612, %607 : vector<8x256xf32>
    %614 = arith.addf %603, %610 : vector<8x256xf32>
    %615 = arith.addf %604, %613 : vector<8x256xf32>
    %c1_i32_284 = arith.constant 1 : i32
    %616 = tpu.dynamic_rotate %327 by %c1_i32_284 dim 1 : vector<8x256xf32>, i32 -> vector<8x256xf32>
    %c241_i32_285 = arith.constant 241 : i32
    %617 = tpu.dynamic_rotate %327 by %c241_i32_285 dim 1 : vector<8x256xf32>, i32 -> vector<8x256xf32>
    %618 = arith.select %21, %617, %616 : vector<8x256xi1>, vector<8x256xf32>
    %c0_286 = arith.constant 0 : index
    %c24 = arith.constant 24 : index
    %619 = memref.load %arg4[%c0_286, %c24] : memref<2x72xf32, #tpu.memory_space<smem>>
    %620 = vector.broadcast %619 : f32 to vector<8x256xf32>
    %621 = arith.mulf %620, %618 : vector<8x256xf32>
    %c1_287 = arith.constant 1 : index
    %c24_288 = arith.constant 24 : index
    %622 = memref.load %arg4[%c1_287, %c24_288] : memref<2x72xf32, #tpu.memory_space<smem>>
    %623 = vector.broadcast %622 : f32 to vector<8x256xf32>
    %624 = arith.mulf %623, %618 : vector<8x256xf32>
    %625 = arith.addf %614, %621 : vector<8x256xf32>
    %626 = arith.addf %615, %624 : vector<8x256xf32>
    %c1_i32_289 = arith.constant 1 : i32
    %627 = tpu.dynamic_rotate %333 by %c1_i32_289 dim 1 : vector<8x256xf32>, i32 -> vector<8x256xf32>
    %c241_i32_290 = arith.constant 241 : i32
    %628 = tpu.dynamic_rotate %333 by %c241_i32_290 dim 1 : vector<8x256xf32>, i32 -> vector<8x256xf32>
    %629 = arith.select %21, %628, %627 : vector<8x256xi1>, vector<8x256xf32>
    %c0_291 = arith.constant 0 : index
    %c25 = arith.constant 25 : index
    %630 = memref.load %arg4[%c0_291, %c25] : memref<2x72xf32, #tpu.memory_space<smem>>
    %631 = vector.broadcast %630 : f32 to vector<8x256xf32>
    %632 = arith.mulf %631, %629 : vector<8x256xf32>
    %c1_292 = arith.constant 1 : index
    %c25_293 = arith.constant 25 : index
    %633 = memref.load %arg4[%c1_292, %c25_293] : memref<2x72xf32, #tpu.memory_space<smem>>
    %634 = vector.broadcast %633 : f32 to vector<8x256xf32>
    %635 = arith.mulf %634, %629 : vector<8x256xf32>
    %636 = arith.addf %625, %632 : vector<8x256xf32>
    %637 = arith.addf %626, %635 : vector<8x256xf32>
    %c1_i32_294 = arith.constant 1 : i32
    %638 = tpu.dynamic_rotate %339 by %c1_i32_294 dim 1 : vector<8x256xf32>, i32 -> vector<8x256xf32>
    %c241_i32_295 = arith.constant 241 : i32
    %639 = tpu.dynamic_rotate %339 by %c241_i32_295 dim 1 : vector<8x256xf32>, i32 -> vector<8x256xf32>
    %640 = arith.select %21, %639, %638 : vector<8x256xi1>, vector<8x256xf32>
    %c0_296 = arith.constant 0 : index
    %c26 = arith.constant 26 : index
    %641 = memref.load %arg4[%c0_296, %c26] : memref<2x72xf32, #tpu.memory_space<smem>>
    %642 = vector.broadcast %641 : f32 to vector<8x256xf32>
    %643 = arith.mulf %642, %640 : vector<8x256xf32>
    %c1_297 = arith.constant 1 : index
    %c26_298 = arith.constant 26 : index
    %644 = memref.load %arg4[%c1_297, %c26_298] : memref<2x72xf32, #tpu.memory_space<smem>>
    %645 = vector.broadcast %644 : f32 to vector<8x256xf32>
    %646 = arith.mulf %645, %640 : vector<8x256xf32>
    %647 = arith.addf %636, %643 : vector<8x256xf32>
    %648 = arith.addf %637, %646 : vector<8x256xf32>
    %c1_i32_299 = arith.constant 1 : i32
    %649 = tpu.dynamic_rotate %345 by %c1_i32_299 dim 1 : vector<8x256xf32>, i32 -> vector<8x256xf32>
    %c241_i32_300 = arith.constant 241 : i32
    %650 = tpu.dynamic_rotate %345 by %c241_i32_300 dim 1 : vector<8x256xf32>, i32 -> vector<8x256xf32>
    %651 = arith.select %21, %650, %649 : vector<8x256xi1>, vector<8x256xf32>
    %c0_301 = arith.constant 0 : index
    %c27 = arith.constant 27 : index
    %652 = memref.load %arg4[%c0_301, %c27] : memref<2x72xf32, #tpu.memory_space<smem>>
    %653 = vector.broadcast %652 : f32 to vector<8x256xf32>
    %654 = arith.mulf %653, %651 : vector<8x256xf32>
    %c1_302 = arith.constant 1 : index
    %c27_303 = arith.constant 27 : index
    %655 = memref.load %arg4[%c1_302, %c27_303] : memref<2x72xf32, #tpu.memory_space<smem>>
    %656 = vector.broadcast %655 : f32 to vector<8x256xf32>
    %657 = arith.mulf %656, %651 : vector<8x256xf32>
    %658 = arith.addf %647, %654 : vector<8x256xf32>
    %659 = arith.addf %648, %657 : vector<8x256xf32>
    %c1_i32_304 = arith.constant 1 : i32
    %660 = tpu.dynamic_rotate %351 by %c1_i32_304 dim 1 : vector<8x256xf32>, i32 -> vector<8x256xf32>
    %c241_i32_305 = arith.constant 241 : i32
    %661 = tpu.dynamic_rotate %351 by %c241_i32_305 dim 1 : vector<8x256xf32>, i32 -> vector<8x256xf32>
    %662 = arith.select %21, %661, %660 : vector<8x256xi1>, vector<8x256xf32>
    %c0_306 = arith.constant 0 : index
    %c28 = arith.constant 28 : index
    %663 = memref.load %arg4[%c0_306, %c28] : memref<2x72xf32, #tpu.memory_space<smem>>
    %664 = vector.broadcast %663 : f32 to vector<8x256xf32>
    %665 = arith.mulf %664, %662 : vector<8x256xf32>
    %c1_307 = arith.constant 1 : index
    %c28_308 = arith.constant 28 : index
    %666 = memref.load %arg4[%c1_307, %c28_308] : memref<2x72xf32, #tpu.memory_space<smem>>
    %667 = vector.broadcast %666 : f32 to vector<8x256xf32>
    %668 = arith.mulf %667, %662 : vector<8x256xf32>
    %669 = arith.addf %658, %665 : vector<8x256xf32>
    %670 = arith.addf %659, %668 : vector<8x256xf32>
    %c1_i32_309 = arith.constant 1 : i32
    %671 = tpu.dynamic_rotate %357 by %c1_i32_309 dim 1 : vector<8x256xf32>, i32 -> vector<8x256xf32>
    %c241_i32_310 = arith.constant 241 : i32
    %672 = tpu.dynamic_rotate %357 by %c241_i32_310 dim 1 : vector<8x256xf32>, i32 -> vector<8x256xf32>
    %673 = arith.select %21, %672, %671 : vector<8x256xi1>, vector<8x256xf32>
    %c0_311 = arith.constant 0 : index
    %c29 = arith.constant 29 : index
    %674 = memref.load %arg4[%c0_311, %c29] : memref<2x72xf32, #tpu.memory_space<smem>>
    %675 = vector.broadcast %674 : f32 to vector<8x256xf32>
    %676 = arith.mulf %675, %673 : vector<8x256xf32>
    %c1_312 = arith.constant 1 : index
    %c29_313 = arith.constant 29 : index
    %677 = memref.load %arg4[%c1_312, %c29_313] : memref<2x72xf32, #tpu.memory_space<smem>>
    %678 = vector.broadcast %677 : f32 to vector<8x256xf32>
    %679 = arith.mulf %678, %673 : vector<8x256xf32>
    %680 = arith.addf %669, %676 : vector<8x256xf32>
    %681 = arith.addf %670, %679 : vector<8x256xf32>
    %c1_i32_314 = arith.constant 1 : i32
    %682 = tpu.dynamic_rotate %363 by %c1_i32_314 dim 1 : vector<8x256xf32>, i32 -> vector<8x256xf32>
    %c241_i32_315 = arith.constant 241 : i32
    %683 = tpu.dynamic_rotate %363 by %c241_i32_315 dim 1 : vector<8x256xf32>, i32 -> vector<8x256xf32>
    %684 = arith.select %21, %683, %682 : vector<8x256xi1>, vector<8x256xf32>
    %c0_316 = arith.constant 0 : index
    %c30 = arith.constant 30 : index
    %685 = memref.load %arg4[%c0_316, %c30] : memref<2x72xf32, #tpu.memory_space<smem>>
    %686 = vector.broadcast %685 : f32 to vector<8x256xf32>
    %687 = arith.mulf %686, %684 : vector<8x256xf32>
    %c1_317 = arith.constant 1 : index
    %c30_318 = arith.constant 30 : index
    %688 = memref.load %arg4[%c1_317, %c30_318] : memref<2x72xf32, #tpu.memory_space<smem>>
    %689 = vector.broadcast %688 : f32 to vector<8x256xf32>
    %690 = arith.mulf %689, %684 : vector<8x256xf32>
    %691 = arith.addf %680, %687 : vector<8x256xf32>
    %692 = arith.addf %681, %690 : vector<8x256xf32>
    %c1_i32_319 = arith.constant 1 : i32
    %693 = tpu.dynamic_rotate %369 by %c1_i32_319 dim 1 : vector<8x256xf32>, i32 -> vector<8x256xf32>
    %c241_i32_320 = arith.constant 241 : i32
    %694 = tpu.dynamic_rotate %369 by %c241_i32_320 dim 1 : vector<8x256xf32>, i32 -> vector<8x256xf32>
    %695 = arith.select %21, %694, %693 : vector<8x256xi1>, vector<8x256xf32>
    %c0_321 = arith.constant 0 : index
    %c31 = arith.constant 31 : index
    %696 = memref.load %arg4[%c0_321, %c31] : memref<2x72xf32, #tpu.memory_space<smem>>
    %697 = vector.broadcast %696 : f32 to vector<8x256xf32>
    %698 = arith.mulf %697, %695 : vector<8x256xf32>
    %c1_322 = arith.constant 1 : index
    %c31_323 = arith.constant 31 : index
    %699 = memref.load %arg4[%c1_322, %c31_323] : memref<2x72xf32, #tpu.memory_space<smem>>
    %700 = vector.broadcast %699 : f32 to vector<8x256xf32>
    %701 = arith.mulf %700, %695 : vector<8x256xf32>
    %702 = arith.addf %691, %698 : vector<8x256xf32>
    %703 = arith.addf %692, %701 : vector<8x256xf32>
    %c0_324 = arith.constant 0 : index
    %c32 = arith.constant 32 : index
    %704 = memref.load %arg4[%c0_324, %c32] : memref<2x72xf32, #tpu.memory_space<smem>>
    %705 = vector.broadcast %704 : f32 to vector<8x256xf32>
    %706 = arith.mulf %705, %327 : vector<8x256xf32>
    %c1_325 = arith.constant 1 : index
    %c32_326 = arith.constant 32 : index
    %707 = memref.load %arg4[%c1_325, %c32_326] : memref<2x72xf32, #tpu.memory_space<smem>>
    %708 = vector.broadcast %707 : f32 to vector<8x256xf32>
    %709 = arith.mulf %708, %327 : vector<8x256xf32>
    %710 = arith.addf %702, %706 : vector<8x256xf32>
    %711 = arith.addf %703, %709 : vector<8x256xf32>
    %c0_327 = arith.constant 0 : index
    %c33 = arith.constant 33 : index
    %712 = memref.load %arg4[%c0_327, %c33] : memref<2x72xf32, #tpu.memory_space<smem>>
    %713 = vector.broadcast %712 : f32 to vector<8x256xf32>
    %714 = arith.mulf %713, %333 : vector<8x256xf32>
    %c1_328 = arith.constant 1 : index
    %c33_329 = arith.constant 33 : index
    %715 = memref.load %arg4[%c1_328, %c33_329] : memref<2x72xf32, #tpu.memory_space<smem>>
    %716 = vector.broadcast %715 : f32 to vector<8x256xf32>
    %717 = arith.mulf %716, %333 : vector<8x256xf32>
    %718 = arith.addf %710, %714 : vector<8x256xf32>
    %719 = arith.addf %711, %717 : vector<8x256xf32>
    %c0_330 = arith.constant 0 : index
    %c34 = arith.constant 34 : index
    %720 = memref.load %arg4[%c0_330, %c34] : memref<2x72xf32, #tpu.memory_space<smem>>
    %721 = vector.broadcast %720 : f32 to vector<8x256xf32>
    %722 = arith.mulf %721, %339 : vector<8x256xf32>
    %c1_331 = arith.constant 1 : index
    %c34_332 = arith.constant 34 : index
    %723 = memref.load %arg4[%c1_331, %c34_332] : memref<2x72xf32, #tpu.memory_space<smem>>
    %724 = vector.broadcast %723 : f32 to vector<8x256xf32>
    %725 = arith.mulf %724, %339 : vector<8x256xf32>
    %726 = arith.addf %718, %722 : vector<8x256xf32>
    %727 = arith.addf %719, %725 : vector<8x256xf32>
    %c0_333 = arith.constant 0 : index
    %c35 = arith.constant 35 : index
    %728 = memref.load %arg4[%c0_333, %c35] : memref<2x72xf32, #tpu.memory_space<smem>>
    %729 = vector.broadcast %728 : f32 to vector<8x256xf32>
    %730 = arith.mulf %729, %345 : vector<8x256xf32>
    %c1_334 = arith.constant 1 : index
    %c35_335 = arith.constant 35 : index
    %731 = memref.load %arg4[%c1_334, %c35_335] : memref<2x72xf32, #tpu.memory_space<smem>>
    %732 = vector.broadcast %731 : f32 to vector<8x256xf32>
    %733 = arith.mulf %732, %345 : vector<8x256xf32>
    %734 = arith.addf %726, %730 : vector<8x256xf32>
    %735 = arith.addf %727, %733 : vector<8x256xf32>
    %c0_336 = arith.constant 0 : index
    %c36 = arith.constant 36 : index
    %736 = memref.load %arg4[%c0_336, %c36] : memref<2x72xf32, #tpu.memory_space<smem>>
    %737 = vector.broadcast %736 : f32 to vector<8x256xf32>
    %738 = arith.mulf %737, %351 : vector<8x256xf32>
    %c1_337 = arith.constant 1 : index
    %c36_338 = arith.constant 36 : index
    %739 = memref.load %arg4[%c1_337, %c36_338] : memref<2x72xf32, #tpu.memory_space<smem>>
    %740 = vector.broadcast %739 : f32 to vector<8x256xf32>
    %741 = arith.mulf %740, %351 : vector<8x256xf32>
    %742 = arith.addf %734, %738 : vector<8x256xf32>
    %743 = arith.addf %735, %741 : vector<8x256xf32>
    %c0_339 = arith.constant 0 : index
    %c37 = arith.constant 37 : index
    %744 = memref.load %arg4[%c0_339, %c37] : memref<2x72xf32, #tpu.memory_space<smem>>
    %745 = vector.broadcast %744 : f32 to vector<8x256xf32>
    %746 = arith.mulf %745, %357 : vector<8x256xf32>
    %c1_340 = arith.constant 1 : index
    %c37_341 = arith.constant 37 : index
    %747 = memref.load %arg4[%c1_340, %c37_341] : memref<2x72xf32, #tpu.memory_space<smem>>
    %748 = vector.broadcast %747 : f32 to vector<8x256xf32>
    %749 = arith.mulf %748, %357 : vector<8x256xf32>
    %750 = arith.addf %742, %746 : vector<8x256xf32>
    %751 = arith.addf %743, %749 : vector<8x256xf32>
    %c0_342 = arith.constant 0 : index
    %c38 = arith.constant 38 : index
    %752 = memref.load %arg4[%c0_342, %c38] : memref<2x72xf32, #tpu.memory_space<smem>>
    %753 = vector.broadcast %752 : f32 to vector<8x256xf32>
    %754 = arith.mulf %753, %363 : vector<8x256xf32>
    %c1_343 = arith.constant 1 : index
    %c38_344 = arith.constant 38 : index
    %755 = memref.load %arg4[%c1_343, %c38_344] : memref<2x72xf32, #tpu.memory_space<smem>>
    %756 = vector.broadcast %755 : f32 to vector<8x256xf32>
    %757 = arith.mulf %756, %363 : vector<8x256xf32>
    %758 = arith.addf %750, %754 : vector<8x256xf32>
    %759 = arith.addf %751, %757 : vector<8x256xf32>
    %c0_345 = arith.constant 0 : index
    %c39 = arith.constant 39 : index
    %760 = memref.load %arg4[%c0_345, %c39] : memref<2x72xf32, #tpu.memory_space<smem>>
    %761 = vector.broadcast %760 : f32 to vector<8x256xf32>
    %762 = arith.mulf %761, %369 : vector<8x256xf32>
    %c1_346 = arith.constant 1 : index
    %c39_347 = arith.constant 39 : index
    %763 = memref.load %arg4[%c1_346, %c39_347] : memref<2x72xf32, #tpu.memory_space<smem>>
    %764 = vector.broadcast %763 : f32 to vector<8x256xf32>
    %765 = arith.mulf %764, %369 : vector<8x256xf32>
    %766 = arith.addf %758, %762 : vector<8x256xf32>
    %767 = arith.addf %759, %765 : vector<8x256xf32>
    %c255_i32_348 = arith.constant 255 : i32
    %768 = tpu.dynamic_rotate %327 by %c255_i32_348 dim 1 : vector<8x256xf32>, i32 -> vector<8x256xf32>
    %c15_i32_349 = arith.constant 15 : i32
    %769 = tpu.dynamic_rotate %327 by %c15_i32_349 dim 1 : vector<8x256xf32>, i32 -> vector<8x256xf32>
    %770 = arith.select %19, %769, %768 : vector<8x256xi1>, vector<8x256xf32>
    %c0_350 = arith.constant 0 : index
    %c40 = arith.constant 40 : index
    %771 = memref.load %arg4[%c0_350, %c40] : memref<2x72xf32, #tpu.memory_space<smem>>
    %772 = vector.broadcast %771 : f32 to vector<8x256xf32>
    %773 = arith.mulf %772, %770 : vector<8x256xf32>
    %c1_351 = arith.constant 1 : index
    %c40_352 = arith.constant 40 : index
    %774 = memref.load %arg4[%c1_351, %c40_352] : memref<2x72xf32, #tpu.memory_space<smem>>
    %775 = vector.broadcast %774 : f32 to vector<8x256xf32>
    %776 = arith.mulf %775, %770 : vector<8x256xf32>
    %777 = arith.addf %766, %773 : vector<8x256xf32>
    %778 = arith.addf %767, %776 : vector<8x256xf32>
    %c255_i32_353 = arith.constant 255 : i32
    %779 = tpu.dynamic_rotate %333 by %c255_i32_353 dim 1 : vector<8x256xf32>, i32 -> vector<8x256xf32>
    %c15_i32_354 = arith.constant 15 : i32
    %780 = tpu.dynamic_rotate %333 by %c15_i32_354 dim 1 : vector<8x256xf32>, i32 -> vector<8x256xf32>
    %781 = arith.select %19, %780, %779 : vector<8x256xi1>, vector<8x256xf32>
    %c0_355 = arith.constant 0 : index
    %c41 = arith.constant 41 : index
    %782 = memref.load %arg4[%c0_355, %c41] : memref<2x72xf32, #tpu.memory_space<smem>>
    %783 = vector.broadcast %782 : f32 to vector<8x256xf32>
    %784 = arith.mulf %783, %781 : vector<8x256xf32>
    %c1_356 = arith.constant 1 : index
    %c41_357 = arith.constant 41 : index
    %785 = memref.load %arg4[%c1_356, %c41_357] : memref<2x72xf32, #tpu.memory_space<smem>>
    %786 = vector.broadcast %785 : f32 to vector<8x256xf32>
    %787 = arith.mulf %786, %781 : vector<8x256xf32>
    %788 = arith.addf %777, %784 : vector<8x256xf32>
    %789 = arith.addf %778, %787 : vector<8x256xf32>
    %c255_i32_358 = arith.constant 255 : i32
    %790 = tpu.dynamic_rotate %339 by %c255_i32_358 dim 1 : vector<8x256xf32>, i32 -> vector<8x256xf32>
    %c15_i32_359 = arith.constant 15 : i32
    %791 = tpu.dynamic_rotate %339 by %c15_i32_359 dim 1 : vector<8x256xf32>, i32 -> vector<8x256xf32>
    %792 = arith.select %19, %791, %790 : vector<8x256xi1>, vector<8x256xf32>
    %c0_360 = arith.constant 0 : index
    %c42 = arith.constant 42 : index
    %793 = memref.load %arg4[%c0_360, %c42] : memref<2x72xf32, #tpu.memory_space<smem>>
    %794 = vector.broadcast %793 : f32 to vector<8x256xf32>
    %795 = arith.mulf %794, %792 : vector<8x256xf32>
    %c1_361 = arith.constant 1 : index
    %c42_362 = arith.constant 42 : index
    %796 = memref.load %arg4[%c1_361, %c42_362] : memref<2x72xf32, #tpu.memory_space<smem>>
    %797 = vector.broadcast %796 : f32 to vector<8x256xf32>
    %798 = arith.mulf %797, %792 : vector<8x256xf32>
    %799 = arith.addf %788, %795 : vector<8x256xf32>
    %800 = arith.addf %789, %798 : vector<8x256xf32>
    %c255_i32_363 = arith.constant 255 : i32
    %801 = tpu.dynamic_rotate %345 by %c255_i32_363 dim 1 : vector<8x256xf32>, i32 -> vector<8x256xf32>
    %c15_i32_364 = arith.constant 15 : i32
    %802 = tpu.dynamic_rotate %345 by %c15_i32_364 dim 1 : vector<8x256xf32>, i32 -> vector<8x256xf32>
    %803 = arith.select %19, %802, %801 : vector<8x256xi1>, vector<8x256xf32>
    %c0_365 = arith.constant 0 : index
    %c43 = arith.constant 43 : index
    %804 = memref.load %arg4[%c0_365, %c43] : memref<2x72xf32, #tpu.memory_space<smem>>
    %805 = vector.broadcast %804 : f32 to vector<8x256xf32>
    %806 = arith.mulf %805, %803 : vector<8x256xf32>
    %c1_366 = arith.constant 1 : index
    %c43_367 = arith.constant 43 : index
    %807 = memref.load %arg4[%c1_366, %c43_367] : memref<2x72xf32, #tpu.memory_space<smem>>
    %808 = vector.broadcast %807 : f32 to vector<8x256xf32>
    %809 = arith.mulf %808, %803 : vector<8x256xf32>
    %810 = arith.addf %799, %806 : vector<8x256xf32>
    %811 = arith.addf %800, %809 : vector<8x256xf32>
    %c255_i32_368 = arith.constant 255 : i32
    %812 = tpu.dynamic_rotate %351 by %c255_i32_368 dim 1 : vector<8x256xf32>, i32 -> vector<8x256xf32>
    %c15_i32_369 = arith.constant 15 : i32
    %813 = tpu.dynamic_rotate %351 by %c15_i32_369 dim 1 : vector<8x256xf32>, i32 -> vector<8x256xf32>
    %814 = arith.select %19, %813, %812 : vector<8x256xi1>, vector<8x256xf32>
    %c0_370 = arith.constant 0 : index
    %c44 = arith.constant 44 : index
    %815 = memref.load %arg4[%c0_370, %c44] : memref<2x72xf32, #tpu.memory_space<smem>>
    %816 = vector.broadcast %815 : f32 to vector<8x256xf32>
    %817 = arith.mulf %816, %814 : vector<8x256xf32>
    %c1_371 = arith.constant 1 : index
    %c44_372 = arith.constant 44 : index
    %818 = memref.load %arg4[%c1_371, %c44_372] : memref<2x72xf32, #tpu.memory_space<smem>>
    %819 = vector.broadcast %818 : f32 to vector<8x256xf32>
    %820 = arith.mulf %819, %814 : vector<8x256xf32>
    %821 = arith.addf %810, %817 : vector<8x256xf32>
    %822 = arith.addf %811, %820 : vector<8x256xf32>
    %c255_i32_373 = arith.constant 255 : i32
    %823 = tpu.dynamic_rotate %357 by %c255_i32_373 dim 1 : vector<8x256xf32>, i32 -> vector<8x256xf32>
    %c15_i32_374 = arith.constant 15 : i32
    %824 = tpu.dynamic_rotate %357 by %c15_i32_374 dim 1 : vector<8x256xf32>, i32 -> vector<8x256xf32>
    %825 = arith.select %19, %824, %823 : vector<8x256xi1>, vector<8x256xf32>
    %c0_375 = arith.constant 0 : index
    %c45 = arith.constant 45 : index
    %826 = memref.load %arg4[%c0_375, %c45] : memref<2x72xf32, #tpu.memory_space<smem>>
    %827 = vector.broadcast %826 : f32 to vector<8x256xf32>
    %828 = arith.mulf %827, %825 : vector<8x256xf32>
    %c1_376 = arith.constant 1 : index
    %c45_377 = arith.constant 45 : index
    %829 = memref.load %arg4[%c1_376, %c45_377] : memref<2x72xf32, #tpu.memory_space<smem>>
    %830 = vector.broadcast %829 : f32 to vector<8x256xf32>
    %831 = arith.mulf %830, %825 : vector<8x256xf32>
    %832 = arith.addf %821, %828 : vector<8x256xf32>
    %833 = arith.addf %822, %831 : vector<8x256xf32>
    %c255_i32_378 = arith.constant 255 : i32
    %834 = tpu.dynamic_rotate %363 by %c255_i32_378 dim 1 : vector<8x256xf32>, i32 -> vector<8x256xf32>
    %c15_i32_379 = arith.constant 15 : i32
    %835 = tpu.dynamic_rotate %363 by %c15_i32_379 dim 1 : vector<8x256xf32>, i32 -> vector<8x256xf32>
    %836 = arith.select %19, %835, %834 : vector<8x256xi1>, vector<8x256xf32>
    %c0_380 = arith.constant 0 : index
    %c46 = arith.constant 46 : index
    %837 = memref.load %arg4[%c0_380, %c46] : memref<2x72xf32, #tpu.memory_space<smem>>
    %838 = vector.broadcast %837 : f32 to vector<8x256xf32>
    %839 = arith.mulf %838, %836 : vector<8x256xf32>
    %c1_381 = arith.constant 1 : index
    %c46_382 = arith.constant 46 : index
    %840 = memref.load %arg4[%c1_381, %c46_382] : memref<2x72xf32, #tpu.memory_space<smem>>
    %841 = vector.broadcast %840 : f32 to vector<8x256xf32>
    %842 = arith.mulf %841, %836 : vector<8x256xf32>
    %843 = arith.addf %832, %839 : vector<8x256xf32>
    %844 = arith.addf %833, %842 : vector<8x256xf32>
    %c255_i32_383 = arith.constant 255 : i32
    %845 = tpu.dynamic_rotate %369 by %c255_i32_383 dim 1 : vector<8x256xf32>, i32 -> vector<8x256xf32>
    %c15_i32_384 = arith.constant 15 : i32
    %846 = tpu.dynamic_rotate %369 by %c15_i32_384 dim 1 : vector<8x256xf32>, i32 -> vector<8x256xf32>
    %847 = arith.select %19, %846, %845 : vector<8x256xi1>, vector<8x256xf32>
    %c0_385 = arith.constant 0 : index
    %c47 = arith.constant 47 : index
    %848 = memref.load %arg4[%c0_385, %c47] : memref<2x72xf32, #tpu.memory_space<smem>>
    %849 = vector.broadcast %848 : f32 to vector<8x256xf32>
    %850 = arith.mulf %849, %847 : vector<8x256xf32>
    %c1_386 = arith.constant 1 : index
    %c47_387 = arith.constant 47 : index
    %851 = memref.load %arg4[%c1_386, %c47_387] : memref<2x72xf32, #tpu.memory_space<smem>>
    %852 = vector.broadcast %851 : f32 to vector<8x256xf32>
    %853 = arith.mulf %852, %847 : vector<8x256xf32>
    %854 = arith.addf %843, %850 : vector<8x256xf32>
    %855 = arith.addf %844, %853 : vector<8x256xf32>
    %c241_i32_388 = arith.constant 241 : i32
    %856 = tpu.dynamic_rotate %327 by %c241_i32_388 dim 1 : vector<8x256xf32>, i32 -> vector<8x256xf32>
    %c225_i32_389 = arith.constant 225 : i32
    %857 = tpu.dynamic_rotate %327 by %c225_i32_389 dim 1 : vector<8x256xf32>, i32 -> vector<8x256xf32>
    %858 = arith.select %21, %857, %856 : vector<8x256xi1>, vector<8x256xf32>
    %c0_390 = arith.constant 0 : index
    %c48 = arith.constant 48 : index
    %859 = memref.load %arg4[%c0_390, %c48] : memref<2x72xf32, #tpu.memory_space<smem>>
    %860 = vector.broadcast %859 : f32 to vector<8x256xf32>
    %861 = arith.mulf %860, %858 : vector<8x256xf32>
    %c1_391 = arith.constant 1 : index
    %c48_392 = arith.constant 48 : index
    %862 = memref.load %arg4[%c1_391, %c48_392] : memref<2x72xf32, #tpu.memory_space<smem>>
    %863 = vector.broadcast %862 : f32 to vector<8x256xf32>
    %864 = arith.mulf %863, %858 : vector<8x256xf32>
    %865 = arith.addf %854, %861 : vector<8x256xf32>
    %866 = arith.addf %855, %864 : vector<8x256xf32>
    %c241_i32_393 = arith.constant 241 : i32
    %867 = tpu.dynamic_rotate %333 by %c241_i32_393 dim 1 : vector<8x256xf32>, i32 -> vector<8x256xf32>
    %c225_i32_394 = arith.constant 225 : i32
    %868 = tpu.dynamic_rotate %333 by %c225_i32_394 dim 1 : vector<8x256xf32>, i32 -> vector<8x256xf32>
    %869 = arith.select %21, %868, %867 : vector<8x256xi1>, vector<8x256xf32>
    %c0_395 = arith.constant 0 : index
    %c49 = arith.constant 49 : index
    %870 = memref.load %arg4[%c0_395, %c49] : memref<2x72xf32, #tpu.memory_space<smem>>
    %871 = vector.broadcast %870 : f32 to vector<8x256xf32>
    %872 = arith.mulf %871, %869 : vector<8x256xf32>
    %c1_396 = arith.constant 1 : index
    %c49_397 = arith.constant 49 : index
    %873 = memref.load %arg4[%c1_396, %c49_397] : memref<2x72xf32, #tpu.memory_space<smem>>
    %874 = vector.broadcast %873 : f32 to vector<8x256xf32>
    %875 = arith.mulf %874, %869 : vector<8x256xf32>
    %876 = arith.addf %865, %872 : vector<8x256xf32>
    %877 = arith.addf %866, %875 : vector<8x256xf32>
    %c241_i32_398 = arith.constant 241 : i32
    %878 = tpu.dynamic_rotate %339 by %c241_i32_398 dim 1 : vector<8x256xf32>, i32 -> vector<8x256xf32>
    %c225_i32_399 = arith.constant 225 : i32
    %879 = tpu.dynamic_rotate %339 by %c225_i32_399 dim 1 : vector<8x256xf32>, i32 -> vector<8x256xf32>
    %880 = arith.select %21, %879, %878 : vector<8x256xi1>, vector<8x256xf32>
    %c0_400 = arith.constant 0 : index
    %c50 = arith.constant 50 : index
    %881 = memref.load %arg4[%c0_400, %c50] : memref<2x72xf32, #tpu.memory_space<smem>>
    %882 = vector.broadcast %881 : f32 to vector<8x256xf32>
    %883 = arith.mulf %882, %880 : vector<8x256xf32>
    %c1_401 = arith.constant 1 : index
    %c50_402 = arith.constant 50 : index
    %884 = memref.load %arg4[%c1_401, %c50_402] : memref<2x72xf32, #tpu.memory_space<smem>>
    %885 = vector.broadcast %884 : f32 to vector<8x256xf32>
    %886 = arith.mulf %885, %880 : vector<8x256xf32>
    %887 = arith.addf %876, %883 : vector<8x256xf32>
    %888 = arith.addf %877, %886 : vector<8x256xf32>
    %c241_i32_403 = arith.constant 241 : i32
    %889 = tpu.dynamic_rotate %345 by %c241_i32_403 dim 1 : vector<8x256xf32>, i32 -> vector<8x256xf32>
    %c225_i32_404 = arith.constant 225 : i32
    %890 = tpu.dynamic_rotate %345 by %c225_i32_404 dim 1 : vector<8x256xf32>, i32 -> vector<8x256xf32>
    %891 = arith.select %21, %890, %889 : vector<8x256xi1>, vector<8x256xf32>
    %c0_405 = arith.constant 0 : index
    %c51 = arith.constant 51 : index
    %892 = memref.load %arg4[%c0_405, %c51] : memref<2x72xf32, #tpu.memory_space<smem>>
    %893 = vector.broadcast %892 : f32 to vector<8x256xf32>
    %894 = arith.mulf %893, %891 : vector<8x256xf32>
    %c1_406 = arith.constant 1 : index
    %c51_407 = arith.constant 51 : index
    %895 = memref.load %arg4[%c1_406, %c51_407] : memref<2x72xf32, #tpu.memory_space<smem>>
    %896 = vector.broadcast %895 : f32 to vector<8x256xf32>
    %897 = arith.mulf %896, %891 : vector<8x256xf32>
    %898 = arith.addf %887, %894 : vector<8x256xf32>
    %899 = arith.addf %888, %897 : vector<8x256xf32>
    %c241_i32_408 = arith.constant 241 : i32
    %900 = tpu.dynamic_rotate %351 by %c241_i32_408 dim 1 : vector<8x256xf32>, i32 -> vector<8x256xf32>
    %c225_i32_409 = arith.constant 225 : i32
    %901 = tpu.dynamic_rotate %351 by %c225_i32_409 dim 1 : vector<8x256xf32>, i32 -> vector<8x256xf32>
    %902 = arith.select %21, %901, %900 : vector<8x256xi1>, vector<8x256xf32>
    %c0_410 = arith.constant 0 : index
    %c52 = arith.constant 52 : index
    %903 = memref.load %arg4[%c0_410, %c52] : memref<2x72xf32, #tpu.memory_space<smem>>
    %904 = vector.broadcast %903 : f32 to vector<8x256xf32>
    %905 = arith.mulf %904, %902 : vector<8x256xf32>
    %c1_411 = arith.constant 1 : index
    %c52_412 = arith.constant 52 : index
    %906 = memref.load %arg4[%c1_411, %c52_412] : memref<2x72xf32, #tpu.memory_space<smem>>
    %907 = vector.broadcast %906 : f32 to vector<8x256xf32>
    %908 = arith.mulf %907, %902 : vector<8x256xf32>
    %909 = arith.addf %898, %905 : vector<8x256xf32>
    %910 = arith.addf %899, %908 : vector<8x256xf32>
    %c241_i32_413 = arith.constant 241 : i32
    %911 = tpu.dynamic_rotate %357 by %c241_i32_413 dim 1 : vector<8x256xf32>, i32 -> vector<8x256xf32>
    %c225_i32_414 = arith.constant 225 : i32
    %912 = tpu.dynamic_rotate %357 by %c225_i32_414 dim 1 : vector<8x256xf32>, i32 -> vector<8x256xf32>
    %913 = arith.select %21, %912, %911 : vector<8x256xi1>, vector<8x256xf32>
    %c0_415 = arith.constant 0 : index
    %c53 = arith.constant 53 : index
    %914 = memref.load %arg4[%c0_415, %c53] : memref<2x72xf32, #tpu.memory_space<smem>>
    %915 = vector.broadcast %914 : f32 to vector<8x256xf32>
    %916 = arith.mulf %915, %913 : vector<8x256xf32>
    %c1_416 = arith.constant 1 : index
    %c53_417 = arith.constant 53 : index
    %917 = memref.load %arg4[%c1_416, %c53_417] : memref<2x72xf32, #tpu.memory_space<smem>>
    %918 = vector.broadcast %917 : f32 to vector<8x256xf32>
    %919 = arith.mulf %918, %913 : vector<8x256xf32>
    %920 = arith.addf %909, %916 : vector<8x256xf32>
    %921 = arith.addf %910, %919 : vector<8x256xf32>
    %c241_i32_418 = arith.constant 241 : i32
    %922 = tpu.dynamic_rotate %363 by %c241_i32_418 dim 1 : vector<8x256xf32>, i32 -> vector<8x256xf32>
    %c225_i32_419 = arith.constant 225 : i32
    %923 = tpu.dynamic_rotate %363 by %c225_i32_419 dim 1 : vector<8x256xf32>, i32 -> vector<8x256xf32>
    %924 = arith.select %21, %923, %922 : vector<8x256xi1>, vector<8x256xf32>
    %c0_420 = arith.constant 0 : index
    %c54 = arith.constant 54 : index
    %925 = memref.load %arg4[%c0_420, %c54] : memref<2x72xf32, #tpu.memory_space<smem>>
    %926 = vector.broadcast %925 : f32 to vector<8x256xf32>
    %927 = arith.mulf %926, %924 : vector<8x256xf32>
    %c1_421 = arith.constant 1 : index
    %c54_422 = arith.constant 54 : index
    %928 = memref.load %arg4[%c1_421, %c54_422] : memref<2x72xf32, #tpu.memory_space<smem>>
    %929 = vector.broadcast %928 : f32 to vector<8x256xf32>
    %930 = arith.mulf %929, %924 : vector<8x256xf32>
    %931 = arith.addf %920, %927 : vector<8x256xf32>
    %932 = arith.addf %921, %930 : vector<8x256xf32>
    %c241_i32_423 = arith.constant 241 : i32
    %933 = tpu.dynamic_rotate %369 by %c241_i32_423 dim 1 : vector<8x256xf32>, i32 -> vector<8x256xf32>
    %c225_i32_424 = arith.constant 225 : i32
    %934 = tpu.dynamic_rotate %369 by %c225_i32_424 dim 1 : vector<8x256xf32>, i32 -> vector<8x256xf32>
    %935 = arith.select %21, %934, %933 : vector<8x256xi1>, vector<8x256xf32>
    %c0_425 = arith.constant 0 : index
    %c55 = arith.constant 55 : index
    %936 = memref.load %arg4[%c0_425, %c55] : memref<2x72xf32, #tpu.memory_space<smem>>
    %937 = vector.broadcast %936 : f32 to vector<8x256xf32>
    %938 = arith.mulf %937, %935 : vector<8x256xf32>
    %c1_426 = arith.constant 1 : index
    %c55_427 = arith.constant 55 : index
    %939 = memref.load %arg4[%c1_426, %c55_427] : memref<2x72xf32, #tpu.memory_space<smem>>
    %940 = vector.broadcast %939 : f32 to vector<8x256xf32>
    %941 = arith.mulf %940, %935 : vector<8x256xf32>
    %942 = arith.addf %931, %938 : vector<8x256xf32>
    %943 = arith.addf %932, %941 : vector<8x256xf32>
    %c240_i32_428 = arith.constant 240 : i32
    %944 = tpu.dynamic_rotate %327 by %c240_i32_428 dim 1 : vector<8x256xf32>, i32 -> vector<8x256xf32>
    %c0_429 = arith.constant 0 : index
    %c56 = arith.constant 56 : index
    %945 = memref.load %arg4[%c0_429, %c56] : memref<2x72xf32, #tpu.memory_space<smem>>
    %946 = vector.broadcast %945 : f32 to vector<8x256xf32>
    %947 = arith.mulf %946, %944 : vector<8x256xf32>
    %c1_430 = arith.constant 1 : index
    %c56_431 = arith.constant 56 : index
    %948 = memref.load %arg4[%c1_430, %c56_431] : memref<2x72xf32, #tpu.memory_space<smem>>
    %949 = vector.broadcast %948 : f32 to vector<8x256xf32>
    %950 = arith.mulf %949, %944 : vector<8x256xf32>
    %951 = arith.addf %942, %947 : vector<8x256xf32>
    %952 = arith.addf %943, %950 : vector<8x256xf32>
    %c240_i32_432 = arith.constant 240 : i32
    %953 = tpu.dynamic_rotate %333 by %c240_i32_432 dim 1 : vector<8x256xf32>, i32 -> vector<8x256xf32>
    %c0_433 = arith.constant 0 : index
    %c57 = arith.constant 57 : index
    %954 = memref.load %arg4[%c0_433, %c57] : memref<2x72xf32, #tpu.memory_space<smem>>
    %955 = vector.broadcast %954 : f32 to vector<8x256xf32>
    %956 = arith.mulf %955, %953 : vector<8x256xf32>
    %c1_434 = arith.constant 1 : index
    %c57_435 = arith.constant 57 : index
    %957 = memref.load %arg4[%c1_434, %c57_435] : memref<2x72xf32, #tpu.memory_space<smem>>
    %958 = vector.broadcast %957 : f32 to vector<8x256xf32>
    %959 = arith.mulf %958, %953 : vector<8x256xf32>
    %960 = arith.addf %951, %956 : vector<8x256xf32>
    %961 = arith.addf %952, %959 : vector<8x256xf32>
    %c240_i32_436 = arith.constant 240 : i32
    %962 = tpu.dynamic_rotate %339 by %c240_i32_436 dim 1 : vector<8x256xf32>, i32 -> vector<8x256xf32>
    %c0_437 = arith.constant 0 : index
    %c58 = arith.constant 58 : index
    %963 = memref.load %arg4[%c0_437, %c58] : memref<2x72xf32, #tpu.memory_space<smem>>
    %964 = vector.broadcast %963 : f32 to vector<8x256xf32>
    %965 = arith.mulf %964, %962 : vector<8x256xf32>
    %c1_438 = arith.constant 1 : index
    %c58_439 = arith.constant 58 : index
    %966 = memref.load %arg4[%c1_438, %c58_439] : memref<2x72xf32, #tpu.memory_space<smem>>
    %967 = vector.broadcast %966 : f32 to vector<8x256xf32>
    %968 = arith.mulf %967, %962 : vector<8x256xf32>
    %969 = arith.addf %960, %965 : vector<8x256xf32>
    %970 = arith.addf %961, %968 : vector<8x256xf32>
    %c240_i32_440 = arith.constant 240 : i32
    %971 = tpu.dynamic_rotate %345 by %c240_i32_440 dim 1 : vector<8x256xf32>, i32 -> vector<8x256xf32>
    %c0_441 = arith.constant 0 : index
    %c59 = arith.constant 59 : index
    %972 = memref.load %arg4[%c0_441, %c59] : memref<2x72xf32, #tpu.memory_space<smem>>
    %973 = vector.broadcast %972 : f32 to vector<8x256xf32>
    %974 = arith.mulf %973, %971 : vector<8x256xf32>
    %c1_442 = arith.constant 1 : index
    %c59_443 = arith.constant 59 : index
    %975 = memref.load %arg4[%c1_442, %c59_443] : memref<2x72xf32, #tpu.memory_space<smem>>
    %976 = vector.broadcast %975 : f32 to vector<8x256xf32>
    %977 = arith.mulf %976, %971 : vector<8x256xf32>
    %978 = arith.addf %969, %974 : vector<8x256xf32>
    %979 = arith.addf %970, %977 : vector<8x256xf32>
    %c240_i32_444 = arith.constant 240 : i32
    %980 = tpu.dynamic_rotate %351 by %c240_i32_444 dim 1 : vector<8x256xf32>, i32 -> vector<8x256xf32>
    %c0_445 = arith.constant 0 : index
    %c60 = arith.constant 60 : index
    %981 = memref.load %arg4[%c0_445, %c60] : memref<2x72xf32, #tpu.memory_space<smem>>
    %982 = vector.broadcast %981 : f32 to vector<8x256xf32>
    %983 = arith.mulf %982, %980 : vector<8x256xf32>
    %c1_446 = arith.constant 1 : index
    %c60_447 = arith.constant 60 : index
    %984 = memref.load %arg4[%c1_446, %c60_447] : memref<2x72xf32, #tpu.memory_space<smem>>
    %985 = vector.broadcast %984 : f32 to vector<8x256xf32>
    %986 = arith.mulf %985, %980 : vector<8x256xf32>
    %987 = arith.addf %978, %983 : vector<8x256xf32>
    %988 = arith.addf %979, %986 : vector<8x256xf32>
    %c240_i32_448 = arith.constant 240 : i32
    %989 = tpu.dynamic_rotate %357 by %c240_i32_448 dim 1 : vector<8x256xf32>, i32 -> vector<8x256xf32>
    %c0_449 = arith.constant 0 : index
    %c61 = arith.constant 61 : index
    %990 = memref.load %arg4[%c0_449, %c61] : memref<2x72xf32, #tpu.memory_space<smem>>
    %991 = vector.broadcast %990 : f32 to vector<8x256xf32>
    %992 = arith.mulf %991, %989 : vector<8x256xf32>
    %c1_450 = arith.constant 1 : index
    %c61_451 = arith.constant 61 : index
    %993 = memref.load %arg4[%c1_450, %c61_451] : memref<2x72xf32, #tpu.memory_space<smem>>
    %994 = vector.broadcast %993 : f32 to vector<8x256xf32>
    %995 = arith.mulf %994, %989 : vector<8x256xf32>
    %996 = arith.addf %987, %992 : vector<8x256xf32>
    %997 = arith.addf %988, %995 : vector<8x256xf32>
    %c240_i32_452 = arith.constant 240 : i32
    %998 = tpu.dynamic_rotate %363 by %c240_i32_452 dim 1 : vector<8x256xf32>, i32 -> vector<8x256xf32>
    %c0_453 = arith.constant 0 : index
    %c62 = arith.constant 62 : index
    %999 = memref.load %arg4[%c0_453, %c62] : memref<2x72xf32, #tpu.memory_space<smem>>
    %1000 = vector.broadcast %999 : f32 to vector<8x256xf32>
    %1001 = arith.mulf %1000, %998 : vector<8x256xf32>
    %c1_454 = arith.constant 1 : index
    %c62_455 = arith.constant 62 : index
    %1002 = memref.load %arg4[%c1_454, %c62_455] : memref<2x72xf32, #tpu.memory_space<smem>>
    %1003 = vector.broadcast %1002 : f32 to vector<8x256xf32>
    %1004 = arith.mulf %1003, %998 : vector<8x256xf32>
    %1005 = arith.addf %996, %1001 : vector<8x256xf32>
    %1006 = arith.addf %997, %1004 : vector<8x256xf32>
    %c240_i32_456 = arith.constant 240 : i32
    %1007 = tpu.dynamic_rotate %369 by %c240_i32_456 dim 1 : vector<8x256xf32>, i32 -> vector<8x256xf32>
    %c0_457 = arith.constant 0 : index
    %c63 = arith.constant 63 : index
    %1008 = memref.load %arg4[%c0_457, %c63] : memref<2x72xf32, #tpu.memory_space<smem>>
    %1009 = vector.broadcast %1008 : f32 to vector<8x256xf32>
    %1010 = arith.mulf %1009, %1007 : vector<8x256xf32>
    %c1_458 = arith.constant 1 : index
    %c63_459 = arith.constant 63 : index
    %1011 = memref.load %arg4[%c1_458, %c63_459] : memref<2x72xf32, #tpu.memory_space<smem>>
    %1012 = vector.broadcast %1011 : f32 to vector<8x256xf32>
    %1013 = arith.mulf %1012, %1007 : vector<8x256xf32>
    %1014 = arith.addf %1005, %1010 : vector<8x256xf32>
    %1015 = arith.addf %1006, %1013 : vector<8x256xf32>
    %c239_i32_460 = arith.constant 239 : i32
    %1016 = tpu.dynamic_rotate %327 by %c239_i32_460 dim 1 : vector<8x256xf32>, i32 -> vector<8x256xf32>
    %c255_i32_461 = arith.constant 255 : i32
    %1017 = tpu.dynamic_rotate %327 by %c255_i32_461 dim 1 : vector<8x256xf32>, i32 -> vector<8x256xf32>
    %1018 = arith.select %19, %1017, %1016 : vector<8x256xi1>, vector<8x256xf32>
    %c0_462 = arith.constant 0 : index
    %c64 = arith.constant 64 : index
    %1019 = memref.load %arg4[%c0_462, %c64] : memref<2x72xf32, #tpu.memory_space<smem>>
    %1020 = vector.broadcast %1019 : f32 to vector<8x256xf32>
    %1021 = arith.mulf %1020, %1018 : vector<8x256xf32>
    %c1_463 = arith.constant 1 : index
    %c64_464 = arith.constant 64 : index
    %1022 = memref.load %arg4[%c1_463, %c64_464] : memref<2x72xf32, #tpu.memory_space<smem>>
    %1023 = vector.broadcast %1022 : f32 to vector<8x256xf32>
    %1024 = arith.mulf %1023, %1018 : vector<8x256xf32>
    %1025 = arith.addf %1014, %1021 : vector<8x256xf32>
    %1026 = arith.addf %1015, %1024 : vector<8x256xf32>
    %c239_i32_465 = arith.constant 239 : i32
    %1027 = tpu.dynamic_rotate %333 by %c239_i32_465 dim 1 : vector<8x256xf32>, i32 -> vector<8x256xf32>
    %c255_i32_466 = arith.constant 255 : i32
    %1028 = tpu.dynamic_rotate %333 by %c255_i32_466 dim 1 : vector<8x256xf32>, i32 -> vector<8x256xf32>
    %1029 = arith.select %19, %1028, %1027 : vector<8x256xi1>, vector<8x256xf32>
    %c0_467 = arith.constant 0 : index
    %c65 = arith.constant 65 : index
    %1030 = memref.load %arg4[%c0_467, %c65] : memref<2x72xf32, #tpu.memory_space<smem>>
    %1031 = vector.broadcast %1030 : f32 to vector<8x256xf32>
    %1032 = arith.mulf %1031, %1029 : vector<8x256xf32>
    %c1_468 = arith.constant 1 : index
    %c65_469 = arith.constant 65 : index
    %1033 = memref.load %arg4[%c1_468, %c65_469] : memref<2x72xf32, #tpu.memory_space<smem>>
    %1034 = vector.broadcast %1033 : f32 to vector<8x256xf32>
    %1035 = arith.mulf %1034, %1029 : vector<8x256xf32>
    %1036 = arith.addf %1025, %1032 : vector<8x256xf32>
    %1037 = arith.addf %1026, %1035 : vector<8x256xf32>
    %c239_i32_470 = arith.constant 239 : i32
    %1038 = tpu.dynamic_rotate %339 by %c239_i32_470 dim 1 : vector<8x256xf32>, i32 -> vector<8x256xf32>
    %c255_i32_471 = arith.constant 255 : i32
    %1039 = tpu.dynamic_rotate %339 by %c255_i32_471 dim 1 : vector<8x256xf32>, i32 -> vector<8x256xf32>
    %1040 = arith.select %19, %1039, %1038 : vector<8x256xi1>, vector<8x256xf32>
    %c0_472 = arith.constant 0 : index
    %c66 = arith.constant 66 : index
    %1041 = memref.load %arg4[%c0_472, %c66] : memref<2x72xf32, #tpu.memory_space<smem>>
    %1042 = vector.broadcast %1041 : f32 to vector<8x256xf32>
    %1043 = arith.mulf %1042, %1040 : vector<8x256xf32>
    %c1_473 = arith.constant 1 : index
    %c66_474 = arith.constant 66 : index
    %1044 = memref.load %arg4[%c1_473, %c66_474] : memref<2x72xf32, #tpu.memory_space<smem>>
    %1045 = vector.broadcast %1044 : f32 to vector<8x256xf32>
    %1046 = arith.mulf %1045, %1040 : vector<8x256xf32>
    %1047 = arith.addf %1036, %1043 : vector<8x256xf32>
    %1048 = arith.addf %1037, %1046 : vector<8x256xf32>
    %c239_i32_475 = arith.constant 239 : i32
    %1049 = tpu.dynamic_rotate %345 by %c239_i32_475 dim 1 : vector<8x256xf32>, i32 -> vector<8x256xf32>
    %c255_i32_476 = arith.constant 255 : i32
    %1050 = tpu.dynamic_rotate %345 by %c255_i32_476 dim 1 : vector<8x256xf32>, i32 -> vector<8x256xf32>
    %1051 = arith.select %19, %1050, %1049 : vector<8x256xi1>, vector<8x256xf32>
    %c0_477 = arith.constant 0 : index
    %c67 = arith.constant 67 : index
    %1052 = memref.load %arg4[%c0_477, %c67] : memref<2x72xf32, #tpu.memory_space<smem>>
    %1053 = vector.broadcast %1052 : f32 to vector<8x256xf32>
    %1054 = arith.mulf %1053, %1051 : vector<8x256xf32>
    %c1_478 = arith.constant 1 : index
    %c67_479 = arith.constant 67 : index
    %1055 = memref.load %arg4[%c1_478, %c67_479] : memref<2x72xf32, #tpu.memory_space<smem>>
    %1056 = vector.broadcast %1055 : f32 to vector<8x256xf32>
    %1057 = arith.mulf %1056, %1051 : vector<8x256xf32>
    %1058 = arith.addf %1047, %1054 : vector<8x256xf32>
    %1059 = arith.addf %1048, %1057 : vector<8x256xf32>
    %c239_i32_480 = arith.constant 239 : i32
    %1060 = tpu.dynamic_rotate %351 by %c239_i32_480 dim 1 : vector<8x256xf32>, i32 -> vector<8x256xf32>
    %c255_i32_481 = arith.constant 255 : i32
    %1061 = tpu.dynamic_rotate %351 by %c255_i32_481 dim 1 : vector<8x256xf32>, i32 -> vector<8x256xf32>
    %1062 = arith.select %19, %1061, %1060 : vector<8x256xi1>, vector<8x256xf32>
    %c0_482 = arith.constant 0 : index
    %c68 = arith.constant 68 : index
    %1063 = memref.load %arg4[%c0_482, %c68] : memref<2x72xf32, #tpu.memory_space<smem>>
    %1064 = vector.broadcast %1063 : f32 to vector<8x256xf32>
    %1065 = arith.mulf %1064, %1062 : vector<8x256xf32>
    %c1_483 = arith.constant 1 : index
    %c68_484 = arith.constant 68 : index
    %1066 = memref.load %arg4[%c1_483, %c68_484] : memref<2x72xf32, #tpu.memory_space<smem>>
    %1067 = vector.broadcast %1066 : f32 to vector<8x256xf32>
    %1068 = arith.mulf %1067, %1062 : vector<8x256xf32>
    %1069 = arith.addf %1058, %1065 : vector<8x256xf32>
    %1070 = arith.addf %1059, %1068 : vector<8x256xf32>
    %c239_i32_485 = arith.constant 239 : i32
    %1071 = tpu.dynamic_rotate %357 by %c239_i32_485 dim 1 : vector<8x256xf32>, i32 -> vector<8x256xf32>
    %c255_i32_486 = arith.constant 255 : i32
    %1072 = tpu.dynamic_rotate %357 by %c255_i32_486 dim 1 : vector<8x256xf32>, i32 -> vector<8x256xf32>
    %1073 = arith.select %19, %1072, %1071 : vector<8x256xi1>, vector<8x256xf32>
    %c0_487 = arith.constant 0 : index
    %c69 = arith.constant 69 : index
    %1074 = memref.load %arg4[%c0_487, %c69] : memref<2x72xf32, #tpu.memory_space<smem>>
    %1075 = vector.broadcast %1074 : f32 to vector<8x256xf32>
    %1076 = arith.mulf %1075, %1073 : vector<8x256xf32>
    %c1_488 = arith.constant 1 : index
    %c69_489 = arith.constant 69 : index
    %1077 = memref.load %arg4[%c1_488, %c69_489] : memref<2x72xf32, #tpu.memory_space<smem>>
    %1078 = vector.broadcast %1077 : f32 to vector<8x256xf32>
    %1079 = arith.mulf %1078, %1073 : vector<8x256xf32>
    %1080 = arith.addf %1069, %1076 : vector<8x256xf32>
    %1081 = arith.addf %1070, %1079 : vector<8x256xf32>
    %c239_i32_490 = arith.constant 239 : i32
    %1082 = tpu.dynamic_rotate %363 by %c239_i32_490 dim 1 : vector<8x256xf32>, i32 -> vector<8x256xf32>
    %c255_i32_491 = arith.constant 255 : i32
    %1083 = tpu.dynamic_rotate %363 by %c255_i32_491 dim 1 : vector<8x256xf32>, i32 -> vector<8x256xf32>
    %1084 = arith.select %19, %1083, %1082 : vector<8x256xi1>, vector<8x256xf32>
    %c0_492 = arith.constant 0 : index
    %c70 = arith.constant 70 : index
    %1085 = memref.load %arg4[%c0_492, %c70] : memref<2x72xf32, #tpu.memory_space<smem>>
    %1086 = vector.broadcast %1085 : f32 to vector<8x256xf32>
    %1087 = arith.mulf %1086, %1084 : vector<8x256xf32>
    %c1_493 = arith.constant 1 : index
    %c70_494 = arith.constant 70 : index
    %1088 = memref.load %arg4[%c1_493, %c70_494] : memref<2x72xf32, #tpu.memory_space<smem>>
    %1089 = vector.broadcast %1088 : f32 to vector<8x256xf32>
    %1090 = arith.mulf %1089, %1084 : vector<8x256xf32>
    %1091 = arith.addf %1080, %1087 : vector<8x256xf32>
    %1092 = arith.addf %1081, %1090 : vector<8x256xf32>
    %c239_i32_495 = arith.constant 239 : i32
    %1093 = tpu.dynamic_rotate %369 by %c239_i32_495 dim 1 : vector<8x256xf32>, i32 -> vector<8x256xf32>
    %c255_i32_496 = arith.constant 255 : i32
    %1094 = tpu.dynamic_rotate %369 by %c255_i32_496 dim 1 : vector<8x256xf32>, i32 -> vector<8x256xf32>
    %1095 = arith.select %19, %1094, %1093 : vector<8x256xi1>, vector<8x256xf32>
    %c0_497 = arith.constant 0 : index
    %c71 = arith.constant 71 : index
    %1096 = memref.load %arg4[%c0_497, %c71] : memref<2x72xf32, #tpu.memory_space<smem>>
    %1097 = vector.broadcast %1096 : f32 to vector<8x256xf32>
    %1098 = arith.mulf %1097, %1095 : vector<8x256xf32>
    %c1_498 = arith.constant 1 : index
    %c71_499 = arith.constant 71 : index
    %1099 = memref.load %arg4[%c1_498, %c71_499] : memref<2x72xf32, #tpu.memory_space<smem>>
    %1100 = vector.broadcast %1099 : f32 to vector<8x256xf32>
    %1101 = arith.mulf %1100, %1095 : vector<8x256xf32>
    %1102 = arith.addf %1091, %1098 : vector<8x256xf32>
    %1103 = arith.addf %1092, %1101 : vector<8x256xf32>
    %c0_500 = arith.constant 0 : index
    %1104 = memref.load %arg5[%c0_500] : memref<2xf32, #tpu.memory_space<smem>>
    %1105 = vector.broadcast %1104 : f32 to vector<8x256xf32>
    %1106 = arith.addf %1102, %1105 : vector<8x256xf32>
    %c0_501 = arith.constant 0 : index
    %c0_502 = arith.constant 0 : index
    %1107 = vector.load %arg6[%c0_501, %c0_502] : memref<8x256xf32, #tpu.memory_space<vmem>>, vector<8x256xf32>
    tpu.vector_store %arg6[%c0_501, %c0_502], %1106 {strides = array<i32>} : memref<8x256xf32, #tpu.memory_space<vmem>>, vector<8x256xf32>,
    %c1_503 = arith.constant 1 : index
    %1108 = memref.load %arg5[%c1_503] : memref<2xf32, #tpu.memory_space<smem>>
    %1109 = vector.broadcast %1108 : f32 to vector<8x256xf32>
    %1110 = arith.addf %1103, %1109 : vector<8x256xf32>
    %c0_504 = arith.constant 0 : index
    %c0_505 = arith.constant 0 : index
    %1111 = vector.load %arg7[%c0_504, %c0_505] : memref<8x256xf32, #tpu.memory_space<vmem>>, vector<8x256xf32>
    tpu.vector_store %arg7[%c0_504, %c0_505], %1110 {strides = array<i32>} : memref<8x256xf32, #tpu.memory_space<vmem>>, vector<8x256xf32>,
    return
  }
  func.func @transform_0(%arg0: i32) -> (i32, i32) {
    %c0_i32 = arith.constant 0 : i32
    %c0_i32_0 = arith.constant 0 : i32
    return %arg0, %c0_i32 : i32, i32
  }
  func.func @transform_1(%arg0: i32) -> (i32, i32) {
    %c0_i32 = arith.constant 0 : i32
    %c0_i32_0 = arith.constant 0 : i32
    %c0_i32_1 = arith.constant 0 : i32
    return %c0_i32, %c0_i32_0 : i32, i32
  }
  func.func @transform_2(%arg0: i32) -> i32 {
    %c0_i32 = arith.constant 0 : i32
    %c0_i32_0 = arith.constant 0 : i32
    return %c0_i32 : i32
  }
  func.func @transform_3(%arg0: i32) -> (i32, i32) {
    %c0_i32 = arith.constant 0 : i32
    %c0_i32_0 = arith.constant 0 : i32
    %c0_i32_1 = arith.constant 0 : i32
    return %c0_i32, %c0_i32_0 : i32, i32
  }
  func.func @transform_4(%arg0: i32) -> i32 {
    %c0_i32 = arith.constant 0 : i32
    %c0_i32_0 = arith.constant 0 : i32
    return %c0_i32 : i32
  }
  func.func @transform_5(%arg0: i32) -> (i32, i32) {
    %c0_i32 = arith.constant 0 : i32
    %c0_i32_0 = arith.constant 0 : i32
    return %arg0, %c0_i32 : i32, i32
  }
  func.func @transform_6(%arg0: i32) -> (i32, i32) {
    %c0_i32 = arith.constant 0 : i32
    %c0_i32_0 = arith.constant 0 : i32
    return %arg0, %c0_i32 : i32, i32
  }
}

</mosaic_0001>

<llo_original>
// kernel: tpu_custom_call.1
$region0: #{tpu_custom_call.1}
  #allocation0 [shape = 'u32[]', space=smem, size = 0x4, offset = 0x4, fixed_abs, tag = 'smem constant byte address 0x4 - core index']
  #allocation1 [shape = 'u32[144,128]{1,0:T(1,128)}', space=vmem, size = 0x12000, scoped, tag = 'internal scratch']
  %s0 = inlined_call_operand.hbm [shape: f32[16,256], index: 0, kind: input, shape index: {}]
  %s1 = inlined_call_operand.vmem [shape: f32[9,8], index: 1, kind: input, shape index: {}]
  %s2 = inlined_call_operand.vmem [shape: f32[8], index: 2, kind: input, shape index: {}]
  %s3 = inlined_call_operand.vmem [shape: f32[2,72], index: 3, kind: input, shape index: {}]
  %s4 = inlined_call_operand.vmem [shape: f32[2], index: 4, kind: input, shape index: {}]
  %s5 = inlined_call_operand.hbm [shape: f32[16,256], index: 5, kind: output, shape index: {0}]
  %s6 = inlined_call_operand.hbm [shape: f32[16,256], index: 6, kind: output, shape index: {1}]
  %7 = xla_tuple %s5, %s6
  %s8 = sld [smem:[#allocation0]]
  $region81: #{tpu_custom_call.1} parent=0
    _
  %s10 = ssub.s32 1, %s8
  %s11 = scalar_select 0, %s10, %s8
  $region1: #{tpu_custom_call.1} parent=0
    #allocation2 [shape = 'u8[16384]{0}', space=vmem, size = 0x4000, scoped, tag = 'input window, operand 0']
    #allocation3 [shape = 's32[2]{0}', space=sflag, size = 0x8, scoped, tag = 'scoped memory for tpu_custom_call.1']
    #allocation4 [shape = 's32[2]{0}', space=sflag, size = 0x8, scoped, tag = 'scoped memory for tpu_custom_call.1']
    #allocation5 [shape = 's32[2]{0}', space=sflag, size = 0x8, scoped, tag = 'scoped memory for tpu_custom_call.1']
    #allocation6 [shape = 'u8[8192]{0}', space=smem, size = 0x2000, scoped, tag = 'input window, operand 1, single buffered']
    #allocation7 [shape = 'u8[512]{0}', space=smem, size = 0x200, scoped, tag = 'input window, operand 2, single buffered']
    #allocation8 [shape = 's32[1]{0}', space=sflag, size = 0x4, scoped, tag = 'scoped memory for tpu_custom_call.1']
    #allocation9 [shape = 'u8[1024]{0}', space=smem, size = 0x400, scoped, tag = 'input window, operand 3, single buffered']
    #allocation10 [shape = 'u8[512]{0}', space=smem, size = 0x200, scoped, tag = 'input window, operand 4, single buffered']
    #allocation11 [shape = 's32[1]{0}', space=sflag, size = 0x4, scoped, tag = 'scoped memory for tpu_custom_call.1']
    #allocation12 [shape = 'u8[16384]{0}', space=vmem, size = 0x4000, scoped, tag = 'output window, operand 0']
    #allocation13 [shape = 'u8[16384]{0}', space=vmem, size = 0x4000, scoped, tag = 'output window, operand 1']
    #allocation14 [shape = 's32[2]{0}', space=sflag, size = 0x8, scoped, tag = 'scoped memory for tpu_custom_call.1']
    %12 = vsyncpa [#allocation3], 0
    %s13 = scalar_lea.sflag [#allocation3], 1
    %14 = vsyncpa %s13, 0
    %15 = vsyncpa [#allocation5], 0
    %16 = vsyncpa [#allocation8], 0
    %17 = vsyncpa [#allocation11], 0
    %18 = vsyncpa [#allocation4], 0
    %s19 = scalar_lea.sflag [#allocation4], 1
    %20 = vsyncpa %s19, 0
    %21 = vsyncpa [#allocation14], 0
    %s22 = scalar_lea.sflag [#allocation14], 1
    %23 = vsyncpa %s22, 0
    loop: start=0, step=1, limit=4
    $region2: #{tpu_custom_call.1} parent=1 // loop_pre_header
      _
    $region3: #{tpu_custom_call.1} parent=1 // loop_header
      %s25 = sphi 0, %s29
      %p26 = scmp.ge.s32.totalorder %s25, 4
      %s35 = sphi 0, %s37
      %s38 = sphi 0, %s35
      %s39 = sphi 0, %s38
      %s55 = sphi 0, %s39
      %s59 = sphi 0, %s59
      %s61 = sphi 0, %s59
      %s62 = sphi 0, %s61
      %s76 = sphi 0, %s62
      %s80 = sphi 0, %s80
      %s82 = sphi 0, %s80
      %s83 = sphi 0, %s82
      %s97 = sphi 0, %s83
      %s101 = sphi 0, %s101
      %s103 = sphi 0, %s101
      %s104 = sphi 0, %s103
      %s118 = sphi 0, %s104
      %s122 = sphi 0, %s122
      %s124 = sphi 0, %s122
      %s125 = sphi 0, %s124
      %s139 = sphi 0, %s125
      %s145 = sphi 0, %s147
      %s148 = sphi 0, %s145
      %s149 = sphi 0, %s148
      %s165 = sphi 0, %s149
      %s171 = sphi 0, %s173
      %s174 = sphi 0, %s171
      %s175 = sphi 0, %s174
      %s191 = sphi 0, %s175
    $region4: #{tpu_custom_call.1} parent=1 // loop_header_branch
      %28 = sbr.rel (%p26) target = $region8
    $region5: #{tpu_custom_call.1} parent=1 // loop_body
      %s30 = ssub.s32 %s25, 1
      %s31 = ssub.s32 %s25, 2
      %s32 = sadd.s32 %s25, 1
      %s33 = ssub.s32 %s25, %s32
      %p34 = scmp.eq.s32.totalorder %s33, 0
      %s36 = sadd.s32 %s35, 1
      %s37 = scalar_select %p34, %s35, %s36
      %p40 = pneg %p34
      %p41 = scmp.eq.s32.totalorder %s25, 1
      %p42 = por %p40, %p41
      %p43 = scmp.ne.s32.totalorder %s35, %s38
      %p44 = scmp.eq.s32.totalorder %s25, 0
      %p45 = por %p43, %p44
      %p46 = scmp.ne.s32.totalorder %s35, %s38
      %p47 = scmp.eq.s32.totalorder %s30, 1
      %p48 = por %p46, %p47
      %p49 = scmp.ne.s32.totalorder %s38, %s39
      %p50 = scmp.eq.s32.totalorder %s30, 0
      %p51 = por %p49, %p50
      %p52 = scmp.ne.s32.totalorder %s38, %s39
      %p53 = scmp.eq.s32.totalorder %s31, 1
      %p54 = por %p52, %p53
      %p56 = scmp.ne.s32.totalorder %s39, %s55
      %p57 = scmp.eq.s32.totalorder %s31, 0
      %p58 = por %p56, %p57
      %s60 = sadd.s32 %s59, 1
      %p63 = scmp.eq.s32.totalorder %s25, 1
      %p64 = scmp.ne.s32.totalorder %s59, %s61
      %p65 = scmp.eq.s32.totalorder %s25, 0
      %p66 = por %p64, %p65
      %p67 = scmp.ne.s32.totalorder %s59, %s61
      %p68 = scmp.eq.s32.totalorder %s30, 1
      %p69 = por %p67, %p68
      %p70 = scmp.ne.s32.totalorder %s61, %s62
      %p71 = scmp.eq.s32.totalorder %s30, 0
      %p72 = por %p70, %p71
      %p73 = scmp.ne.s32.totalorder %s61, %s62
      %p74 = scmp.eq.s32.totalorder %s31, 1
      %p75 = por %p73, %p74
      %p77 = scmp.ne.s32.totalorder %s62, %s76
      %p78 = scmp.eq.s32.totalorder %s31, 0
      %p79 = por %p77, %p78
      %s81 = sadd.s32 %s80, 1
      %p84 = scmp.eq.s32.totalorder %s25, 1
      %p85 = scmp.ne.s32.totalorder %s80, %s82
      %p86 = scmp.eq.s32.totalorder %s25, 0
      %p87 = por %p85, %p86
      %p88 = scmp.ne.s32.totalorder %s80, %s82
      %p89 = scmp.eq.s32.totalorder %s30, 1
      %p90 = por %p88, %p89
      %p91 = scmp.ne.s32.totalorder %s82, %s83
      %p92 = scmp.eq.s32.totalorder %s30, 0
      %p93 = por %p91, %p92
      %p94 = scmp.ne.s32.totalorder %s82, %s83
      %p95 = scmp.eq.s32.totalorder %s31, 1
      %p96 = por %p94, %p95
      %p98 = scmp.ne.s32.totalorder %s83, %s97
      %p99 = scmp.eq.s32.totalorder %s31, 0
      %p100 = por %p98, %p99
      %s102 = sadd.s32 %s101, 1
      %p105 = scmp.eq.s32.totalorder %s25, 1
      %p106 = scmp.ne.s32.totalorder %s101, %s103
      %p107 = scmp.eq.s32.totalorder %s25, 0
      %p108 = por %p106, %p107
      %p109 = scmp.ne.s32.totalorder %s101, %s103
      %p110 = scmp.eq.s32.totalorder %s30, 1
      %p111 = por %p109, %p110
      %p112 = scmp.ne.s32.totalorder %s103, %s104
      %p113 = scmp.eq.s32.totalorder %s30, 0
      %p114 = por %p112, %p113
      %p115 = scmp.ne.s32.totalorder %s103, %s104
      %p116 = scmp.eq.s32.totalorder %s31, 1
      %p117 = por %p115, %p116
      %p119 = scmp.ne.s32.totalorder %s104, %s118
      %p120 = scmp.eq.s32.totalorder %s31, 0
      %p121 = por %p119, %p120
      %s123 = sadd.s32 %s122, 1
      %p126 = scmp.eq.s32.totalorder %s25, 1
      %p127 = scmp.ne.s32.totalorder %s122, %s124
      %p128 = scmp.eq.s32.totalorder %s25, 0
      %p129 = por %p127, %p128
      %p130 = scmp.ne.s32.totalorder %s122, %s124
      %p131 = scmp.eq.s32.totalorder %s30, 1
      %p132 = por %p130, %p131
      %p133 = scmp.ne.s32.totalorder %s124, %s125
      %p134 = scmp.eq.s32.totalorder %s30, 0
      %p135 = por %p133, %p134
      %p136 = scmp.ne.s32.totalorder %s124, %s125
      %p137 = scmp.eq.s32.totalorder %s31, 1
      %p138 = por %p136, %p137
      %p140 = scmp.ne.s32.totalorder %s125, %s139
      %p141 = scmp.eq.s32.totalorder %s31, 0
      %p142 = por %p140, %p141
      %s143 = ssub.s32 %s25, %s32
      %p144 = scmp.eq.s32.totalorder %s143, 0
      %s146 = sadd.s32 %s145, 1
      %s147 = scalar_select %p144, %s145, %s146
      %p150 = pneg %p144
      %p151 = scmp.eq.s32.totalorder %s25, 1
      %p152 = por %p150, %p151
      %p153 = scmp.ne.s32.totalorder %s145, %s148
      %p154 = scmp.eq.s32.totalorder %s25, 0
      %p155 = por %p153, %p154
      %p156 = scmp.ne.s32.totalorder %s145, %s148
      %p157 = scmp.eq.s32.totalorder %s30, 1
      %p158 = por %p156, %p157
      %p159 = scmp.ne.s32.totalorder %s148, %s149
      %p160 = scmp.eq.s32.totalorder %s30, 0
      %p161 = por %p159, %p160
      %p162 = scmp.ne.s32.totalorder %s148, %s149
      %p163 = scmp.eq.s32.totalorder %s31, 1
      %p164 = por %p162, %p163
      %p166 = scmp.ne.s32.totalorder %s149, %s165
      %p167 = scmp.eq.s32.totalorder %s31, 0
      %p168 = por %p166, %p167
      %s169 = ssub.s32 %s25, %s32
      %p170 = scmp.eq.s32.totalorder %s169, 0
      %s172 = sadd.s32 %s171, 1
      %s173 = scalar_select %p170, %s171, %s172
      %p176 = pneg %p170
      %p177 = scmp.eq.s32.totalorder %s25, 1
      %p178 = por %p176, %p177
      %p179 = scmp.ne.s32.totalorder %s171, %s174
      %p180 = scmp.eq.s32.totalorder %s25, 0
      %p181 = por %p179, %p180
      %p182 = scmp.ne.s32.totalorder %s171, %s174
      %p183 = scmp.eq.s32.totalorder %s30, 1
      %p184 = por %p182, %p183
      %p185 = scmp.ne.s32.totalorder %s174, %s175
      %p186 = scmp.eq.s32.totalorder %s30, 0
      %p187 = por %p185, %p186
      %p188 = scmp.ne.s32.totalorder %s174, %s175
      %p189 = scmp.eq.s32.totalorder %s31, 1
      %p190 = por %p188, %p189
      %p192 = scmp.ne.s32.totalorder %s175, %s191
      %p193 = scmp.eq.s32.totalorder %s31, 0
      %p194 = por %p192, %p193
      %p195 = scmp.le.s32.totalorder 1, %s25
      %p196 = scmp.lt.s32.totalorder %s25, 3
      %p197 = pnand %p195, %p196
      %p198 = pneg %p197
      // Predicated region
      $region9: #{tpu_custom_call.1} parent=5 // pred_check
        _
      $region10: #{tpu_custom_call.1} parent=5 // pred_check_branch
        %200 = sbr.rel (%p197) target = $region12
      $region11: #{tpu_custom_call.1} parent=5 // pred_region
        %s201 = ssub.s32 %s25, 1
        // Predicated region
        $region13: #{tpu_custom_call.1} parent=11 // pred_check
          %p202 = pneg %p72
        $region14: #{tpu_custom_call.1} parent=11 // pred_check_branch
          %204 = sbr.rel (%p202) target = $region16
        $region15: #{tpu_custom_call.1} parent=11 // pred_region
          %s206 = ssub.s32 256, 256
          %207 = vsyncadd [#allocation5], %s206
          %s208 = sshll.u32 %s1, 4
          %s209 = int_to_ptr.vmem [resolvable:$true] %s208
          %214 = dma.vmem_to_smem %s209, 256, [#allocation6], [#allocation5], 128, 128, 8
        $region16: #{tpu_custom_call.1} parent=11 // pred_fallthru
          _
        // Predicated region
        $region17: #{tpu_custom_call.1} parent=11 // pred_check
          %p215 = pneg %p93
        $region18: #{tpu_custom_call.1} parent=11 // pred_check_branch
          %217 = sbr.rel (%p215) target = $region20
        $region19: #{tpu_custom_call.1} parent=11 // pred_region
          %s219 = ssub.s32 16, 16
          %220 = vsyncadd [#allocation8], %s219
          %s222 = sshll.u32 %s2, 4
          %s223 = int_to_ptr.vmem [resolvable:$true] %s222
          %225 = dma.vmem_to_smem %s223, 16, [#allocation7], [#allocation8]
        $region20: #{tpu_custom_call.1} parent=11 // pred_fallthru
          _
        // Predicated region
        $region21: #{tpu_custom_call.1} parent=11 // pred_check
          %p226 = pneg %p114
        $region22: #{tpu_custom_call.1} parent=11 // pred_check_branch
          %228 = sbr.rel (%p226) target = $region24
        $region23: #{tpu_custom_call.1} parent=11 // pred_region
          %s230 = ssub.s32 32, 32
          %231 = vsyncadd [#allocation8], %s230
          %s233 = sshll.u32 %s3, 4
          %s234 = int_to_ptr.vmem [resolvable:$true] %s233
          %236 = dma.vmem_to_smem %s234, 32, [#allocation9], [#allocation8]
        $region24: #{tpu_custom_call.1} parent=11 // pred_fallthru
          _
        // Predicated region
        $region25: #{tpu_custom_call.1} parent=11 // pred_check
          %p237 = pneg %p135
        $region26: #{tpu_custom_call.1} parent=11 // pred_check_branch
          %239 = sbr.rel (%p237) target = $region28
        $region27: #{tpu_custom_call.1} parent=11 // pred_region
          %s241 = ssub.s32 16, 16
          %242 = vsyncadd [#allocation11], %s241
          %s244 = sshll.u32 %s4, 4
          %s245 = int_to_ptr.vmem [resolvable:$true] %s244
          %247 = dma.vmem_to_smem %s245, 16, [#allocation10], [#allocation11]
        $region28: #{tpu_custom_call.1} parent=11 // pred_fallthru
          _
      $region12: #{tpu_custom_call.1} parent=5 // pred_fallthru
        _
      %p248 = scmp.lt.s32.totalorder %s25, 2
      // Predicated region
      $region29: #{tpu_custom_call.1} parent=5 // pred_check
        %p249 = pneg %p248
      $region30: #{tpu_custom_call.1} parent=5 // pred_check_branch
        %251 = sbr.rel (%p249) target = $region32
      $region31: #{tpu_custom_call.1} parent=5 // pred_region
        // Predicated region
        $region33: #{tpu_custom_call.1} parent=31 // pred_check
          %p252 = pneg %p45
        $region34: #{tpu_custom_call.1} parent=31 // pred_check_branch
          %254 = sbr.rel (%p252) target = $region36
        $region35: #{tpu_custom_call.1} parent=31 // pred_region
          %s255 = sand.u32 %s35, 1
          %s256 = scalar_lea.sflag [#allocation3], %s255
          %s257 = sand.u32 %s35, 1
          %s258 = smul.addr %s257, 16
          %s259 = scalar_lea.vmem [#allocation2], %s258
          %s261 = ssub.s32 256, 256
          %262 = vsyncadd %s256, %s261
          %s263 = smul.addr %s25, 2
          %s264 = smul.addr %s263, 128
          %s265 = scalar_lea.hbm %s0, %s264
          %s267 = sshll.u32 %s259, 4
          %s268 = int_to_ptr.vmem [resolvable:$true] %s267
          %270 = dma.hbm_to_vmem [thread:$0]  %s265, 256, %s268, %s256
        $region36: #{tpu_custom_call.1} parent=31 // pred_fallthru
          _
      $region32: #{tpu_custom_call.1} parent=5 // pred_fallthru
        _
      %p271 = scmp.le.s32.totalorder 1, %s25
      %p272 = scmp.lt.s32.totalorder %s25, 3
      %p273 = pnand %p271, %p272
      %p274 = pneg %p273
      // Predicated region
      $region37: #{tpu_custom_call.1} parent=5 // pred_check
        _
      $region38: #{tpu_custom_call.1} parent=5 // pred_check_branch
        %276 = sbr.rel (%p273) target = $region40
      $region39: #{tpu_custom_call.1} parent=5 // pred_region
        %s277 = ssub.s32 %s25, 1
        %s278 = sand.u32 %s38, 1
        %s279 = scalar_lea.sflag [#allocation3], %s278
        %s280 = sand.u32 %s38, 1
        %s281 = smul.addr %s280, 16
        %s282 = scalar_lea.vmem [#allocation2], %s281
        // Predicated region
        $region41: #{tpu_custom_call.1} parent=39 // pred_check
          %p283 = pneg %p51
        $region42: #{tpu_custom_call.1} parent=39 // pred_check_branch
          %285 = sbr.rel (%p283) target = $region44
        $region43: #{tpu_custom_call.1} parent=39 // pred_region
          %286 = dma.done %s279, 256
        $region44: #{tpu_custom_call.1} parent=39 // pred_fallthru
          _
        // Predicated region
        $region45: #{tpu_custom_call.1} parent=39 // pred_check
          %p287 = pneg %p72
        $region46: #{tpu_custom_call.1} parent=39 // pred_check_branch
          %289 = sbr.rel (%p287) target = $region48
        $region47: #{tpu_custom_call.1} parent=39 // pred_region
          %290 = dma.done [#allocation5], 256
        $region48: #{tpu_custom_call.1} parent=39 // pred_fallthru
          _
        // Predicated region
        $region49: #{tpu_custom_call.1} parent=39 // pred_check
          %p291 = pneg %p93
        $region50: #{tpu_custom_call.1} parent=39 // pred_check_branch
          %293 = sbr.rel (%p291) target = $region52
        $region51: #{tpu_custom_call.1} parent=39 // pred_region
          %294 = dma.done [#allocation8], 16
        $region52: #{tpu_custom_call.1} parent=39 // pred_fallthru
          _
        // Predicated region
        $region53: #{tpu_custom_call.1} parent=39 // pred_check
          %p295 = pneg %p114
        $region54: #{tpu_custom_call.1} parent=39 // pred_check_branch
          %297 = sbr.rel (%p295) target = $region56
        $region55: #{tpu_custom_call.1} parent=39 // pred_region
          %298 = dma.done [#allocation8], 32
        $region56: #{tpu_custom_call.1} parent=39 // pred_fallthru
          _
        // Predicated region
        $region57: #{tpu_custom_call.1} parent=39 // pred_check
          %p299 = pneg %p135
        $region58: #{tpu_custom_call.1} parent=39 // pred_check_branch
          %301 = sbr.rel (%p299) target = $region60
        $region59: #{tpu_custom_call.1} parent=39 // pred_region
          %302 = dma.done [#allocation11], 16
        $region60: #{tpu_custom_call.1} parent=39 // pred_fallthru
          _
        %303 = sfence
        %s304 = sand.u32 %s38, 1
        %s305 = scalar_lea.sflag [#allocation3], %s304
        %s306 = sand.u32 %s38, 1
        %s307 = smul.addr %s306, 16
        %s308 = scalar_lea.vmem [#allocation2], %s307
        %p309 = pneg %p51
        %p310 = pneg %p48
        %p311 = pneg %p72
        %p312 = pneg %p69
        %p313 = pneg %p93
        %p314 = pneg %p90
        %p315 = pneg %p114
        %p316 = pneg %p111
        %p317 = pneg %p135
        %p318 = pneg %p132
        %p319 = pneg %p161
        %p320 = pneg %p158
        %s321 = sand.u32 %s148, 1
        %s322 = scalar_lea.sflag [#allocation4], %s321
        %s323 = sand.u32 %s148, 1
        %s324 = smul.addr %s323, 16
        %s325 = scalar_lea.vmem [#allocation12], %s324
        %p326 = pneg %p187
        %p327 = pneg %p184
        %s328 = sand.u32 %s174, 1
        %s329 = scalar_lea.sflag [#allocation14], %s328
        %s330 = sand.u32 %s174, 1
        %s331 = smul.addr %s330, 16
        %s332 = scalar_lea.vmem [#allocation13], %s331
        %v333 = vld [vmem:[%s282] sm:$0xff]
        %v334 = vld [vmem:[%s282 + $0x8] sm:$0xff]
        %v335 = vlaneseq
        %v336 = vand.u32 %v335, 127
        %v337 = vadd.s32 %v336, 128
        %vm338 = vcmp.lt.s32.totalorder %v336, 0
        %v339 = vsub.s32 0, %v336
        %v340 = vsel %vm338, %v339, %v336
        %v341 = vshrl.u32 %v340, 4
        %v342 = vand.u32 %v340, 15
        %v343 = vsub.s32 0, %v342
        %v344 = vsel %vm338, %v343, %v342
        %vm345 = vcmp.lt.s32.totalorder %v337, 0
        %v346 = vsub.s32 0, %v337
        %v347 = vsel %vm345, %v346, %v337
        %v348 = vshrl.u32 %v347, 4
        %v349 = vand.u32 %v347, 15
        %v350 = vsub.s32 0, %v349
        %v351 = vsel %vm345, %v350, %v349
        %vm352 = vcmp.ne.s32.totalorder %v344, 0
        %vm353 = vcmp.ne.s32.totalorder %v351, 0
        %vm354 = vcmp.lt.s32.totalorder %v344, 0
        %vm355 = vcmp.lt.s32.totalorder %v351, 0
        %vm356 = vmand %vm354, %vm352
        %vm357 = vmand %vm355, %vm353
        %v358 = vadd.s32 %v344, 16
        %v359 = vadd.s32 %v351, 16
        %v360 = vsel %vm356, %v358, %v344
        %v361 = vsel %vm357, %v359, %v351
        %vm362 = vcmp.eq.s32.totalorder %v360, 15
        %vm363 = vcmp.eq.s32.totalorder %v361, 15
        %vm364 = vcmp.eq.s32.totalorder %v360, 0
        %vm365 = vcmp.eq.s32.totalorder %v361, 0
        %366 = vrot.lane.b32.xlu0 %v333, 17
        %v367 = vpop.permute.xlu0 %366
        %368 = vrot.lane.b32.xlu0 %v334, 17
        %v369 = vpop.permute.xlu0 %368
        %vm370 = vcmp.lt.s32.totalorder %v336, 17
        %v371 = vsel %vm370, %v367, %v369
        %v372 = vsel %vm370, %v369, %v367
        %373 = vrot.lane.b32.xlu0 %v333, 1
        %v374 = vpop.permute.xlu0 %373
        %375 = vrot.lane.b32.xlu0 %v334, 1
        %v376 = vpop.permute.xlu0 %375
        %vm377 = vcmp.lt.s32.totalorder %v336, 1
        %v378 = vsel %vm377, %v374, %v376
        %v379 = vsel %vm377, %v376, %v374
        %v380 = vsel %vm364, %v379, %v372
        %v381 = vsel %vm365, %v378, %v371
        %s382 = sld [smem:[#allocation6]]
        %v383 = vstv %s382
        %v384 = vmul.f32 %v383, %v380
        %v385 = vmul.f32 %v383, %v381
        %s386 = sld [smem:[#allocation6 + $0x1]]
        %v387 = vstv %s386
        %v388 = vmul.f32 %v387, %v380
        %v389 = vmul.f32 %v387, %v381
        %s390 = sld [smem:[#allocation6 + $0x2]]
        %v391 = vstv %s390
        %v392 = vmul.f32 %v391, %v380
        %v393 = vmul.f32 %v391, %v381
        %s394 = sld [smem:[#allocation6 + $0x3]]
        %v395 = vstv %s394
        %v396 = vmul.f32 %v395, %v380
        %v397 = vmul.f32 %v395, %v381
        %s398 = sld [smem:[#allocation6 + $0x4]]
        %v399 = vstv %s398
        %v400 = vmul.f32 %v399, %v380
        %v401 = vmul.f32 %v399, %v381
        %s402 = sld [smem:[#allocation6 + $0x5]]
        %v403 = vstv %s402
        %v404 = vmul.f32 %v403, %v380
        %v405 = vmul.f32 %v403, %v381
        %s406 = sld [smem:[#allocation6 + $0x6]]
        %v407 = vstv %s406
        %v408 = vmul.f32 %v407, %v380
        %v409 = vmul.f32 %v407, %v381
        %s410 = sld [smem:[#allocation6 + $0x7]]
        %v411 = vstv %s410
        %v412 = vmul.f32 %v411, %v380
        %v413 = vmul.f32 %v411, %v381
        %414 = vrot.lane.b32.xlu0 %v333, 16
        %v415 = vpop.permute.xlu0 %414
        %416 = vrot.lane.b32.xlu0 %v334, 16
        %v417 = vpop.permute.xlu0 %416
        %vm418 = vcmp.lt.s32.totalorder %v336, 16
        %v419 = vsel %vm418, %v415, %v417
        %v420 = vsel %vm418, %v417, %v415
        %s421 = sld [smem:[#allocation6 + $0x80]]
        %v422 = vstv %s421
        %v423 = vmul.f32 %v422, %v420
        %v424 = vmul.f32 %v422, %v419
        %v425 = vadd.f32 %v384, %v423
        %v426 = vadd.f32 %v385, %v424
        %s427 = sld [smem:[#allocation6 + $0x81]]
        %v428 = vstv %s427
        %v429 = vmul.f32 %v428, %v420
        %v430 = vmul.f32 %v428, %v419
        %v431 = vadd.f32 %v388, %v429
        %v432 = vadd.f32 %v389, %v430
        %s433 = sld [smem:[#allocation6 + $0x82]]
        %v434 = vstv %s433
        %v435 = vmul.f32 %v434, %v420
        %v436 = vmul.f32 %v434, %v419
        %v437 = vadd.f32 %v392, %v435
        %v438 = vadd.f32 %v393, %v436
        %s439 = sld [smem:[#allocation6 + $0x83]]
        %v440 = vstv %s439
        %v441 = vmul.f32 %v440, %v420
        %v442 = vmul.f32 %v440, %v419
        %v443 = vadd.f32 %v396, %v441
        %v444 = vadd.f32 %v397, %v442
        %s445 = sld [smem:[#allocation6 + $0x84]]
        %v446 = vstv %s445
        %v447 = vmul.f32 %v446, %v420
        %v448 = vmul.f32 %v446, %v419
        %v449 = vadd.f32 %v400, %v447
        %v450 = vadd.f32 %v401, %v448
        %s451 = sld [smem:[#allocation6 + $0x85]]
        %v452 = vstv %s451
        %v453 = vmul.f32 %v452, %v420
        %v454 = vmul.f32 %v452, %v419
        %v455 = vadd.f32 %v404, %v453
        %v456 = vadd.f32 %v405, %v454
        %s457 = sld [smem:[#allocation6 + $0x86]]
        %v458 = vstv %s457
        %v459 = vmul.f32 %v458, %v420
        %v460 = vmul.f32 %v458, %v419
        %v461 = vadd.f32 %v408, %v459
        %v462 = vadd.f32 %v409, %v460
        %s463 = sld [smem:[#allocation6 + $0x87]]
        %v464 = vstv %s463
        %v465 = vmul.f32 %v464, %v420
        %v466 = vmul.f32 %v464, %v419
        %v467 = vadd.f32 %v412, %v465
        %v468 = vadd.f32 %v413, %v466
        %469 = vrot.lane.b32.xlu0 %v333, 15
        %v470 = vpop.permute.xlu0 %469
        %471 = vrot.lane.b32.xlu0 %v334, 15
        %v472 = vpop.permute.xlu0 %471
        %vm473 = vcmp.lt.s32.totalorder %v336, 15
        %v474 = vsel %vm473, %v470, %v472
        %v475 = vsel %vm473, %v472, %v470
        %476 = vrot.lane.b32.xlu0 %v333, 31
        %v477 = vpop.permute.xlu0 %476
        %478 = vrot.lane.b32.xlu0 %v334, 31
        %v479 = vpop.permute.xlu0 %478
        %vm480 = vcmp.lt.s32.totalorder %v336, 31
        %v481 = vsel %vm480, %v477, %v479
        %v482 = vsel %vm480, %v479, %v477
        %v483 = vsel %vm362, %v482, %v475
        %v484 = vsel %vm363, %v481, %v474
        %s485 = sld [smem:[#allocation6 + $0x100]]
        %v486 = vstv %s485
        %v487 = vmul.f32 %v486, %v483
        %v488 = vmul.f32 %v486, %v484
        %v489 = vadd.f32 %v425, %v487
        %v490 = vadd.f32 %v426, %v488
        %s491 = sld [smem:[#allocation6 + $0x101]]
        %v492 = vstv %s491
        %v493 = vmul.f32 %v492, %v483
        %v494 = vmul.f32 %v492, %v484
        %v495 = vadd.f32 %v431, %v493
        %v496 = vadd.f32 %v432, %v494
        %s497 = sld [smem:[#allocation6 + $0x102]]
        %v498 = vstv %s497
        %v499 = vmul.f32 %v498, %v483
        %v500 = vmul.f32 %v498, %v484
        %v501 = vadd.f32 %v437, %v499
        %v502 = vadd.f32 %v438, %v500
        %s503 = sld [smem:[#allocation6 + $0x103]]
        %v504 = vstv %s503
        %v505 = vmul.f32 %v504, %v483
        %v506 = vmul.f32 %v504, %v484
        %v507 = vadd.f32 %v443, %v505
        %v508 = vadd.f32 %v444, %v506
        %s509 = sld [smem:[#allocation6 + $0x104]]
        %v510 = vstv %s509
        %v511 = vmul.f32 %v510, %v483
        %v512 = vmul.f32 %v510, %v484
        %v513 = vadd.f32 %v449, %v511
        %v514 = vadd.f32 %v450, %v512
        %s515 = sld [smem:[#allocation6 + $0x105]]
        %v516 = vstv %s515
        %v517 = vmul.f32 %v516, %v483
        %v518 = vmul.f32 %v516, %v484
        %v519 = vadd.f32 %v455, %v517
        %v520 = vadd.f32 %v456, %v518
        %s521 = sld [smem:[#allocation6 + $0x106]]
        %v522 = vstv %s521
        %v523 = vmul.f32 %v522, %v483
        %v524 = vmul.f32 %v522, %v484
        %v525 = vadd.f32 %v461, %v523
        %v526 = vadd.f32 %v462, %v524
        %s527 = sld [smem:[#allocation6 + $0x107]]
        %v528 = vstv %s527
        %v529 = vmul.f32 %v528, %v483
        %v530 = vmul.f32 %v528, %v484
        %v531 = vadd.f32 %v467, %v529
        %v532 = vadd.f32 %v468, %v530
        %533 = vrot.lane.b32.xlu0 %v333, 113
        %v534 = vpop.permute.xlu0 %533
        %535 = vrot.lane.b32.xlu0 %v334, 113
        %v536 = vpop.permute.xlu0 %535
        %vm537 = vcmp.lt.s32.totalorder %v336, 113
        %v538 = vsel %vm537, %v534, %v536
        %v539 = vsel %vm537, %v536, %v534
        %v540 = vsel %vm364, %v538, %v379
        %v541 = vsel %vm365, %v539, %v378
        %s542 = sld [smem:[#allocation6 + $0x180]]
        %v543 = vstv %s542
        %v544 = vmul.f32 %v543, %v540
        %v545 = vmul.f32 %v543, %v541
        %v546 = vadd.f32 %v489, %v544
        %v547 = vadd.f32 %v490, %v545
        %s548 = sld [smem:[#allocation6 + $0x181]]
        %v549 = vstv %s548
        %v550 = vmul.f32 %v549, %v540
        %v551 = vmul.f32 %v549, %v541
        %v552 = vadd.f32 %v495, %v550
        %v553 = vadd.f32 %v496, %v551
        %s554 = sld [smem:[#allocation6 + $0x182]]
        %v555 = vstv %s554
        %v556 = vmul.f32 %v555, %v540
        %v557 = vmul.f32 %v555, %v541
        %v558 = vadd.f32 %v501, %v556
        %v559 = vadd.f32 %v502, %v557
        %s560 = sld [smem:[#allocation6 + $0x183]]
        %v561 = vstv %s560
        %v562 = vmul.f32 %v561, %v540
        %v563 = vmul.f32 %v561, %v541
        %v564 = vadd.f32 %v507, %v562
        %v565 = vadd.f32 %v508, %v563
        %s566 = sld [smem:[#allocation6 + $0x184]]
        %v567 = vstv %s566
        %v568 = vmul.f32 %v567, %v540
        %v569 = vmul.f32 %v567, %v541
        %v570 = vadd.f32 %v513, %v568
        %v571 = vadd.f32 %v514, %v569
        %s572 = sld [smem:[#allocation6 + $0x185]]
        %v573 = vstv %s572
        %v574 = vmul.f32 %v573, %v540
        %v575 = vmul.f32 %v573, %v541
        %v576 = vadd.f32 %v519, %v574
        %v577 = vadd.f32 %v520, %v575
        %s578 = sld [smem:[#allocation6 + $0x186]]
        %v579 = vstv %s578
        %v580 = vmul.f32 %v579, %v540
        %v581 = vmul.f32 %v579, %v541
        %v582 = vadd.f32 %v525, %v580
        %v583 = vadd.f32 %v526, %v581
        %s584 = sld [smem:[#allocation6 + $0x187]]
        %v585 = vstv %s584
        %v586 = vmul.f32 %v585, %v540
        %v587 = vmul.f32 %v585, %v541
        %v588 = vadd.f32 %v531, %v586
        %v589 = vadd.f32 %v532, %v587
        %s590 = sld [smem:[#allocation6 + $0x200]]
        %v591 = vstv %s590
        %v592 = vmul.f32 %v591, %v333
        %v593 = vmul.f32 %v591, %v334
        %v594 = vadd.f32 %v546, %v592
        %v595 = vadd.f32 %v547, %v593
        %s596 = sld [smem:[#allocation6 + $0x201]]
        %v597 = vstv %s596
        %v598 = vmul.f32 %v597, %v333
        %v599 = vmul.f32 %v597, %v334
        %v600 = vadd.f32 %v552, %v598
        %v601 = vadd.f32 %v553, %v599
        %s602 = sld [smem:[#allocation6 + $0x202]]
        %v603 = vstv %s602
        %v604 = vmul.f32 %v603, %v333
        %v605 = vmul.f32 %v603, %v334
        %v606 = vadd.f32 %v558, %v604
        %v607 = vadd.f32 %v559, %v605
        %s608 = sld [smem:[#allocation6 + $0x203]]
        %v609 = vstv %s608
        %v610 = vmul.f32 %v609, %v333
        %v611 = vmul.f32 %v609, %v334
        %v612 = vadd.f32 %v564, %v610
        %v613 = vadd.f32 %v565, %v611
        %s614 = sld [smem:[#allocation6 + $0x204]]
        %v615 = vstv %s614
        %v616 = vmul.f32 %v615, %v333
        %v617 = vmul.f32 %v615, %v334
        %v618 = vadd.f32 %v570, %v616
        %v619 = vadd.f32 %v571, %v617
        %s620 = sld [smem:[#allocation6 + $0x205]]
        %v621 = vstv %s620
        %v622 = vmul.f32 %v621, %v333
        %v623 = vmul.f32 %v621, %v334
        %v624 = vadd.f32 %v576, %v622
        %v625 = vadd.f32 %v577, %v623
        %s626 = sld [smem:[#allocation6 + $0x206]]
        %v627 = vstv %s626
        %v628 = vmul.f32 %v627, %v333
        %v629 = vmul.f32 %v627, %v334
        %v630 = vadd.f32 %v582, %v628
        %v631 = vadd.f32 %v583, %v629
        %s632 = sld [smem:[#allocation6 + $0x207]]
        %v633 = vstv %s632
        %v634 = vmul.f32 %v633, %v333
        %v635 = vmul.f32 %v633, %v334
        %v636 = vadd.f32 %v588, %v634
        %v637 = vadd.f32 %v589, %v635
        %638 = vrot.lane.b32.xlu0 %v333, 127
        %v639 = vpop.permute.xlu0 %638
        %640 = vrot.lane.b32.xlu0 %v334, 127
        %v641 = vpop.permute.xlu0 %640
        %vm642 = vcmp.lt.s32.totalorder %v336, 127
        %v643 = vsel %vm642, %v639, %v641
        %v644 = vsel %vm642, %v641, %v639
        %v645 = vsel %vm362, %v475, %v643
        %v646 = vsel %vm363, %v474, %v644
        %s647 = sld [smem:[#allocation6 + $0x280]]
        %v648 = vstv %s647
        %v649 = vmul.f32 %v648, %v645
        %v650 = vmul.f32 %v648, %v646
        %v651 = vadd.f32 %v594, %v649
        %v652 = vadd.f32 %v595, %v650
        %s653 = sld [smem:[#allocation6 + $0x281]]
        %v654 = vstv %s653
        %v655 = vmul.f32 %v654, %v645
        %v656 = vmul.f32 %v654, %v646
        %v657 = vadd.f32 %v600, %v655
        %v658 = vadd.f32 %v601, %v656
        %s659 = sld [smem:[#allocation6 + $0x282]]
        %v660 = vstv %s659
        %v661 = vmul.f32 %v660, %v645
        %v662 = vmul.f32 %v660, %v646
        %v663 = vadd.f32 %v606, %v661
        %v664 = vadd.f32 %v607, %v662
        %s665 = sld [smem:[#allocation6 + $0x283]]
        %v666 = vstv %s665
        %v667 = vmul.f32 %v666, %v645
        %v668 = vmul.f32 %v666, %v646
        %v669 = vadd.f32 %v612, %v667
        %v670 = vadd.f32 %v613, %v668
        %s671 = sld [smem:[#allocation6 + $0x284]]
        %v672 = vstv %s671
        %v673 = vmul.f32 %v672, %v645
        %v674 = vmul.f32 %v672, %v646
        %v675 = vadd.f32 %v618, %v673
        %v676 = vadd.f32 %v619, %v674
        %s677 = sld [smem:[#allocation6 + $0x285]]
        %v678 = vstv %s677
        %v679 = vmul.f32 %v678, %v645
        %v680 = vmul.f32 %v678, %v646
        %v681 = vadd.f32 %v624, %v679
        %v682 = vadd.f32 %v625, %v680
        %s683 = sld [smem:[#allocation6 + $0x286]]
        %v684 = vstv %s683
        %v685 = vmul.f32 %v684, %v645
        %v686 = vmul.f32 %v684, %v646
        %v687 = vadd.f32 %v630, %v685
        %v688 = vadd.f32 %v631, %v686
        %s689 = sld [smem:[#allocation6 + $0x287]]
        %v690 = vstv %s689
        %v691 = vmul.f32 %v690, %v645
        %v692 = vmul.f32 %v690, %v646
        %v693 = vadd.f32 %v636, %v691
        %v694 = vadd.f32 %v637, %v692
        %695 = vrot.lane.b32.xlu0 %v333, 97
        %v696 = vpop.permute.xlu0 %695
        %697 = vrot.lane.b32.xlu0 %v334, 97
        %v698 = vpop.permute.xlu0 %697
        %vm699 = vcmp.lt.s32.totalorder %v336, 97
        %v700 = vsel %vm699, %v696, %v698
        %v701 = vsel %vm699, %v698, %v696
        %v702 = vsel %vm364, %v700, %v538
        %v703 = vsel %vm365, %v701, %v539
        %s704 = sld [smem:[#allocation6 + $0x300]]
        %v705 = vstv %s704
        %v706 = vmul.f32 %v705, %v702
        %v707 = vmul.f32 %v705, %v703
        %v708 = vadd.f32 %v651, %v706
        %v709 = vadd.f32 %v652, %v707
        %s710 = sld [smem:[#allocation6 + $0x301]]
        %v711 = vstv %s710
        %v712 = vmul.f32 %v711, %v702
        %v713 = vmul.f32 %v711, %v703
        %v714 = vadd.f32 %v657, %v712
        %v715 = vadd.f32 %v658, %v713
        %s716 = sld [smem:[#allocation6 + $0x302]]
        %v717 = vstv %s716
        %v718 = vmul.f32 %v717, %v702
        %v719 = vmul.f32 %v717, %v703
        %v720 = vadd.f32 %v663, %v718
        %v721 = vadd.f32 %v664, %v719
        %s722 = sld [smem:[#allocation6 + $0x303]]
        %v723 = vstv %s722
        %v724 = vmul.f32 %v723, %v702
        %v725 = vmul.f32 %v723, %v703
        %v726 = vadd.f32 %v669, %v724
        %v727 = vadd.f32 %v670, %v725
        %s728 = sld [smem:[#allocation6 + $0x304]]
        %v729 = vstv %s728
        %v730 = vmul.f32 %v729, %v702
        %v731 = vmul.f32 %v729, %v703
        %v732 = vadd.f32 %v675, %v730
        %v733 = vadd.f32 %v676, %v731
        %s734 = sld [smem:[#allocation6 + $0x305]]
        %v735 = vstv %s734
        %v736 = vmul.f32 %v735, %v702
        %v737 = vmul.f32 %v735, %v703
        %v738 = vadd.f32 %v681, %v736
        %v739 = vadd.f32 %v682, %v737
        %s740 = sld [smem:[#allocation6 + $0x306]]
        %v741 = vstv %s740
        %v742 = vmul.f32 %v741, %v702
        %v743 = vmul.f32 %v741, %v703
        %v744 = vadd.f32 %v687, %v742
        %v745 = vadd.f32 %v688, %v743
        %s746 = sld [smem:[#allocation6 + $0x307]]
        %v747 = vstv %s746
        %v748 = vmul.f32 %v747, %v702
        %v749 = vmul.f32 %v747, %v703
        %v750 = vadd.f32 %v693, %v748
        %v751 = vadd.f32 %v694, %v749
        %752 = vrot.lane.b32.xlu0 %v333, 112
        %v753 = vpop.permute.xlu0 %752
        %754 = vrot.lane.b32.xlu0 %v334, 112
        %v755 = vpop.permute.xlu0 %754
        %vm756 = vcmp.lt.s32.totalorder %v336, 112
        %v757 = vsel %vm756, %v753, %v755
        %v758 = vsel %vm756, %v755, %v753
        %s759 = sld [smem:[#allocation6 + $0x380]]
        %v760 = vstv %s759
        %v761 = vmul.f32 %v760, %v757
        %v762 = vmul.f32 %v760, %v758
        %v763 = vadd.f32 %v708, %v761
        %v764 = vadd.f32 %v709, %v762
        %s765 = sld [smem:[#allocation6 + $0x381]]
        %v766 = vstv %s765
        %v767 = vmul.f32 %v766, %v757
        %v768 = vmul.f32 %v766, %v758
        %v769 = vadd.f32 %v714, %v767
        %v770 = vadd.f32 %v715, %v768
        %s771 = sld [smem:[#allocation6 + $0x382]]
        %v772 = vstv %s771
        %v773 = vmul.f32 %v772, %v757
        %v774 = vmul.f32 %v772, %v758
        %v775 = vadd.f32 %v720, %v773
        %v776 = vadd.f32 %v721, %v774
        %s777 = sld [smem:[#allocation6 + $0x383]]
        %v778 = vstv %s777
        %v779 = vmul.f32 %v778, %v757
        %v780 = vmul.f32 %v778, %v758
        %v781 = vadd.f32 %v726, %v779
        %v782 = vadd.f32 %v727, %v780
        %s783 = sld [smem:[#allocation6 + $0x384]]
        %v784 = vstv %s783
        %v785 = vmul.f32 %v784, %v757
        %v786 = vmul.f32 %v784, %v758
        %v787 = vadd.f32 %v732, %v785
        %v788 = vadd.f32 %v733, %v786
        %s789 = sld [smem:[#allocation6 + $0x385]]
        %v790 = vstv %s789
        %v791 = vmul.f32 %v790, %v757
        %v792 = vmul.f32 %v790, %v758
        %v793 = vadd.f32 %v738, %v791
        %v794 = vadd.f32 %v739, %v792
        %s795 = sld [smem:[#allocation6 + $0x386]]
        %v796 = vstv %s795
        %v797 = vmul.f32 %v796, %v757
        %v798 = vmul.f32 %v796, %v758
        %v799 = vadd.f32 %v744, %v797
        %v800 = vadd.f32 %v745, %v798
        %s801 = sld [smem:[#allocation6 + $0x387]]
        %v802 = vstv %s801
        %v803 = vmul.f32 %v802, %v757
        %v804 = vmul.f32 %v802, %v758
        %v805 = vadd.f32 %v750, %v803
        %v806 = vadd.f32 %v751, %v804
        %807 = vrot.lane.b32.xlu0 %v333, 111
        %v808 = vpop.permute.xlu0 %807
        %809 = vrot.lane.b32.xlu0 %v334, 111
        %v810 = vpop.permute.xlu0 %809
        %vm811 = vcmp.lt.s32.totalorder %v336, 111
        %v812 = vsel %vm811, %v808, %v810
        %v813 = vsel %vm811, %v810, %v808
        %v814 = vsel %vm362, %v643, %v812
        %v815 = vsel %vm363, %v644, %v813
        %s816 = sld [smem:[#allocation6 + $0x400]]
        %v817 = vstv %s816
        %v818 = vmul.f32 %v817, %v814
        %v819 = vmul.f32 %v817, %v815
        %v820 = vadd.f32 %v763, %v818
        %v821 = vadd.f32 %v764, %v819
        %s822 = sld [smem:[#allocation6 + $0x401]]
        %v823 = vstv %s822
        %v824 = vmul.f32 %v823, %v814
        %v825 = vmul.f32 %v823, %v815
        %v826 = vadd.f32 %v769, %v824
        %v827 = vadd.f32 %v770, %v825
        %s828 = sld [smem:[#allocation6 + $0x402]]
        %v829 = vstv %s828
        %v830 = vmul.f32 %v829, %v814
        %v831 = vmul.f32 %v829, %v815
        %v832 = vadd.f32 %v775, %v830
        %v833 = vadd.f32 %v776, %v831
        %s834 = sld [smem:[#allocation6 + $0x403]]
        %v835 = vstv %s834
        %v836 = vmul.f32 %v835, %v814
        %v837 = vmul.f32 %v835, %v815
        %v838 = vadd.f32 %v781, %v836
        %v839 = vadd.f32 %v782, %v837
        %s840 = sld [smem:[#allocation6 + $0x404]]
        %v841 = vstv %s840
        %v842 = vmul.f32 %v841, %v814
        %v843 = vmul.f32 %v841, %v815
        %v844 = vadd.f32 %v787, %v842
        %v845 = vadd.f32 %v788, %v843
        %s846 = sld [smem:[#allocation6 + $0x405]]
        %v847 = vstv %s846
        %v848 = vmul.f32 %v847, %v814
        %v849 = vmul.f32 %v847, %v815
        %v850 = vadd.f32 %v793, %v848
        %v851 = vadd.f32 %v794, %v849
        %s852 = sld [smem:[#allocation6 + $0x406]]
        %v853 = vstv %s852
        %v854 = vmul.f32 %v853, %v814
        %v855 = vmul.f32 %v853, %v815
        %v856 = vadd.f32 %v799, %v854
        %v857 = vadd.f32 %v800, %v855
        %s858 = sld [smem:[#allocation6 + $0x407]]
        %v859 = vstv %s858
        %v860 = vmul.f32 %v859, %v814
        %v861 = vmul.f32 %v859, %v815
        %v862 = vadd.f32 %v805, %v860
        %v863 = vadd.f32 %v806, %v861
        %s864 = sld [smem:[#allocation7]]
        %v865 = vstv %s864
        %v866 = vadd.f32 %v820, %v865
        %v867 = vadd.f32 %v821, %v865
        %v868 = vmul.f32 %v866, 0.01
        %v869 = vmul.f32 %v867, 0.01
        %v870 = vmax.f32 %v866, %v868
        %v871 = vmax.f32 %v867, %v869
        %s872 = sld [smem:[#allocation7 + $0x1]]
        %v873 = vstv %s872
        %v874 = vadd.f32 %v826, %v873
        %v875 = vadd.f32 %v827, %v873
        %v876 = vmul.f32 %v874, 0.01
        %v877 = vmul.f32 %v875, 0.01
        %v878 = vmax.f32 %v874, %v876
        %v879 = vmax.f32 %v875, %v877
        %s880 = sld [smem:[#allocation7 + $0x2]]
        %v881 = vstv %s880
        %v882 = vadd.f32 %v832, %v881
        %v883 = vadd.f32 %v833, %v881
        %v884 = vmul.f32 %v882, 0.01
        %v885 = vmul.f32 %v883, 0.01
        %v886 = vmax.f32 %v882, %v884
        %v887 = vmax.f32 %v883, %v885
        %s888 = sld [smem:[#allocation7 + $0x3]]
        %v889 = vstv %s888
        %v890 = vadd.f32 %v838, %v889
        %v891 = vadd.f32 %v839, %v889
        %v892 = vmul.f32 %v890, 0.01
        %v893 = vmul.f32 %v891, 0.01
        %v894 = vmax.f32 %v890, %v892
        %v895 = vmax.f32 %v891, %v893
        %s896 = sld [smem:[#allocation7 + $0x4]]
        %v897 = vstv %s896
        %v898 = vadd.f32 %v844, %v897
        %v899 = vadd.f32 %v845, %v897
        %v900 = vmul.f32 %v898, 0.01
        %v901 = vmul.f32 %v899, 0.01
        %v902 = vmax.f32 %v898, %v900
        %v903 = vmax.f32 %v899, %v901
        %s904 = sld [smem:[#allocation7 + $0x5]]
        %v905 = vstv %s904
        %v906 = vadd.f32 %v850, %v905
        %v907 = vadd.f32 %v851, %v905
        %v908 = vmul.f32 %v906, 0.01
        %v909 = vmul.f32 %v907, 0.01
        %v910 = vmax.f32 %v906, %v908
        %v911 = vmax.f32 %v907, %v909
        %s912 = sld [smem:[#allocation7 + $0x6]]
        %v913 = vstv %s912
        %v914 = vadd.f32 %v856, %v913
        %v915 = vadd.f32 %v857, %v913
        %v916 = vmul.f32 %v914, 0.01
        %v917 = vmul.f32 %v915, 0.01
        %v918 = vmax.f32 %v914, %v916
        %v919 = vmax.f32 %v915, %v917
        %s920 = sld [smem:[#allocation7 + $0x7]]
        %v921 = vstv %s920
        %v922 = vadd.f32 %v862, %v921
        %v923 = vadd.f32 %v863, %v921
        %v924 = vmul.f32 %v922, 0.01
        %v925 = vmul.f32 %v923, 0.01
        %v926 = vmax.f32 %v922, %v924
        %v927 = vmax.f32 %v923, %v925
        %928 = vrot.lane.b32.xlu0 %v870, 17
        %v929 = vpop.permute.xlu0 %928
        %930 = vrot.lane.b32.xlu0 %v871, 17
        %v931 = vpop.permute.xlu0 %930
        %v932 = vsel %vm370, %v929, %v931
        %v933 = vsel %vm370, %v931, %v929
        %934 = vrot.lane.b32.xlu0 %v870, 1
        %v935 = vpop.permute.xlu0 %934
        %936 = vrot.lane.b32.xlu0 %v871, 1
        %v937 = vpop.permute.xlu0 %936
        %v938 = vsel %vm377, %v935, %v937
        %v939 = vsel %vm377, %v937, %v935
        %v940 = vsel %vm364, %v939, %v933
        %v941 = vsel %vm365, %v938, %v932
        %s942 = sld [smem:[#allocation9]]
        %v943 = vstv %s942
        %v944 = vmul.f32 %v943, %v940
        %v945 = vmul.f32 %v943, %v941
        %s946 = sld [smem:[#allocation9 + $0x80]]
        %v947 = vstv %s946
        %v948 = vmul.f32 %v947, %v940
        %v949 = vmul.f32 %v947, %v941
        %950 = vrot.lane.b32.xlu0 %v878, 17
        %v951 = vpop.permute.xlu0 %950
        %952 = vrot.lane.b32.xlu0 %v879, 17
        %v953 = vpop.permute.xlu0 %952
        %v954 = vsel %vm370, %v951, %v953
        %v955 = vsel %vm370, %v953, %v951
        %956 = vrot.lane.b32.xlu0 %v878, 1
        %v957 = vpop.permute.xlu0 %956
        %958 = vrot.lane.b32.xlu0 %v879, 1
        %v959 = vpop.permute.xlu0 %958
        %v960 = vsel %vm377, %v957, %v959
        %v961 = vsel %vm377, %v959, %v957
        %v962 = vsel %vm364, %v961, %v955
        %v963 = vsel %vm365, %v960, %v954
        %s964 = sld [smem:[#allocation9 + $0x1]]
        %v965 = vstv %s964
        %v966 = vmul.f32 %v965, %v962
        %v967 = vmul.f32 %v965, %v963
        %s968 = sld [smem:[#allocation9 + $0x81]]
        %v969 = vstv %s968
        %v970 = vmul.f32 %v969, %v962
        %v971 = vmul.f32 %v969, %v963
        %v972 = vadd.f32 %v944, %v966
        %v973 = vadd.f32 %v945, %v967
        %v974 = vadd.f32 %v948, %v970
        %v975 = vadd.f32 %v949, %v971
        %976 = vrot.lane.b32.xlu0 %v886, 17
        %v977 = vpop.permute.xlu0 %976
        %978 = vrot.lane.b32.xlu0 %v887, 17
        %v979 = vpop.permute.xlu0 %978
        %v980 = vsel %vm370, %v977, %v979
        %v981 = vsel %vm370, %v979, %v977
        %982 = vrot.lane.b32.xlu0 %v886, 1
        %v983 = vpop.permute.xlu0 %982
        %984 = vrot.lane.b32.xlu0 %v887, 1
        %v985 = vpop.permute.xlu0 %984
        %v986 = vsel %vm377, %v983, %v985
        %v987 = vsel %vm377, %v985, %v983
        %v988 = vsel %vm364, %v987, %v981
        %v989 = vsel %vm365, %v986, %v980
        %s990 = sld [smem:[#allocation9 + $0x2]]
        %v991 = vstv %s990
        %v992 = vmul.f32 %v991, %v988
        %v993 = vmul.f32 %v991, %v989
        %s994 = sld [smem:[#allocation9 + $0x82]]
        %v995 = vstv %s994
        %v996 = vmul.f32 %v995, %v988
        %v997 = vmul.f32 %v995, %v989
        %v998 = vadd.f32 %v972, %v992
        %v999 = vadd.f32 %v973, %v993
        %v1000 = vadd.f32 %v974, %v996
        %v1001 = vadd.f32 %v975, %v997
        %1002 = vrot.lane.b32.xlu0 %v894, 17
        %v1003 = vpop.permute.xlu0 %1002
        %1004 = vrot.lane.b32.xlu0 %v895, 17
        %v1005 = vpop.permute.xlu0 %1004
        %v1006 = vsel %vm370, %v1003, %v1005
        %v1007 = vsel %vm370, %v1005, %v1003
        %1008 = vrot.lane.b32.xlu0 %v894, 1
        %v1009 = vpop.permute.xlu0 %1008
        %1010 = vrot.lane.b32.xlu0 %v895, 1
        %v1011 = vpop.permute.xlu0 %1010
        %v1012 = vsel %vm377, %v1009, %v1011
        %v1013 = vsel %vm377, %v1011, %v1009
        %v1014 = vsel %vm364, %v1013, %v1007
        %v1015 = vsel %vm365, %v1012, %v1006
        %s1016 = sld [smem:[#allocation9 + $0x3]]
        %v1017 = vstv %s1016
        %v1018 = vmul.f32 %v1017, %v1014
        %v1019 = vmul.f32 %v1017, %v1015
        %s1020 = sld [smem:[#allocation9 + $0x83]]
        %v1021 = vstv %s1020
        %v1022 = vmul.f32 %v1021, %v1014
        %v1023 = vmul.f32 %v1021, %v1015
        %v1024 = vadd.f32 %v998, %v1018
        %v1025 = vadd.f32 %v999, %v1019
        %v1026 = vadd.f32 %v1000, %v1022
        %v1027 = vadd.f32 %v1001, %v1023
        %1028 = vrot.lane.b32.xlu0 %v902, 17
        %v1029 = vpop.permute.xlu0 %1028
        %1030 = vrot.lane.b32.xlu0 %v903, 17
        %v1031 = vpop.permute.xlu0 %1030
        %v1032 = vsel %vm370, %v1029, %v1031
        %v1033 = vsel %vm370, %v1031, %v1029
        %1034 = vrot.lane.b32.xlu0 %v902, 1
        %v1035 = vpop.permute.xlu0 %1034
        %1036 = vrot.lane.b32.xlu0 %v903, 1
        %v1037 = vpop.permute.xlu0 %1036
        %v1038 = vsel %vm377, %v1035, %v1037
        %v1039 = vsel %vm377, %v1037, %v1035
        %v1040 = vsel %vm364, %v1039, %v1033
        %v1041 = vsel %vm365, %v1038, %v1032
        %s1042 = sld [smem:[#allocation9 + $0x4]]
        %v1043 = vstv %s1042
        %v1044 = vmul.f32 %v1043, %v1040
        %v1045 = vmul.f32 %v1043, %v1041
        %s1046 = sld [smem:[#allocation9 + $0x84]]
        %v1047 = vstv %s1046
        %v1048 = vmul.f32 %v1047, %v1040
        %v1049 = vmul.f32 %v1047, %v1041
        %v1050 = vadd.f32 %v1024, %v1044
        %v1051 = vadd.f32 %v1025, %v1045
        %v1052 = vadd.f32 %v1026, %v1048
        %v1053 = vadd.f32 %v1027, %v1049
        %1054 = vrot.lane.b32.xlu0 %v910, 17
        %v1055 = vpop.permute.xlu0 %1054
        %1056 = vrot.lane.b32.xlu0 %v911, 17
        %v1057 = vpop.permute.xlu0 %1056
        %v1058 = vsel %vm370, %v1055, %v1057
        %v1059 = vsel %vm370, %v1057, %v1055
        %1060 = vrot.lane.b32.xlu0 %v910, 1
        %v1061 = vpop.permute.xlu0 %1060
        %1062 = vrot.lane.b32.xlu0 %v911, 1
        %v1063 = vpop.permute.xlu0 %1062
        %v1064 = vsel %vm377, %v1061, %v1063
        %v1065 = vsel %vm377, %v1063, %v1061
        %v1066 = vsel %vm364, %v1065, %v1059
        %v1067 = vsel %vm365, %v1064, %v1058
        %s1068 = sld [smem:[#allocation9 + $0x5]]
        %v1069 = vstv %s1068
        %v1070 = vmul.f32 %v1069, %v1066
        %v1071 = vmul.f32 %v1069, %v1067
        %s1072 = sld [smem:[#allocation9 + $0x85]]
        %v1073 = vstv %s1072
        %v1074 = vmul.f32 %v1073, %v1066
        %v1075 = vmul.f32 %v1073, %v1067
        %v1076 = vadd.f32 %v1050, %v1070
        %v1077 = vadd.f32 %v1051, %v1071
        %v1078 = vadd.f32 %v1052, %v1074
        %v1079 = vadd.f32 %v1053, %v1075
        %1080 = vrot.lane.b32.xlu0 %v918, 17
        %v1081 = vpop.permute.xlu0 %1080
        %1082 = vrot.lane.b32.xlu0 %v919, 17
        %v1083 = vpop.permute.xlu0 %1082
        %v1084 = vsel %vm370, %v1081, %v1083
        %v1085 = vsel %vm370, %v1083, %v1081
        %1086 = vrot.lane.b32.xlu0 %v918, 1
        %v1087 = vpop.permute.xlu0 %1086
        %1088 = vrot.lane.b32.xlu0 %v919, 1
        %v1089 = vpop.permute.xlu0 %1088
        %v1090 = vsel %vm377, %v1087, %v1089
        %v1091 = vsel %vm377, %v1089, %v1087
        %v1092 = vsel %vm364, %v1091, %v1085
        %v1093 = vsel %vm365, %v1090, %v1084
        %s1094 = sld [smem:[#allocation9 + $0x6]]
        %v1095 = vstv %s1094
        %v1096 = vmul.f32 %v1095, %v1092
        %v1097 = vmul.f32 %v1095, %v1093
        %s1098 = sld [smem:[#allocation9 + $0x86]]
        %v1099 = vstv %s1098
        %v1100 = vmul.f32 %v1099, %v1092
        %v1101 = vmul.f32 %v1099, %v1093
        %v1102 = vadd.f32 %v1076, %v1096
        %v1103 = vadd.f32 %v1077, %v1097
        %v1104 = vadd.f32 %v1078, %v1100
        %v1105 = vadd.f32 %v1079, %v1101
        %1106 = vrot.lane.b32.xlu0 %v926, 17
        %v1107 = vpop.permute.xlu0 %1106
        %1108 = vrot.lane.b32.xlu0 %v927, 17
        %v1109 = vpop.permute.xlu0 %1108
        %v1110 = vsel %vm370, %v1107, %v1109
        %v1111 = vsel %vm370, %v1109, %v1107
        %1112 = vrot.lane.b32.xlu0 %v926, 1
        %v1113 = vpop.permute.xlu0 %1112
        %1114 = vrot.lane.b32.xlu0 %v927, 1
        %v1115 = vpop.permute.xlu0 %1114
        %v1116 = vsel %vm377, %v1113, %v1115
        %v1117 = vsel %vm377, %v1115, %v1113
        %v1118 = vsel %vm364, %v1117, %v1111
        %v1119 = vsel %vm365, %v1116, %v1110
        %s1120 = sld [smem:[#allocation9 + $0x7]]
        %v1121 = vstv %s1120
        %v1122 = vmul.f32 %v1121, %v1118
        %v1123 = vmul.f32 %v1121, %v1119
        %s1124 = sld [smem:[#allocation9 + $0x87]]
        %v1125 = vstv %s1124
        %v1126 = vmul.f32 %v1125, %v1118
        %v1127 = vmul.f32 %v1125, %v1119
        %v1128 = vadd.f32 %v1102, %v1122
        %v1129 = vadd.f32 %v1103, %v1123
        %v1130 = vadd.f32 %v1104, %v1126
        %v1131 = vadd.f32 %v1105, %v1127
        %1132 = vrot.lane.b32.xlu0 %v870, 16
        %v1133 = vpop.permute.xlu0 %1132
        %1134 = vrot.lane.b32.xlu0 %v871, 16
        %v1135 = vpop.permute.xlu0 %1134
        %v1136 = vsel %vm418, %v1133, %v1135
        %v1137 = vsel %vm418, %v1135, %v1133
        %s1138 = sld [smem:[#allocation9 + $0x8]]
        %v1139 = vstv %s1138
        %v1140 = vmul.f32 %v1139, %v1137
        %v1141 = vmul.f32 %v1139, %v1136
        %s1142 = sld [smem:[#allocation9 + $0x88]]
        %v1143 = vstv %s1142
        %v1144 = vmul.f32 %v1143, %v1137
        %v1145 = vmul.f32 %v1143, %v1136
        %v1146 = vadd.f32 %v1128, %v1140
        %v1147 = vadd.f32 %v1129, %v1141
        %v1148 = vadd.f32 %v1130, %v1144
        %v1149 = vadd.f32 %v1131, %v1145
        %1150 = vrot.lane.b32.xlu0 %v878, 16
        %v1151 = vpop.permute.xlu0 %1150
        %1152 = vrot.lane.b32.xlu0 %v879, 16
        %v1153 = vpop.permute.xlu0 %1152
        %v1154 = vsel %vm418, %v1151, %v1153
        %v1155 = vsel %vm418, %v1153, %v1151
        %s1156 = sld [smem:[#allocation9 + $0x9]]
        %v1157 = vstv %s1156
        %v1158 = vmul.f32 %v1157, %v1155
        %v1159 = vmul.f32 %v1157, %v1154
        %s1160 = sld [smem:[#allocation9 + $0x89]]
        %v1161 = vstv %s1160
        %v1162 = vmul.f32 %v1161, %v1155
        %v1163 = vmul.f32 %v1161, %v1154
        %v1164 = vadd.f32 %v1146, %v1158
        %v1165 = vadd.f32 %v1147, %v1159
        %v1166 = vadd.f32 %v1148, %v1162
        %v1167 = vadd.f32 %v1149, %v1163
        %1168 = vrot.lane.b32.xlu0 %v886, 16
        %v1169 = vpop.permute.xlu0 %1168
        %1170 = vrot.lane.b32.xlu0 %v887, 16
        %v1171 = vpop.permute.xlu0 %1170
        %v1172 = vsel %vm418, %v1169, %v1171
        %v1173 = vsel %vm418, %v1171, %v1169
        %s1174 = sld [smem:[#allocation9 + $0xa]]
        %v1175 = vstv %s1174
        %v1176 = vmul.f32 %v1175, %v1173
        %v1177 = vmul.f32 %v1175, %v1172
        %s1178 = sld [smem:[#allocation9 + $0x8a]]
        %v1179 = vstv %s1178
        %v1180 = vmul.f32 %v1179, %v1173
        %v1181 = vmul.f32 %v1179, %v1172
        %v1182 = vadd.f32 %v1164, %v1176
        %v1183 = vadd.f32 %v1165, %v1177
        %v1184 = vadd.f32 %v1166, %v1180
        %v1185 = vadd.f32 %v1167, %v1181
        %1186 = vrot.lane.b32.xlu0 %v894, 16
        %v1187 = vpop.permute.xlu0 %1186
        %1188 = vrot.lane.b32.xlu0 %v895, 16
        %v1189 = vpop.permute.xlu0 %1188
        %v1190 = vsel %vm418, %v1187, %v1189
        %v1191 = vsel %vm418, %v1189, %v1187
        %s1192 = sld [smem:[#allocation9 + $0xb]]
        %v1193 = vstv %s1192
        %v1194 = vmul.f32 %v1193, %v1191
        %v1195 = vmul.f32 %v1193, %v1190
        %s1196 = sld [smem:[#allocation9 + $0x8b]]
        %v1197 = vstv %s1196
        %v1198 = vmul.f32 %v1197, %v1191
        %v1199 = vmul.f32 %v1197, %v1190
        %v1200 = vadd.f32 %v1182, %v1194
        %v1201 = vadd.f32 %v1183, %v1195
        %v1202 = vadd.f32 %v1184, %v1198
        %v1203 = vadd.f32 %v1185, %v1199
        %1204 = vrot.lane.b32.xlu0 %v902, 16
        %v1205 = vpop.permute.xlu0 %1204
        %1206 = vrot.lane.b32.xlu0 %v903, 16
        %v1207 = vpop.permute.xlu0 %1206
        %v1208 = vsel %vm418, %v1205, %v1207
        %v1209 = vsel %vm418, %v1207, %v1205
        %s1210 = sld [smem:[#allocation9 + $0xc]]
        %v1211 = vstv %s1210
        %v1212 = vmul.f32 %v1211, %v1209
        %v1213 = vmul.f32 %v1211, %v1208
        %s1214 = sld [smem:[#allocation9 + $0x8c]]
        %v1215 = vstv %s1214
        %v1216 = vmul.f32 %v1215, %v1209
        %v1217 = vmul.f32 %v1215, %v1208
        %v1218 = vadd.f32 %v1200, %v1212
        %v1219 = vadd.f32 %v1201, %v1213
        %v1220 = vadd.f32 %v1202, %v1216
        %v1221 = vadd.f32 %v1203, %v1217
        %1222 = vrot.lane.b32.xlu0 %v910, 16
        %v1223 = vpop.permute.xlu0 %1222
        %1224 = vrot.lane.b32.xlu0 %v911, 16
        %v1225 = vpop.permute.xlu0 %1224
        %v1226 = vsel %vm418, %v1223, %v1225
        %v1227 = vsel %vm418, %v1225, %v1223
        %s1228 = sld [smem:[#allocation9 + $0xd]]
        %v1229 = vstv %s1228
        %v1230 = vmul.f32 %v1229, %v1227
        %v1231 = vmul.f32 %v1229, %v1226
        %s1232 = sld [smem:[#allocation9 + $0x8d]]
        %v1233 = vstv %s1232
        %v1234 = vmul.f32 %v1233, %v1227
        %v1235 = vmul.f32 %v1233, %v1226
        %v1236 = vadd.f32 %v1218, %v1230
        %v1237 = vadd.f32 %v1219, %v1231
        %v1238 = vadd.f32 %v1220, %v1234
        %v1239 = vadd.f32 %v1221, %v1235
        %1240 = vrot.lane.b32.xlu0 %v918, 16
        %v1241 = vpop.permute.xlu0 %1240
        %1242 = vrot.lane.b32.xlu0 %v919, 16
        %v1243 = vpop.permute.xlu0 %1242
        %v1244 = vsel %vm418, %v1241, %v1243
        %v1245 = vsel %vm418, %v1243, %v1241
        %s1246 = sld [smem:[#allocation9 + $0xe]]
        %v1247 = vstv %s1246
        %v1248 = vmul.f32 %v1247, %v1245
        %v1249 = vmul.f32 %v1247, %v1244
        %s1250 = sld [smem:[#allocation9 + $0x8e]]
        %v1251 = vstv %s1250
        %v1252 = vmul.f32 %v1251, %v1245
        %v1253 = vmul.f32 %v1251, %v1244
        %v1254 = vadd.f32 %v1236, %v1248
        %v1255 = vadd.f32 %v1237, %v1249
        %v1256 = vadd.f32 %v1238, %v1252
        %v1257 = vadd.f32 %v1239, %v1253
        %1258 = vrot.lane.b32.xlu0 %v926, 16
        %v1259 = vpop.permute.xlu0 %1258
        %1260 = vrot.lane.b32.xlu0 %v927, 16
        %v1261 = vpop.permute.xlu0 %1260
        %v1262 = vsel %vm418, %v1259, %v1261
        %v1263 = vsel %vm418, %v1261, %v1259
        %s1264 = sld [smem:[#allocation9 + $0xf]]
        %v1265 = vstv %s1264
        %v1266 = vmul.f32 %v1265, %v1263
        %v1267 = vmul.f32 %v1265, %v1262
        %s1268 = sld [smem:[#allocation9 + $0x8f]]
        %v1269 = vstv %s1268
        %v1270 = vmul.f32 %v1269, %v1263
        %v1271 = vmul.f32 %v1269, %v1262
        %v1272 = vadd.f32 %v1254, %v1266
        %v1273 = vadd.f32 %v1255, %v1267
        %v1274 = vadd.f32 %v1256, %v1270
        %v1275 = vadd.f32 %v1257, %v1271
        %1276 = vrot.lane.b32.xlu0 %v870, 15
        %v1277 = vpop.permute.xlu0 %1276
        %1278 = vrot.lane.b32.xlu0 %v871, 15
        %v1279 = vpop.permute.xlu0 %1278
        %v1280 = vsel %vm473, %v1277, %v1279
        %v1281 = vsel %vm473, %v1279, %v1277
        %1282 = vrot.lane.b32.xlu0 %v870, 31
        %v1283 = vpop.permute.xlu0 %1282
        %1284 = vrot.lane.b32.xlu0 %v871, 31
        %v1285 = vpop.permute.xlu0 %1284
        %v1286 = vsel %vm480, %v1283, %v1285
        %v1287 = vsel %vm480, %v1285, %v1283
        %v1288 = vsel %vm362, %v1287, %v1281
        %v1289 = vsel %vm363, %v1286, %v1280
        %s1290 = sld [smem:[#allocation9 + $0x10]]
        %v1291 = vstv %s1290
        %v1292 = vmul.f32 %v1291, %v1288
        %v1293 = vmul.f32 %v1291, %v1289
        %s1294 = sld [smem:[#allocation9 + $0x90]]
        %v1295 = vstv %s1294
        %v1296 = vmul.f32 %v1295, %v1288
        %v1297 = vmul.f32 %v1295, %v1289
        %v1298 = vadd.f32 %v1272, %v1292
        %v1299 = vadd.f32 %v1273, %v1293
        %v1300 = vadd.f32 %v1274, %v1296
        %v1301 = vadd.f32 %v1275, %v1297
        %1302 = vrot.lane.b32.xlu0 %v878, 15
        %v1303 = vpop.permute.xlu0 %1302
        %1304 = vrot.lane.b32.xlu0 %v879, 15
        %v1305 = vpop.permute.xlu0 %1304
        %v1306 = vsel %vm473, %v1303, %v1305
        %v1307 = vsel %vm473, %v1305, %v1303
        %1308 = vrot.lane.b32.xlu0 %v878, 31
        %v1309 = vpop.permute.xlu0 %1308
        %1310 = vrot.lane.b32.xlu0 %v879, 31
        %v1311 = vpop.permute.xlu0 %1310
        %v1312 = vsel %vm480, %v1309, %v1311
        %v1313 = vsel %vm480, %v1311, %v1309
        %v1314 = vsel %vm362, %v1313, %v1307
        %v1315 = vsel %vm363, %v1312, %v1306
        %s1316 = sld [smem:[#allocation9 + $0x11]]
        %v1317 = vstv %s1316
        %v1318 = vmul.f32 %v1317, %v1314
        %v1319 = vmul.f32 %v1317, %v1315
        %s1320 = sld [smem:[#allocation9 + $0x91]]
        %v1321 = vstv %s1320
        %v1322 = vmul.f32 %v1321, %v1314
        %v1323 = vmul.f32 %v1321, %v1315
        %v1324 = vadd.f32 %v1298, %v1318
        %v1325 = vadd.f32 %v1299, %v1319
        %v1326 = vadd.f32 %v1300, %v1322
        %v1327 = vadd.f32 %v1301, %v1323
        %1328 = vrot.lane.b32.xlu0 %v886, 15
        %v1329 = vpop.permute.xlu0 %1328
        %1330 = vrot.lane.b32.xlu0 %v887, 15
        %v1331 = vpop.permute.xlu0 %1330
        %v1332 = vsel %vm473, %v1329, %v1331
        %v1333 = vsel %vm473, %v1331, %v1329
        %1334 = vrot.lane.b32.xlu0 %v886, 31
        %v1335 = vpop.permute.xlu0 %1334
        %1336 = vrot.lane.b32.xlu0 %v887, 31
        %v1337 = vpop.permute.xlu0 %1336
        %v1338 = vsel %vm480, %v1335, %v1337
        %v1339 = vsel %vm480, %v1337, %v1335
        %v1340 = vsel %vm362, %v1339, %v1333
        %v1341 = vsel %vm363, %v1338, %v1332
        %s1342 = sld [smem:[#allocation9 + $0x12]]
        %v1343 = vstv %s1342
        %v1344 = vmul.f32 %v1343, %v1340
        %v1345 = vmul.f32 %v1343, %v1341
        %s1346 = sld [smem:[#allocation9 + $0x92]]
        %v1347 = vstv %s1346
        %v1348 = vmul.f32 %v1347, %v1340
        %v1349 = vmul.f32 %v1347, %v1341
        %v1350 = vadd.f32 %v1324, %v1344
        %v1351 = vadd.f32 %v1325, %v1345
        %v1352 = vadd.f32 %v1326, %v1348
        %v1353 = vadd.f32 %v1327, %v1349
        %1354 = vrot.lane.b32.xlu0 %v894, 15
        %v1355 = vpop.permute.xlu0 %1354
        %1356 = vrot.lane.b32.xlu0 %v895, 15
        %v1357 = vpop.permute.xlu0 %1356
        %v1358 = vsel %vm473, %v1355, %v1357
        %v1359 = vsel %vm473, %v1357, %v1355
        %1360 = vrot.lane.b32.xlu0 %v894, 31
        %v1361 = vpop.permute.xlu0 %1360
        %1362 = vrot.lane.b32.xlu0 %v895, 31
        %v1363 = vpop.permute.xlu0 %1362
        %v1364 = vsel %vm480, %v1361, %v1363
        %v1365 = vsel %vm480, %v1363, %v1361
        %v1366 = vsel %vm362, %v1365, %v1359
        %v1367 = vsel %vm363, %v1364, %v1358
        %s1368 = sld [smem:[#allocation9 + $0x13]]
        %v1369 = vstv %s1368
        %v1370 = vmul.f32 %v1369, %v1366
        %v1371 = vmul.f32 %v1369, %v1367
        %s1372 = sld [smem:[#allocation9 + $0x93]]
        %v1373 = vstv %s1372
        %v1374 = vmul.f32 %v1373, %v1366
        %v1375 = vmul.f32 %v1373, %v1367
        %v1376 = vadd.f32 %v1350, %v1370
        %v1377 = vadd.f32 %v1351, %v1371
        %v1378 = vadd.f32 %v1352, %v1374
        %v1379 = vadd.f32 %v1353, %v1375
        %1380 = vrot.lane.b32.xlu0 %v902, 15
        %v1381 = vpop.permute.xlu0 %1380
        %1382 = vrot.lane.b32.xlu0 %v903, 15
        %v1383 = vpop.permute.xlu0 %1382
        %v1384 = vsel %vm473, %v1381, %v1383
        %v1385 = vsel %vm473, %v1383, %v1381
        %1386 = vrot.lane.b32.xlu0 %v902, 31
        %v1387 = vpop.permute.xlu0 %1386
        %1388 = vrot.lane.b32.xlu0 %v903, 31
        %v1389 = vpop.permute.xlu0 %1388
        %v1390 = vsel %vm480, %v1387, %v1389
        %v1391 = vsel %vm480, %v1389, %v1387
        %v1392 = vsel %vm362, %v1391, %v1385
        %v1393 = vsel %vm363, %v1390, %v1384
        %s1394 = sld [smem:[#allocation9 + $0x14]]
        %v1395 = vstv %s1394
        %v1396 = vmul.f32 %v1395, %v1392
        %v1397 = vmul.f32 %v1395, %v1393
        %s1398 = sld [smem:[#allocation9 + $0x94]]
        %v1399 = vstv %s1398
        %v1400 = vmul.f32 %v1399, %v1392
        %v1401 = vmul.f32 %v1399, %v1393
        %v1402 = vadd.f32 %v1376, %v1396
        %v1403 = vadd.f32 %v1377, %v1397
        %v1404 = vadd.f32 %v1378, %v1400
        %v1405 = vadd.f32 %v1379, %v1401
        %1406 = vrot.lane.b32.xlu0 %v910, 15
        %v1407 = vpop.permute.xlu0 %1406
        %1408 = vrot.lane.b32.xlu0 %v911, 15
        %v1409 = vpop.permute.xlu0 %1408
        %v1410 = vsel %vm473, %v1407, %v1409
        %v1411 = vsel %vm473, %v1409, %v1407
        %1412 = vrot.lane.b32.xlu0 %v910, 31
        %v1413 = vpop.permute.xlu0 %1412
        %1414 = vrot.lane.b32.xlu0 %v911, 31
        %v1415 = vpop.permute.xlu0 %1414
        %v1416 = vsel %vm480, %v1413, %v1415
        %v1417 = vsel %vm480, %v1415, %v1413
        %v1418 = vsel %vm362, %v1417, %v1411
        %v1419 = vsel %vm363, %v1416, %v1410
        %s1420 = sld [smem:[#allocation9 + $0x15]]
        %v1421 = vstv %s1420
        %v1422 = vmul.f32 %v1421, %v1418
        %v1423 = vmul.f32 %v1421, %v1419
        %s1424 = sld [smem:[#allocation9 + $0x95]]
        %v1425 = vstv %s1424
        %v1426 = vmul.f32 %v1425, %v1418
        %v1427 = vmul.f32 %v1425, %v1419
        %v1428 = vadd.f32 %v1402, %v1422
        %v1429 = vadd.f32 %v1403, %v1423
        %v1430 = vadd.f32 %v1404, %v1426
        %v1431 = vadd.f32 %v1405, %v1427
        %1432 = vrot.lane.b32.xlu0 %v918, 15
        %v1433 = vpop.permute.xlu0 %1432
        %1434 = vrot.lane.b32.xlu0 %v919, 15
        %v1435 = vpop.permute.xlu0 %1434
        %v1436 = vsel %vm473, %v1433, %v1435
        %v1437 = vsel %vm473, %v1435, %v1433
        %1438 = vrot.lane.b32.xlu0 %v918, 31
        %v1439 = vpop.permute.xlu0 %1438
        %1440 = vrot.lane.b32.xlu0 %v919, 31
        %v1441 = vpop.permute.xlu0 %1440
        %v1442 = vsel %vm480, %v1439, %v1441
        %v1443 = vsel %vm480, %v1441, %v1439
        %v1444 = vsel %vm362, %v1443, %v1437
        %v1445 = vsel %vm363, %v1442, %v1436
        %s1446 = sld [smem:[#allocation9 + $0x16]]
        %v1447 = vstv %s1446
        %v1448 = vmul.f32 %v1447, %v1444
        %v1449 = vmul.f32 %v1447, %v1445
        %s1450 = sld [smem:[#allocation9 + $0x96]]
        %v1451 = vstv %s1450
        %v1452 = vmul.f32 %v1451, %v1444
        %v1453 = vmul.f32 %v1451, %v1445
        %v1454 = vadd.f32 %v1428, %v1448
        %v1455 = vadd.f32 %v1429, %v1449
        %v1456 = vadd.f32 %v1430, %v1452
        %v1457 = vadd.f32 %v1431, %v1453
        %1458 = vrot.lane.b32.xlu0 %v926, 15
        %v1459 = vpop.permute.xlu0 %1458
        %1460 = vrot.lane.b32.xlu0 %v927, 15
        %v1461 = vpop.permute.xlu0 %1460
        %v1462 = vsel %vm473, %v1459, %v1461
        %v1463 = vsel %vm473, %v1461, %v1459
        %1464 = vrot.lane.b32.xlu0 %v926, 31
        %v1465 = vpop.permute.xlu0 %1464
        %1466 = vrot.lane.b32.xlu0 %v927, 31
        %v1467 = vpop.permute.xlu0 %1466
        %v1468 = vsel %vm480, %v1465, %v1467
        %v1469 = vsel %vm480, %v1467, %v1465
        %v1470 = vsel %vm362, %v1469, %v1463
        %v1471 = vsel %vm363, %v1468, %v1462
        %s1472 = sld [smem:[#allocation9 + $0x17]]
        %v1473 = vstv %s1472
        %v1474 = vmul.f32 %v1473, %v1470
        %v1475 = vmul.f32 %v1473, %v1471
        %s1476 = sld [smem:[#allocation9 + $0x97]]
        %v1477 = vstv %s1476
        %v1478 = vmul.f32 %v1477, %v1470
        %v1479 = vmul.f32 %v1477, %v1471
        %v1480 = vadd.f32 %v1454, %v1474
        %v1481 = vadd.f32 %v1455, %v1475
        %v1482 = vadd.f32 %v1456, %v1478
        %v1483 = vadd.f32 %v1457, %v1479
        %1484 = vrot.lane.b32.xlu0 %v870, 113
        %v1485 = vpop.permute.xlu0 %1484
        %1486 = vrot.lane.b32.xlu0 %v871, 113
        %v1487 = vpop.permute.xlu0 %1486
        %v1488 = vsel %vm537, %v1485, %v1487
        %v1489 = vsel %vm537, %v1487, %v1485
        %v1490 = vsel %vm364, %v1488, %v939
        %v1491 = vsel %vm365, %v1489, %v938
        %s1492 = sld [smem:[#allocation9 + $0x18]]
        %v1493 = vstv %s1492
        %v1494 = vmul.f32 %v1493, %v1490
        %v1495 = vmul.f32 %v1493, %v1491
        %s1496 = sld [smem:[#allocation9 + $0x98]]
        %v1497 = vstv %s1496
        %v1498 = vmul.f32 %v1497, %v1490
        %v1499 = vmul.f32 %v1497, %v1491
        %v1500 = vadd.f32 %v1480, %v1494
        %v1501 = vadd.f32 %v1481, %v1495
        %v1502 = vadd.f32 %v1482, %v1498
        %v1503 = vadd.f32 %v1483, %v1499
        %1504 = vrot.lane.b32.xlu0 %v878, 113
        %v1505 = vpop.permute.xlu0 %1504
        %1506 = vrot.lane.b32.xlu0 %v879, 113
        %v1507 = vpop.permute.xlu0 %1506
        %v1508 = vsel %vm537, %v1505, %v1507
        %v1509 = vsel %vm537, %v1507, %v1505
        %v1510 = vsel %vm364, %v1508, %v961
        %v1511 = vsel %vm365, %v1509, %v960
        %s1512 = sld [smem:[#allocation9 + $0x19]]
        %v1513 = vstv %s1512
        %v1514 = vmul.f32 %v1513, %v1510
        %v1515 = vmul.f32 %v1513, %v1511
        %s1516 = sld [smem:[#allocation9 + $0x99]]
        %v1517 = vstv %s1516
        %v1518 = vmul.f32 %v1517, %v1510
        %v1519 = vmul.f32 %v1517, %v1511
        %v1520 = vadd.f32 %v1500, %v1514
        %v1521 = vadd.f32 %v1501, %v1515
        %v1522 = vadd.f32 %v1502, %v1518
        %v1523 = vadd.f32 %v1503, %v1519
        %1524 = vrot.lane.b32.xlu0 %v886, 113
        %v1525 = vpop.permute.xlu0 %1524
        %1526 = vrot.lane.b32.xlu0 %v887, 113
        %v1527 = vpop.permute.xlu0 %1526
        %v1528 = vsel %vm537, %v1525, %v1527
        %v1529 = vsel %vm537, %v1527, %v1525
        %v1530 = vsel %vm364, %v1528, %v987
        %v1531 = vsel %vm365, %v1529, %v986
        %s1532 = sld [smem:[#allocation9 + $0x1a]]
        %v1533 = vstv %s1532
        %v1534 = vmul.f32 %v1533, %v1530
        %v1535 = vmul.f32 %v1533, %v1531
        %s1536 = sld [smem:[#allocation9 + $0x9a]]
        %v1537 = vstv %s1536
        %v1538 = vmul.f32 %v1537, %v1530
        %v1539 = vmul.f32 %v1537, %v1531
        %v1540 = vadd.f32 %v1520, %v1534
        %v1541 = vadd.f32 %v1521, %v1535
        %v1542 = vadd.f32 %v1522, %v1538
        %v1543 = vadd.f32 %v1523, %v1539
        %1544 = vrot.lane.b32.xlu0 %v894, 113
        %v1545 = vpop.permute.xlu0 %1544
        %1546 = vrot.lane.b32.xlu0 %v895, 113
        %v1547 = vpop.permute.xlu0 %1546
        %v1548 = vsel %vm537, %v1545, %v1547
        %v1549 = vsel %vm537, %v1547, %v1545
        %v1550 = vsel %vm364, %v1548, %v1013
        %v1551 = vsel %vm365, %v1549, %v1012
        %s1552 = sld [smem:[#allocation9 + $0x1b]]
        %v1553 = vstv %s1552
        %v1554 = vmul.f32 %v1553, %v1550
        %v1555 = vmul.f32 %v1553, %v1551
        %s1556 = sld [smem:[#allocation9 + $0x9b]]
        %v1557 = vstv %s1556
        %v1558 = vmul.f32 %v1557, %v1550
        %v1559 = vmul.f32 %v1557, %v1551
        %v1560 = vadd.f32 %v1540, %v1554
        %v1561 = vadd.f32 %v1541, %v1555
        %v1562 = vadd.f32 %v1542, %v1558
        %v1563 = vadd.f32 %v1543, %v1559
        %1564 = vrot.lane.b32.xlu0 %v902, 113
        %v1565 = vpop.permute.xlu0 %1564
        %1566 = vrot.lane.b32.xlu0 %v903, 113
        %v1567 = vpop.permute.xlu0 %1566
        %v1568 = vsel %vm537, %v1565, %v1567
        %v1569 = vsel %vm537, %v1567, %v1565
        %v1570 = vsel %vm364, %v1568, %v1039
        %v1571 = vsel %vm365, %v1569, %v1038
        %s1572 = sld [smem:[#allocation9 + $0x1c]]
        %v1573 = vstv %s1572
        %v1574 = vmul.f32 %v1573, %v1570
        %v1575 = vmul.f32 %v1573, %v1571
        %s1576 = sld [smem:[#allocation9 + $0x9c]]
        %v1577 = vstv %s1576
        %v1578 = vmul.f32 %v1577, %v1570
        %v1579 = vmul.f32 %v1577, %v1571
        %v1580 = vadd.f32 %v1560, %v1574
        %v1581 = vadd.f32 %v1561, %v1575
        %v1582 = vadd.f32 %v1562, %v1578
        %v1583 = vadd.f32 %v1563, %v1579
        %1584 = vrot.lane.b32.xlu0 %v910, 113
        %v1585 = vpop.permute.xlu0 %1584
        %1586 = vrot.lane.b32.xlu0 %v911, 113
        %v1587 = vpop.permute.xlu0 %1586
        %v1588 = vsel %vm537, %v1585, %v1587
        %v1589 = vsel %vm537, %v1587, %v1585
        %v1590 = vsel %vm364, %v1588, %v1065
        %v1591 = vsel %vm365, %v1589, %v1064
        %s1592 = sld [smem:[#allocation9 + $0x1d]]
        %v1593 = vstv %s1592
        %v1594 = vmul.f32 %v1593, %v1590
        %v1595 = vmul.f32 %v1593, %v1591
        %s1596 = sld [smem:[#allocation9 + $0x9d]]
        %v1597 = vstv %s1596
        %v1598 = vmul.f32 %v1597, %v1590
        %v1599 = vmul.f32 %v1597, %v1591
        %v1600 = vadd.f32 %v1580, %v1594
        %v1601 = vadd.f32 %v1581, %v1595
        %v1602 = vadd.f32 %v1582, %v1598
        %v1603 = vadd.f32 %v1583, %v1599
        %1604 = vrot.lane.b32.xlu0 %v918, 113
        %v1605 = vpop.permute.xlu0 %1604
        %1606 = vrot.lane.b32.xlu0 %v919, 113
        %v1607 = vpop.permute.xlu0 %1606
        %v1608 = vsel %vm537, %v1605, %v1607
        %v1609 = vsel %vm537, %v1607, %v1605
        %v1610 = vsel %vm364, %v1608, %v1091
        %v1611 = vsel %vm365, %v1609, %v1090
        %s1612 = sld [smem:[#allocation9 + $0x1e]]
        %v1613 = vstv %s1612
        %v1614 = vmul.f32 %v1613, %v1610
        %v1615 = vmul.f32 %v1613, %v1611
        %s1616 = sld [smem:[#allocation9 + $0x9e]]
        %v1617 = vstv %s1616
        %v1618 = vmul.f32 %v1617, %v1610
        %v1619 = vmul.f32 %v1617, %v1611
        %v1620 = vadd.f32 %v1600, %v1614
        %v1621 = vadd.f32 %v1601, %v1615
        %v1622 = vadd.f32 %v1602, %v1618
        %v1623 = vadd.f32 %v1603, %v1619
        %1624 = vrot.lane.b32.xlu0 %v926, 113
        %v1625 = vpop.permute.xlu0 %1624
        %1626 = vrot.lane.b32.xlu0 %v927, 113
        %v1627 = vpop.permute.xlu0 %1626
        %v1628 = vsel %vm537, %v1625, %v1627
        %v1629 = vsel %vm537, %v1627, %v1625
        %v1630 = vsel %vm364, %v1628, %v1117
        %v1631 = vsel %vm365, %v1629, %v1116
        %s1632 = sld [smem:[#allocation9 + $0x1f]]
        %v1633 = vstv %s1632
        %v1634 = vmul.f32 %v1633, %v1630
        %v1635 = vmul.f32 %v1633, %v1631
        %s1636 = sld [smem:[#allocation9 + $0x9f]]
        %v1637 = vstv %s1636
        %v1638 = vmul.f32 %v1637, %v1630
        %v1639 = vmul.f32 %v1637, %v1631
        %v1640 = vadd.f32 %v1620, %v1634
        %v1641 = vadd.f32 %v1621, %v1635
        %v1642 = vadd.f32 %v1622, %v1638
        %v1643 = vadd.f32 %v1623, %v1639
        %s1644 = sld [smem:[#allocation9 + $0x20]]
        %v1645 = vstv %s1644
        %v1646 = vmul.f32 %v1645, %v870
        %v1647 = vmul.f32 %v1645, %v871
        %s1648 = sld [smem:[#allocation9 + $0xa0]]
        %v1649 = vstv %s1648
        %v1650 = vmul.f32 %v1649, %v870
        %v1651 = vmul.f32 %v1649, %v871
        %v1652 = vadd.f32 %v1640, %v1646
        %v1653 = vadd.f32 %v1641, %v1647
        %v1654 = vadd.f32 %v1642, %v1650
        %v1655 = vadd.f32 %v1643, %v1651
        %s1656 = sld [smem:[#allocation9 + $0x21]]
        %v1657 = vstv %s1656
        %v1658 = vmul.f32 %v1657, %v878
        %v1659 = vmul.f32 %v1657, %v879
        %s1660 = sld [smem:[#allocation9 + $0xa1]]
        %v1661 = vstv %s1660
        %v1662 = vmul.f32 %v1661, %v878
        %v1663 = vmul.f32 %v1661, %v879
        %v1664 = vadd.f32 %v1652, %v1658
        %v1665 = vadd.f32 %v1653, %v1659
        %v1666 = vadd.f32 %v1654, %v1662
        %v1667 = vadd.f32 %v1655, %v1663
        %s1668 = sld [smem:[#allocation9 + $0x22]]
        %v1669 = vstv %s1668
        %v1670 = vmul.f32 %v1669, %v886
        %v1671 = vmul.f32 %v1669, %v887
        %s1672 = sld [smem:[#allocation9 + $0xa2]]
        %v1673 = vstv %s1672
        %v1674 = vmul.f32 %v1673, %v886
        %v1675 = vmul.f32 %v1673, %v887
        %v1676 = vadd.f32 %v1664, %v1670
        %v1677 = vadd.f32 %v1665, %v1671
        %v1678 = vadd.f32 %v1666, %v1674
        %v1679 = vadd.f32 %v1667, %v1675
        %s1680 = sld [smem:[#allocation9 + $0x23]]
        %v1681 = vstv %s1680
        %v1682 = vmul.f32 %v1681, %v894
        %v1683 = vmul.f32 %v1681, %v895
        %s1684 = sld [smem:[#allocation9 + $0xa3]]
        %v1685 = vstv %s1684
        %v1686 = vmul.f32 %v1685, %v894
        %v1687 = vmul.f32 %v1685, %v895
        %v1688 = vadd.f32 %v1676, %v1682
        %v1689 = vadd.f32 %v1677, %v1683
        %v1690 = vadd.f32 %v1678, %v1686
        %v1691 = vadd.f32 %v1679, %v1687
        %s1692 = sld [smem:[#allocation9 + $0x24]]
        %v1693 = vstv %s1692
        %v1694 = vmul.f32 %v1693, %v902
        %v1695 = vmul.f32 %v1693, %v903
        %s1696 = sld [smem:[#allocation9 + $0xa4]]
        %v1697 = vstv %s1696
        %v1698 = vmul.f32 %v1697, %v902
        %v1699 = vmul.f32 %v1697, %v903
        %v1700 = vadd.f32 %v1688, %v1694
        %v1701 = vadd.f32 %v1689, %v1695
        %v1702 = vadd.f32 %v1690, %v1698
        %v1703 = vadd.f32 %v1691, %v1699
        %s1704 = sld [smem:[#allocation9 + $0x25]]
        %v1705 = vstv %s1704
        %v1706 = vmul.f32 %v1705, %v910
        %v1707 = vmul.f32 %v1705, %v911
        %s1708 = sld [smem:[#allocation9 + $0xa5]]
        %v1709 = vstv %s1708
        %v1710 = vmul.f32 %v1709, %v910
        %v1711 = vmul.f32 %v1709, %v911
        %v1712 = vadd.f32 %v1700, %v1706
        %v1713 = vadd.f32 %v1701, %v1707
        %v1714 = vadd.f32 %v1702, %v1710
        %v1715 = vadd.f32 %v1703, %v1711
        %s1716 = sld [smem:[#allocation9 + $0x26]]
        %v1717 = vstv %s1716
        %v1718 = vmul.f32 %v1717, %v918
        %v1719 = vmul.f32 %v1717, %v919
        %s1720 = sld [smem:[#allocation9 + $0xa6]]
        %v1721 = vstv %s1720
        %v1722 = vmul.f32 %v1721, %v918
        %v1723 = vmul.f32 %v1721, %v919
        %v1724 = vadd.f32 %v1712, %v1718
        %v1725 = vadd.f32 %v1713, %v1719
        %v1726 = vadd.f32 %v1714, %v1722
        %v1727 = vadd.f32 %v1715, %v1723
        %s1728 = sld [smem:[#allocation9 + $0x27]]
        %v1729 = vstv %s1728
        %v1730 = vmul.f32 %v1729, %v926
        %v1731 = vmul.f32 %v1729, %v927
        %s1732 = sld [smem:[#allocation9 + $0xa7]]
        %v1733 = vstv %s1732
        %v1734 = vmul.f32 %v1733, %v926
        %v1735 = vmul.f32 %v1733, %v927
        %v1736 = vadd.f32 %v1724, %v1730
        %v1737 = vadd.f32 %v1725, %v1731
        %v1738 = vadd.f32 %v1726, %v1734
        %v1739 = vadd.f32 %v1727, %v1735
        %1740 = vrot.lane.b32.xlu0 %v870, 127
        %v1741 = vpop.permute.xlu0 %1740
        %1742 = vrot.lane.b32.xlu0 %v871, 127
        %v1743 = vpop.permute.xlu0 %1742
        %v1744 = vsel %vm642, %v1741, %v1743
        %v1745 = vsel %vm642, %v1743, %v1741
        %v1746 = vsel %vm362, %v1281, %v1744
        %v1747 = vsel %vm363, %v1280, %v1745
        %s1748 = sld [smem:[#allocation9 + $0x28]]
        %v1749 = vstv %s1748
        %v1750 = vmul.f32 %v1749, %v1746
        %v1751 = vmul.f32 %v1749, %v1747
        %s1752 = sld [smem:[#allocation9 + $0xa8]]
        %v1753 = vstv %s1752
        %v1754 = vmul.f32 %v1753, %v1746
        %v1755 = vmul.f32 %v1753, %v1747
        %v1756 = vadd.f32 %v1736, %v1750
        %v1757 = vadd.f32 %v1737, %v1751
        %v1758 = vadd.f32 %v1738, %v1754
        %v1759 = vadd.f32 %v1739, %v1755
        %1760 = vrot.lane.b32.xlu0 %v878, 127
        %v1761 = vpop.permute.xlu0 %1760
        %1762 = vrot.lane.b32.xlu0 %v879, 127
        %v1763 = vpop.permute.xlu0 %1762
        %v1764 = vsel %vm642, %v1761, %v1763
        %v1765 = vsel %vm642, %v1763, %v1761
        %v1766 = vsel %vm362, %v1307, %v1764
        %v1767 = vsel %vm363, %v1306, %v1765
        %s1768 = sld [smem:[#allocation9 + $0x29]]
        %v1769 = vstv %s1768
        %v1770 = vmul.f32 %v1769, %v1766
        %v1771 = vmul.f32 %v1769, %v1767
        %s1772 = sld [smem:[#allocation9 + $0xa9]]
        %v1773 = vstv %s1772
        %v1774 = vmul.f32 %v1773, %v1766
        %v1775 = vmul.f32 %v1773, %v1767
        %v1776 = vadd.f32 %v1756, %v1770
        %v1777 = vadd.f32 %v1757, %v1771
        %v1778 = vadd.f32 %v1758, %v1774
        %v1779 = vadd.f32 %v1759, %v1775
        %1780 = vrot.lane.b32.xlu0 %v886, 127
        %v1781 = vpop.permute.xlu0 %1780
        %1782 = vrot.lane.b32.xlu0 %v887, 127
        %v1783 = vpop.permute.xlu0 %1782
        %v1784 = vsel %vm642, %v1781, %v1783
        %v1785 = vsel %vm642, %v1783, %v1781
        %v1786 = vsel %vm362, %v1333, %v1784
        %v1787 = vsel %vm363, %v1332, %v1785
        %s1788 = sld [smem:[#allocation9 + $0x2a]]
        %v1789 = vstv %s1788
        %v1790 = vmul.f32 %v1789, %v1786
        %v1791 = vmul.f32 %v1789, %v1787
        %s1792 = sld [smem:[#allocation9 + $0xaa]]
        %v1793 = vstv %s1792
        %v1794 = vmul.f32 %v1793, %v1786
        %v1795 = vmul.f32 %v1793, %v1787
        %v1796 = vadd.f32 %v1776, %v1790
        %v1797 = vadd.f32 %v1777, %v1791
        %v1798 = vadd.f32 %v1778, %v1794
        %v1799 = vadd.f32 %v1779, %v1795
        %1800 = vrot.lane.b32.xlu0 %v894, 127
        %v1801 = vpop.permute.xlu0 %1800
        %1802 = vrot.lane.b32.xlu0 %v895, 127
        %v1803 = vpop.permute.xlu0 %1802
        %v1804 = vsel %vm642, %v1801, %v1803
        %v1805 = vsel %vm642, %v1803, %v1801
        %v1806 = vsel %vm362, %v1359, %v1804
        %v1807 = vsel %vm363, %v1358, %v1805
        %s1808 = sld [smem:[#allocation9 + $0x2b]]
        %v1809 = vstv %s1808
        %v1810 = vmul.f32 %v1809, %v1806
        %v1811 = vmul.f32 %v1809, %v1807
        %s1812 = sld [smem:[#allocation9 + $0xab]]
        %v1813 = vstv %s1812
        %v1814 = vmul.f32 %v1813, %v1806
        %v1815 = vmul.f32 %v1813, %v1807
        %v1816 = vadd.f32 %v1796, %v1810
        %v1817 = vadd.f32 %v1797, %v1811
        %v1818 = vadd.f32 %v1798, %v1814
        %v1819 = vadd.f32 %v1799, %v1815
        %1820 = vrot.lane.b32.xlu0 %v902, 127
        %v1821 = vpop.permute.xlu0 %1820
        %1822 = vrot.lane.b32.xlu0 %v903, 127
        %v1823 = vpop.permute.xlu0 %1822
        %v1824 = vsel %vm642, %v1821, %v1823
        %v1825 = vsel %vm642, %v1823, %v1821
        %v1826 = vsel %vm362, %v1385, %v1824
        %v1827 = vsel %vm363, %v1384, %v1825
        %s1828 = sld [smem:[#allocation9 + $0x2c]]
        %v1829 = vstv %s1828
        %v1830 = vmul.f32 %v1829, %v1826
        %v1831 = vmul.f32 %v1829, %v1827
        %s1832 = sld [smem:[#allocation9 + $0xac]]
        %v1833 = vstv %s1832
        %v1834 = vmul.f32 %v1833, %v1826
        %v1835 = vmul.f32 %v1833, %v1827
        %v1836 = vadd.f32 %v1816, %v1830
        %v1837 = vadd.f32 %v1817, %v1831
        %v1838 = vadd.f32 %v1818, %v1834
        %v1839 = vadd.f32 %v1819, %v1835
        %1840 = vrot.lane.b32.xlu0 %v910, 127
        %v1841 = vpop.permute.xlu0 %1840
        %1842 = vrot.lane.b32.xlu0 %v911, 127
        %v1843 = vpop.permute.xlu0 %1842
        %v1844 = vsel %vm642, %v1841, %v1843
        %v1845 = vsel %vm642, %v1843, %v1841
        %v1846 = vsel %vm362, %v1411, %v1844
        %v1847 = vsel %vm363, %v1410, %v1845
        %s1848 = sld [smem:[#allocation9 + $0x2d]]
        %v1849 = vstv %s1848
        %v1850 = vmul.f32 %v1849, %v1846
        %v1851 = vmul.f32 %v1849, %v1847
        %s1852 = sld [smem:[#allocation9 + $0xad]]
        %v1853 = vstv %s1852
        %v1854 = vmul.f32 %v1853, %v1846
        %v1855 = vmul.f32 %v1853, %v1847
        %v1856 = vadd.f32 %v1836, %v1850
        %v1857 = vadd.f32 %v1837, %v1851
        %v1858 = vadd.f32 %v1838, %v1854
        %v1859 = vadd.f32 %v1839, %v1855
        %1860 = vrot.lane.b32.xlu0 %v918, 127
        %v1861 = vpop.permute.xlu0 %1860
        %1862 = vrot.lane.b32.xlu0 %v919, 127
        %v1863 = vpop.permute.xlu0 %1862
        %v1864 = vsel %vm642, %v1861, %v1863
        %v1865 = vsel %vm642, %v1863, %v1861
        %v1866 = vsel %vm362, %v1437, %v1864
        %v1867 = vsel %vm363, %v1436, %v1865
        %s1868 = sld [smem:[#allocation9 + $0x2e]]
        %v1869 = vstv %s1868
        %v1870 = vmul.f32 %v1869, %v1866
        %v1871 = vmul.f32 %v1869, %v1867
        %s1872 = sld [smem:[#allocation9 + $0xae]]
        %v1873 = vstv %s1872
        %v1874 = vmul.f32 %v1873, %v1866
        %v1875 = vmul.f32 %v1873, %v1867
        %v1876 = vadd.f32 %v1856, %v1870
        %v1877 = vadd.f32 %v1857, %v1871
        %v1878 = vadd.f32 %v1858, %v1874
        %v1879 = vadd.f32 %v1859, %v1875
        %1880 = vrot.lane.b32.xlu0 %v926, 127
        %v1881 = vpop.permute.xlu0 %1880
        %1882 = vrot.lane.b32.xlu0 %v927, 127
        %v1883 = vpop.permute.xlu0 %1882
        %v1884 = vsel %vm642, %v1881, %v1883
        %v1885 = vsel %vm642, %v1883, %v1881
        %v1886 = vsel %vm362, %v1463, %v1884
        %v1887 = vsel %vm363, %v1462, %v1885
        %s1888 = sld [smem:[#allocation9 + $0x2f]]
        %v1889 = vstv %s1888
        %v1890 = vmul.f32 %v1889, %v1886
        %v1891 = vmul.f32 %v1889, %v1887
        %s1892 = sld [smem:[#allocation9 + $0xaf]]
        %v1893 = vstv %s1892
        %v1894 = vmul.f32 %v1893, %v1886
        %v1895 = vmul.f32 %v1893, %v1887
        %v1896 = vadd.f32 %v1876, %v1890
        %v1897 = vadd.f32 %v1877, %v1891
        %v1898 = vadd.f32 %v1878, %v1894
        %v1899 = vadd.f32 %v1879, %v1895
        %1900 = vrot.lane.b32.xlu0 %v870, 97
        %v1901 = vpop.permute.xlu0 %1900
        %1902 = vrot.lane.b32.xlu0 %v871, 97
        %v1903 = vpop.permute.xlu0 %1902
        %v1904 = vsel %vm699, %v1901, %v1903
        %v1905 = vsel %vm699, %v1903, %v1901
        %v1906 = vsel %vm364, %v1904, %v1488
        %v1907 = vsel %vm365, %v1905, %v1489
        %s1908 = sld [smem:[#allocation9 + $0x30]]
        %v1909 = vstv %s1908
        %v1910 = vmul.f32 %v1909, %v1906
        %v1911 = vmul.f32 %v1909, %v1907
        %s1912 = sld [smem:[#allocation9 + $0xb0]]
        %v1913 = vstv %s1912
        %v1914 = vmul.f32 %v1913, %v1906
        %v1915 = vmul.f32 %v1913, %v1907
        %v1916 = vadd.f32 %v1896, %v1910
        %v1917 = vadd.f32 %v1897, %v1911
        %v1918 = vadd.f32 %v1898, %v1914
        %v1919 = vadd.f32 %v1899, %v1915
        %1920 = vrot.lane.b32.xlu0 %v878, 97
        %v1921 = vpop.permute.xlu0 %1920
        %1922 = vrot.lane.b32.xlu0 %v879, 97
        %v1923 = vpop.permute.xlu0 %1922
        %v1924 = vsel %vm699, %v1921, %v1923
        %v1925 = vsel %vm699, %v1923, %v1921
        %v1926 = vsel %vm364, %v1924, %v1508
        %v1927 = vsel %vm365, %v1925, %v1509
        %s1928 = sld [smem:[#allocation9 + $0x31]]
        %v1929 = vstv %s1928
        %v1930 = vmul.f32 %v1929, %v1926
        %v1931 = vmul.f32 %v1929, %v1927
        %s1932 = sld [smem:[#allocation9 + $0xb1]]
        %v1933 = vstv %s1932
        %v1934 = vmul.f32 %v1933, %v1926
        %v1935 = vmul.f32 %v1933, %v1927
        %v1936 = vadd.f32 %v1916, %v1930
        %v1937 = vadd.f32 %v1917, %v1931
        %v1938 = vadd.f32 %v1918, %v1934
        %v1939 = vadd.f32 %v1919, %v1935
        %1940 = vrot.lane.b32.xlu0 %v886, 97
        %v1941 = vpop.permute.xlu0 %1940
        %1942 = vrot.lane.b32.xlu0 %v887, 97
        %v1943 = vpop.permute.xlu0 %1942
        %v1944 = vsel %vm699, %v1941, %v1943
        %v1945 = vsel %vm699, %v1943, %v1941
        %v1946 = vsel %vm364, %v1944, %v1528
        %v1947 = vsel %vm365, %v1945, %v1529
        %s1948 = sld [smem:[#allocation9 + $0x32]]
        %v1949 = vstv %s1948
        %v1950 = vmul.f32 %v1949, %v1946
        %v1951 = vmul.f32 %v1949, %v1947
        %s1952 = sld [smem:[#allocation9 + $0xb2]]
        %v1953 = vstv %s1952
        %v1954 = vmul.f32 %v1953, %v1946
        %v1955 = vmul.f32 %v1953, %v1947
        %v1956 = vadd.f32 %v1936, %v1950
        %v1957 = vadd.f32 %v1937, %v1951
        %v1958 = vadd.f32 %v1938, %v1954
        %v1959 = vadd.f32 %v1939, %v1955
        %1960 = vrot.lane.b32.xlu0 %v894, 97
        %v1961 = vpop.permute.xlu0 %1960
        %1962 = vrot.lane.b32.xlu0 %v895, 97
        %v1963 = vpop.permute.xlu0 %1962
        %v1964 = vsel %vm699, %v1961, %v1963
        %v1965 = vsel %vm699, %v1963, %v1961
        %v1966 = vsel %vm364, %v1964, %v1548
        %v1967 = vsel %vm365, %v1965, %v1549
        %s1968 = sld [smem:[#allocation9 + $0x33]]
        %v1969 = vstv %s1968
        %v1970 = vmul.f32 %v1969, %v1966
        %v1971 = vmul.f32 %v1969, %v1967
        %s1972 = sld [smem:[#allocation9 + $0xb3]]
        %v1973 = vstv %s1972
        %v1974 = vmul.f32 %v1973, %v1966
        %v1975 = vmul.f32 %v1973, %v1967
        %v1976 = vadd.f32 %v1956, %v1970
        %v1977 = vadd.f32 %v1957, %v1971
        %v1978 = vadd.f32 %v1958, %v1974
        %v1979 = vadd.f32 %v1959, %v1975
        %1980 = vrot.lane.b32.xlu0 %v902, 97
        %v1981 = vpop.permute.xlu0 %1980
        %1982 = vrot.lane.b32.xlu0 %v903, 97
        %v1983 = vpop.permute.xlu0 %1982
        %v1984 = vsel %vm699, %v1981, %v1983
        %v1985 = vsel %vm699, %v1983, %v1981
        %v1986 = vsel %vm364, %v1984, %v1568
        %v1987 = vsel %vm365, %v1985, %v1569
        %s1988 = sld [smem:[#allocation9 + $0x34]]
        %v1989 = vstv %s1988
        %v1990 = vmul.f32 %v1989, %v1986
        %v1991 = vmul.f32 %v1989, %v1987
        %s1992 = sld [smem:[#allocation9 + $0xb4]]
        %v1993 = vstv %s1992
        %v1994 = vmul.f32 %v1993, %v1986
        %v1995 = vmul.f32 %v1993, %v1987
        %v1996 = vadd.f32 %v1976, %v1990
        %v1997 = vadd.f32 %v1977, %v1991
        %v1998 = vadd.f32 %v1978, %v1994
        %v1999 = vadd.f32 %v1979, %v1995
        %2000 = vrot.lane.b32.xlu0 %v910, 97
        %v2001 = vpop.permute.xlu0 %2000
        %2002 = vrot.lane.b32.xlu0 %v911, 97
        %v2003 = vpop.permute.xlu0 %2002
        %v2004 = vsel %vm699, %v2001, %v2003
        %v2005 = vsel %vm699, %v2003, %v2001
        %v2006 = vsel %vm364, %v2004, %v1588
        %v2007 = vsel %vm365, %v2005, %v1589
        %s2008 = sld [smem:[#allocation9 + $0x35]]
        %v2009 = vstv %s2008
        %v2010 = vmul.f32 %v2009, %v2006
        %v2011 = vmul.f32 %v2009, %v2007
        %s2012 = sld [smem:[#allocation9 + $0xb5]]
        %v2013 = vstv %s2012
        %v2014 = vmul.f32 %v2013, %v2006
        %v2015 = vmul.f32 %v2013, %v2007
        %v2016 = vadd.f32 %v1996, %v2010
        %v2017 = vadd.f32 %v1997, %v2011
        %v2018 = vadd.f32 %v1998, %v2014
        %v2019 = vadd.f32 %v1999, %v2015
        %2020 = vrot.lane.b32.xlu0 %v918, 97
        %v2021 = vpop.permute.xlu0 %2020
        %2022 = vrot.lane.b32.xlu0 %v919, 97
        %v2023 = vpop.permute.xlu0 %2022
        %v2024 = vsel %vm699, %v2021, %v2023
        %v2025 = vsel %vm699, %v2023, %v2021
        %v2026 = vsel %vm364, %v2024, %v1608
        %v2027 = vsel %vm365, %v2025, %v1609
        %s2028 = sld [smem:[#allocation9 + $0x36]]
        %v2029 = vstv %s2028
        %v2030 = vmul.f32 %v2029, %v2026
        %v2031 = vmul.f32 %v2029, %v2027
        %s2032 = sld [smem:[#allocation9 + $0xb6]]
        %v2033 = vstv %s2032
        %v2034 = vmul.f32 %v2033, %v2026
        %v2035 = vmul.f32 %v2033, %v2027
        %v2036 = vadd.f32 %v2016, %v2030
        %v2037 = vadd.f32 %v2017, %v2031
        %v2038 = vadd.f32 %v2018, %v2034
        %v2039 = vadd.f32 %v2019, %v2035
        %2040 = vrot.lane.b32.xlu0 %v926, 97
        %v2041 = vpop.permute.xlu0 %2040
        %2042 = vrot.lane.b32.xlu0 %v927, 97
        %v2043 = vpop.permute.xlu0 %2042
        %v2044 = vsel %vm699, %v2041, %v2043
        %v2045 = vsel %vm699, %v2043, %v2041
        %v2046 = vsel %vm364, %v2044, %v1628
        %v2047 = vsel %vm365, %v2045, %v1629
        %s2048 = sld [smem:[#allocation9 + $0x37]]
        %v2049 = vstv %s2048
        %v2050 = vmul.f32 %v2049, %v2046
        %v2051 = vmul.f32 %v2049, %v2047
        %s2052 = sld [smem:[#allocation9 + $0xb7]]
        %v2053 = vstv %s2052
        %v2054 = vmul.f32 %v2053, %v2046
        %v2055 = vmul.f32 %v2053, %v2047
        %v2056 = vadd.f32 %v2036, %v2050
        %v2057 = vadd.f32 %v2037, %v2051
        %v2058 = vadd.f32 %v2038, %v2054
        %v2059 = vadd.f32 %v2039, %v2055
        %2060 = vrot.lane.b32.xlu0 %v870, 112
        %v2061 = vpop.permute.xlu0 %2060
        %2062 = vrot.lane.b32.xlu0 %v871, 112
        %v2063 = vpop.permute.xlu0 %2062
        %v2064 = vsel %vm756, %v2061, %v2063
        %v2065 = vsel %vm756, %v2063, %v2061
        %s2066 = sld [smem:[#allocation9 + $0x38]]
        %v2067 = vstv %s2066
        %v2068 = vmul.f32 %v2067, %v2064
        %v2069 = vmul.f32 %v2067, %v2065
        %s2070 = sld [smem:[#allocation9 + $0xb8]]
        %v2071 = vstv %s2070
        %v2072 = vmul.f32 %v2071, %v2064
        %v2073 = vmul.f32 %v2071, %v2065
        %v2074 = vadd.f32 %v2056, %v2068
        %v2075 = vadd.f32 %v2057, %v2069
        %v2076 = vadd.f32 %v2058, %v2072
        %v2077 = vadd.f32 %v2059, %v2073
        %2078 = vrot.lane.b32.xlu0 %v878, 112
        %v2079 = vpop.permute.xlu0 %2078
        %2080 = vrot.lane.b32.xlu0 %v879, 112
        %v2081 = vpop.permute.xlu0 %2080
        %v2082 = vsel %vm756, %v2079, %v2081
        %v2083 = vsel %vm756, %v2081, %v2079
        %s2084 = sld [smem:[#allocation9 + $0x39]]
        %v2085 = vstv %s2084
        %v2086 = vmul.f32 %v2085, %v2082
        %v2087 = vmul.f32 %v2085, %v2083
        %s2088 = sld [smem:[#allocation9 + $0xb9]]
        %v2089 = vstv %s2088
        %v2090 = vmul.f32 %v2089, %v2082
        %v2091 = vmul.f32 %v2089, %v2083
        %v2092 = vadd.f32 %v2074, %v2086
        %v2093 = vadd.f32 %v2075, %v2087
        %v2094 = vadd.f32 %v2076, %v2090
        %v2095 = vadd.f32 %v2077, %v2091
        %2096 = vrot.lane.b32.xlu0 %v886, 112
        %v2097 = vpop.permute.xlu0 %2096
        %2098 = vrot.lane.b32.xlu0 %v887, 112
        %v2099 = vpop.permute.xlu0 %2098
        %v2100 = vsel %vm756, %v2097, %v2099
        %v2101 = vsel %vm756, %v2099, %v2097
        %s2102 = sld [smem:[#allocation9 + $0x3a]]
        %v2103 = vstv %s2102
        %v2104 = vmul.f32 %v2103, %v2100
        %v2105 = vmul.f32 %v2103, %v2101
        %s2106 = sld [smem:[#allocation9 + $0xba]]
        %v2107 = vstv %s2106
        %v2108 = vmul.f32 %v2107, %v2100
        %v2109 = vmul.f32 %v2107, %v2101
        %v2110 = vadd.f32 %v2092, %v2104
        %v2111 = vadd.f32 %v2093, %v2105
        %v2112 = vadd.f32 %v2094, %v2108
        %v2113 = vadd.f32 %v2095, %v2109
        %2114 = vrot.lane.b32.xlu0 %v894, 112
        %v2115 = vpop.permute.xlu0 %2114
        %2116 = vrot.lane.b32.xlu0 %v895, 112
        %v2117 = vpop.permute.xlu0 %2116
        %v2118 = vsel %vm756, %v2115, %v2117
        %v2119 = vsel %vm756, %v2117, %v2115
        %s2120 = sld [smem:[#allocation9 + $0x3b]]
        %v2121 = vstv %s2120
        %v2122 = vmul.f32 %v2121, %v2118
        %v2123 = vmul.f32 %v2121, %v2119
        %s2124 = sld [smem:[#allocation9 + $0xbb]]
        %v2125 = vstv %s2124
        %v2126 = vmul.f32 %v2125, %v2118
        %v2127 = vmul.f32 %v2125, %v2119
        %v2128 = vadd.f32 %v2110, %v2122
        %v2129 = vadd.f32 %v2111, %v2123
        %v2130 = vadd.f32 %v2112, %v2126
        %v2131 = vadd.f32 %v2113, %v2127
        %2132 = vrot.lane.b32.xlu0 %v902, 112
        %v2133 = vpop.permute.xlu0 %2132
        %2134 = vrot.lane.b32.xlu0 %v903, 112
        %v2135 = vpop.permute.xlu0 %2134
        %v2136 = vsel %vm756, %v2133, %v2135
        %v2137 = vsel %vm756, %v2135, %v2133
        %s2138 = sld [smem:[#allocation9 + $0x3c]]
        %v2139 = vstv %s2138
        %v2140 = vmul.f32 %v2139, %v2136
        %v2141 = vmul.f32 %v2139, %v2137
        %s2142 = sld [smem:[#allocation9 + $0xbc]]
        %v2143 = vstv %s2142
        %v2144 = vmul.f32 %v2143, %v2136
        %v2145 = vmul.f32 %v2143, %v2137
        %v2146 = vadd.f32 %v2128, %v2140
        %v2147 = vadd.f32 %v2129, %v2141
        %v2148 = vadd.f32 %v2130, %v2144
        %v2149 = vadd.f32 %v2131, %v2145
        %2150 = vrot.lane.b32.xlu0 %v910, 112
        %v2151 = vpop.permute.xlu0 %2150
        %2152 = vrot.lane.b32.xlu0 %v911, 112
        %v2153 = vpop.permute.xlu0 %2152
        %v2154 = vsel %vm756, %v2151, %v2153
        %v2155 = vsel %vm756, %v2153, %v2151
        %s2156 = sld [smem:[#allocation9 + $0x3d]]
        %v2157 = vstv %s2156
        %v2158 = vmul.f32 %v2157, %v2154
        %v2159 = vmul.f32 %v2157, %v2155
        %s2160 = sld [smem:[#allocation9 + $0xbd]]
        %v2161 = vstv %s2160
        %v2162 = vmul.f32 %v2161, %v2154
        %v2163 = vmul.f32 %v2161, %v2155
        %v2164 = vadd.f32 %v2146, %v2158
        %v2165 = vadd.f32 %v2147, %v2159
        %v2166 = vadd.f32 %v2148, %v2162
        %v2167 = vadd.f32 %v2149, %v2163
        %2168 = vrot.lane.b32.xlu0 %v918, 112
        %v2169 = vpop.permute.xlu0 %2168
        %2170 = vrot.lane.b32.xlu0 %v919, 112
        %v2171 = vpop.permute.xlu0 %2170
        %v2172 = vsel %vm756, %v2169, %v2171
        %v2173 = vsel %vm756, %v2171, %v2169
        %s2174 = sld [smem:[#allocation9 + $0x3e]]
        %v2175 = vstv %s2174
        %v2176 = vmul.f32 %v2175, %v2172
        %v2177 = vmul.f32 %v2175, %v2173
        %s2178 = sld [smem:[#allocation9 + $0xbe]]
        %v2179 = vstv %s2178
        %v2180 = vmul.f32 %v2179, %v2172
        %v2181 = vmul.f32 %v2179, %v2173
        %v2182 = vadd.f32 %v2164, %v2176
        %v2183 = vadd.f32 %v2165, %v2177
        %v2184 = vadd.f32 %v2166, %v2180
        %v2185 = vadd.f32 %v2167, %v2181
        %2186 = vrot.lane.b32.xlu0 %v926, 112
        %v2187 = vpop.permute.xlu0 %2186
        %2188 = vrot.lane.b32.xlu0 %v927, 112
        %v2189 = vpop.permute.xlu0 %2188
        %v2190 = vsel %vm756, %v2187, %v2189
        %v2191 = vsel %vm756, %v2189, %v2187
        %s2192 = sld [smem:[#allocation9 + $0x3f]]
        %v2193 = vstv %s2192
        %v2194 = vmul.f32 %v2193, %v2190
        %v2195 = vmul.f32 %v2193, %v2191
        %s2196 = sld [smem:[#allocation9 + $0xbf]]
        %v2197 = vstv %s2196
        %v2198 = vmul.f32 %v2197, %v2190
        %v2199 = vmul.f32 %v2197, %v2191
        %v2200 = vadd.f32 %v2182, %v2194
        %v2201 = vadd.f32 %v2183, %v2195
        %v2202 = vadd.f32 %v2184, %v2198
        %v2203 = vadd.f32 %v2185, %v2199
        %2204 = vrot.lane.b32.xlu0 %v870, 111
        %v2205 = vpop.permute.xlu0 %2204
        %2206 = vrot.lane.b32.xlu0 %v871, 111
        %v2207 = vpop.permute.xlu0 %2206
        %v2208 = vsel %vm811, %v2205, %v2207
        %v2209 = vsel %vm811, %v2207, %v2205
        %v2210 = vsel %vm362, %v1744, %v2208
        %v2211 = vsel %vm363, %v1745, %v2209
        %s2212 = sld [smem:[#allocation9 + $0x40]]
        %v2213 = vstv %s2212
        %v2214 = vmul.f32 %v2213, %v2210
        %v2215 = vmul.f32 %v2213, %v2211
        %s2216 = sld [smem:[#allocation9 + $0xc0]]
        %v2217 = vstv %s2216
        %v2218 = vmul.f32 %v2217, %v2210
        %v2219 = vmul.f32 %v2217, %v2211
        %v2220 = vadd.f32 %v2200, %v2214
        %v2221 = vadd.f32 %v2201, %v2215
        %v2222 = vadd.f32 %v2202, %v2218
        %v2223 = vadd.f32 %v2203, %v2219
        %2224 = vrot.lane.b32.xlu0 %v878, 111
        %v2225 = vpop.permute.xlu0 %2224
        %2226 = vrot.lane.b32.xlu0 %v879, 111
        %v2227 = vpop.permute.xlu0 %2226
        %v2228 = vsel %vm811, %v2225, %v2227
        %v2229 = vsel %vm811, %v2227, %v2225
        %v2230 = vsel %vm362, %v1764, %v2228
        %v2231 = vsel %vm363, %v1765, %v2229
        %s2232 = sld [smem:[#allocation9 + $0x41]]
        %v2233 = vstv %s2232
        %v2234 = vmul.f32 %v2233, %v2230
        %v2235 = vmul.f32 %v2233, %v2231
        %s2236 = sld [smem:[#allocation9 + $0xc1]]
        %v2237 = vstv %s2236
        %v2238 = vmul.f32 %v2237, %v2230
        %v2239 = vmul.f32 %v2237, %v2231
        %v2240 = vadd.f32 %v2220, %v2234
        %v2241 = vadd.f32 %v2221, %v2235
        %v2242 = vadd.f32 %v2222, %v2238
        %v2243 = vadd.f32 %v2223, %v2239
        %2244 = vrot.lane.b32.xlu0 %v886, 111
        %v2245 = vpop.permute.xlu0 %2244
        %2246 = vrot.lane.b32.xlu0 %v887, 111
        %v2247 = vpop.permute.xlu0 %2246
        %v2248 = vsel %vm811, %v2245, %v2247
        %v2249 = vsel %vm811, %v2247, %v2245
        %v2250 = vsel %vm362, %v1784, %v2248
        %v2251 = vsel %vm363, %v1785, %v2249
        %s2252 = sld [smem:[#allocation9 + $0x42]]
        %v2253 = vstv %s2252
        %v2254 = vmul.f32 %v2253, %v2250
        %v2255 = vmul.f32 %v2253, %v2251
        %s2256 = sld [smem:[#allocation9 + $0xc2]]
        %v2257 = vstv %s2256
        %v2258 = vmul.f32 %v2257, %v2250
        %v2259 = vmul.f32 %v2257, %v2251
        %v2260 = vadd.f32 %v2240, %v2254
        %v2261 = vadd.f32 %v2241, %v2255
        %v2262 = vadd.f32 %v2242, %v2258
        %v2263 = vadd.f32 %v2243, %v2259
        %2264 = vrot.lane.b32.xlu0 %v894, 111
        %v2265 = vpop.permute.xlu0 %2264
        %2266 = vrot.lane.b32.xlu0 %v895, 111
        %v2267 = vpop.permute.xlu0 %2266
        %v2268 = vsel %vm811, %v2265, %v2267
        %v2269 = vsel %vm811, %v2267, %v2265
        %v2270 = vsel %vm362, %v1804, %v2268
        %v2271 = vsel %vm363, %v1805, %v2269
        %s2272 = sld [smem:[#allocation9 + $0x43]]
        %v2273 = vstv %s2272
        %v2274 = vmul.f32 %v2273, %v2270
        %v2275 = vmul.f32 %v2273, %v2271
        %s2276 = sld [smem:[#allocation9 + $0xc3]]
        %v2277 = vstv %s2276
        %v2278 = vmul.f32 %v2277, %v2270
        %v2279 = vmul.f32 %v2277, %v2271
        %v2280 = vadd.f32 %v2260, %v2274
        %v2281 = vadd.f32 %v2261, %v2275
        %v2282 = vadd.f32 %v2262, %v2278
        %v2283 = vadd.f32 %v2263, %v2279
        %2284 = vrot.lane.b32.xlu0 %v902, 111
        %v2285 = vpop.permute.xlu0 %2284
        %2286 = vrot.lane.b32.xlu0 %v903, 111
        %v2287 = vpop.permute.xlu0 %2286
        %v2288 = vsel %vm811, %v2285, %v2287
        %v2289 = vsel %vm811, %v2287, %v2285
        %v2290 = vsel %vm362, %v1824, %v2288
        %v2291 = vsel %vm363, %v1825, %v2289
        %s2292 = sld [smem:[#allocation9 + $0x44]]
        %v2293 = vstv %s2292
        %v2294 = vmul.f32 %v2293, %v2290
        %v2295 = vmul.f32 %v2293, %v2291
        %s2296 = sld [smem:[#allocation9 + $0xc4]]
        %v2297 = vstv %s2296
        %v2298 = vmul.f32 %v2297, %v2290
        %v2299 = vmul.f32 %v2297, %v2291
        %v2300 = vadd.f32 %v2280, %v2294
        %v2301 = vadd.f32 %v2281, %v2295
        %v2302 = vadd.f32 %v2282, %v2298
        %v2303 = vadd.f32 %v2283, %v2299
        %2304 = vrot.lane.b32.xlu0 %v910, 111
        %v2305 = vpop.permute.xlu0 %2304
        %2306 = vrot.lane.b32.xlu0 %v911, 111
        %v2307 = vpop.permute.xlu0 %2306
        %v2308 = vsel %vm811, %v2305, %v2307
        %v2309 = vsel %vm811, %v2307, %v2305
        %v2310 = vsel %vm362, %v1844, %v2308
        %v2311 = vsel %vm363, %v1845, %v2309
        %s2312 = sld [smem:[#allocation9 + $0x45]]
        %v2313 = vstv %s2312
        %v2314 = vmul.f32 %v2313, %v2310
        %v2315 = vmul.f32 %v2313, %v2311
        %s2316 = sld [smem:[#allocation9 + $0xc5]]
        %v2317 = vstv %s2316
        %v2318 = vmul.f32 %v2317, %v2310
        %v2319 = vmul.f32 %v2317, %v2311
        %v2320 = vadd.f32 %v2300, %v2314
        %v2321 = vadd.f32 %v2301, %v2315
        %v2322 = vadd.f32 %v2302, %v2318
        %v2323 = vadd.f32 %v2303, %v2319
        %2324 = vrot.lane.b32.xlu0 %v918, 111
        %v2325 = vpop.permute.xlu0 %2324
        %2326 = vrot.lane.b32.xlu0 %v919, 111
        %v2327 = vpop.permute.xlu0 %2326
        %v2328 = vsel %vm811, %v2325, %v2327
        %v2329 = vsel %vm811, %v2327, %v2325
        %v2330 = vsel %vm362, %v1864, %v2328
        %v2331 = vsel %vm363, %v1865, %v2329
        %s2332 = sld [smem:[#allocation9 + $0x46]]
        %v2333 = vstv %s2332
        %v2334 = vmul.f32 %v2333, %v2330
        %v2335 = vmul.f32 %v2333, %v2331
        %s2336 = sld [smem:[#allocation9 + $0xc6]]
        %v2337 = vstv %s2336
        %v2338 = vmul.f32 %v2337, %v2330
        %v2339 = vmul.f32 %v2337, %v2331
        %v2340 = vadd.f32 %v2320, %v2334
        %v2341 = vadd.f32 %v2321, %v2335
        %v2342 = vadd.f32 %v2322, %v2338
        %v2343 = vadd.f32 %v2323, %v2339
        %2344 = vrot.lane.b32.xlu0 %v926, 111
        %v2345 = vpop.permute.xlu0 %2344
        %2346 = vrot.lane.b32.xlu0 %v927, 111
        %v2347 = vpop.permute.xlu0 %2346
        %v2348 = vsel %vm811, %v2345, %v2347
        %v2349 = vsel %vm811, %v2347, %v2345
        %v2350 = vsel %vm362, %v1884, %v2348
        %v2351 = vsel %vm363, %v1885, %v2349
        %s2352 = sld [smem:[#allocation9 + $0x47]]
        %v2353 = vstv %s2352
        %v2354 = vmul.f32 %v2353, %v2350
        %v2355 = vmul.f32 %v2353, %v2351
        %s2356 = sld [smem:[#allocation9 + $0xc7]]
        %v2357 = vstv %s2356
        %v2358 = vmul.f32 %v2357, %v2350
        %v2359 = vmul.f32 %v2357, %v2351
        %v2360 = vadd.f32 %v2340, %v2354
        %v2361 = vadd.f32 %v2341, %v2355
        %v2362 = vadd.f32 %v2342, %v2358
        %v2363 = vadd.f32 %v2343, %v2359
        %s2364 = sld [smem:[#allocation10]]
        %v2365 = vstv %s2364
        %v2366 = vadd.f32 %v2360, %v2365
        %v2367 = vadd.f32 %v2361, %v2365
        %2368 = vst [vmem:[%s325] sm:$0xff] %v2366
        %2369 = vst [vmem:[%s325 + $0x8] sm:$0xff] %v2367
        %s2370 = sld [smem:[#allocation10 + $0x1]]
        %v2371 = vstv %s2370
        %v2372 = vadd.f32 %v2362, %v2371
        %v2373 = vadd.f32 %v2363, %v2371
        %2374 = vst [vmem:[%s332] sm:$0xff] %v2372
        %2375 = vst [vmem:[%s332 + $0x8] sm:$0xff] %v2373
        %s2376 = sand.u32 %s148, 1
        %s2377 = scalar_lea.sflag [#allocation4], %s2376
        %s2378 = sand.u32 %s148, 1
        %s2379 = smul.addr %s2378, 16
        %s2380 = scalar_lea.vmem [#allocation12], %s2379
        %s2381 = sand.u32 %s174, 1
        %s2382 = scalar_lea.sflag [#allocation14], %s2381
        %s2383 = sand.u32 %s174, 1
        %s2384 = smul.addr %s2383, 16
        %s2385 = scalar_lea.vmem [#allocation13], %s2384
        // Predicated region
        $region61: #{tpu_custom_call.1} parent=39 // pred_check
          %p2386 = pneg %p158
        $region62: #{tpu_custom_call.1} parent=39 // pred_check_branch
          %2388 = sbr.rel (%p2386) target = $region64
        $region63: #{tpu_custom_call.1} parent=39 // pred_region
          %s2390 = ssub.s32 256, 256
          %2391 = vsyncadd %s2377, %s2390
          %s2392 = smul.addr %s30, 2
          %s2393 = smul.addr %s2392, 128
          %s2394 = scalar_lea.hbm %s5, %s2393
          %s2396 = sshll.u32 %s2380, 4
          %s2397 = int_to_ptr.vmem [resolvable:$true] %s2396
          %2399 = dma.vmem_to_hbm [thread:$0]  %s2397, 256, %s2394, %s2377
        $region64: #{tpu_custom_call.1} parent=39 // pred_fallthru
          _
        // Predicated region
        $region65: #{tpu_custom_call.1} parent=39 // pred_check
          %p2400 = pneg %p184
        $region66: #{tpu_custom_call.1} parent=39 // pred_check_branch
          %2402 = sbr.rel (%p2400) target = $region68
        $region67: #{tpu_custom_call.1} parent=39 // pred_region
          %s2404 = ssub.s32 256, 256
          %2405 = vsyncadd %s2382, %s2404
          %s2406 = smul.addr %s30, 2
          %s2407 = smul.addr %s2406, 128
          %s2408 = scalar_lea.hbm %s6, %s2407
          %s2410 = sshll.u32 %s2385, 4
          %s2411 = int_to_ptr.vmem [resolvable:$true] %s2410
          %2413 = dma.vmem_to_hbm [thread:$0]  %s2411, 256, %s2408, %s2382
        $region68: #{tpu_custom_call.1} parent=39 // pred_fallthru
          _
      $region40: #{tpu_custom_call.1} parent=5 // pred_fallthru
        _
      %p2414 = scmp.le.s32.totalorder 2, %s25
      // Predicated region
      $region69: #{tpu_custom_call.1} parent=5 // pred_check
        %p2415 = pneg %p2414
      $region70: #{tpu_custom_call.1} parent=5 // pred_check_branch
        %2417 = sbr.rel (%p2415) target = $region72
      $region71: #{tpu_custom_call.1} parent=5 // pred_region
        %s2418 = ssub.s32 %s25, 2
        // Predicated region
        $region73: #{tpu_custom_call.1} parent=71 // pred_check
          %p2419 = pneg %p164
        $region74: #{tpu_custom_call.1} parent=71 // pred_check_branch
          %2421 = sbr.rel (%p2419) target = $region76
        $region75: #{tpu_custom_call.1} parent=71 // pred_region
          %s2422 = sand.u32 %s149, 1
          %s2423 = scalar_lea.sflag [#allocation4], %s2422
          %s2424 = sand.u32 %s149, 1
          %s2425 = smul.addr %s2424, 16
          %s2426 = scalar_lea.vmem [#allocation12], %s2425
          %2427 = dma.done %s2423, 256
        $region76: #{tpu_custom_call.1} parent=71 // pred_fallthru
          _
        // Predicated region
        $region77: #{tpu_custom_call.1} parent=71 // pred_check
          %p2428 = pneg %p190
        $region78: #{tpu_custom_call.1} parent=71 // pred_check_branch
          %2430 = sbr.rel (%p2428) target = $region80
        $region79: #{tpu_custom_call.1} parent=71 // pred_region
          %s2431 = sand.u32 %s175, 1
          %s2432 = scalar_lea.sflag [#allocation14], %s2431
          %s2433 = sand.u32 %s175, 1
          %s2434 = smul.addr %s2433, 16
          %s2435 = scalar_lea.vmem [#allocation13], %s2434
          %2436 = dma.done %s2432, 256
        $region80: #{tpu_custom_call.1} parent=71 // pred_fallthru
          _
      $region72: #{tpu_custom_call.1} parent=5 // pred_fallthru
        _
    $region6: #{tpu_custom_call.1} parent=1 // loop_footer
      %s29 = sadd.s32 1, %s25
    $region7: #{tpu_custom_call.1} parent=1 // loop_footer_branch
      %24 = sbr.rel target = $region3
    $region8: #{tpu_custom_call.1} parent=1 // loop_exit
      _
    %2437 = vsyncpa [#allocation3], 1
    %s2438 = scalar_lea.sflag [#allocation3], 1
    %2439 = vsyncpa %s2438, 1
    %2440 = vsyncpa [#allocation4], 1
    %s2441 = scalar_lea.sflag [#allocation4], 1
    %2442 = vsyncpa %s2441, 1
    %2443 = vsyncpa [#allocation14], 1
    %s2444 = scalar_lea.sflag [#allocation14], 1
    %2445 = vsyncpa %s2444, 1
    %2446 = vsyncpa [#allocation5], 1
    %s2447 = scalar_lea.sflag [#allocation5], 1
    %2448 = vsyncpa %s2447, 1
    %2449 = vsyncpa [#allocation8], 1
    %2450 = vsyncpa [#allocation11], 1

</llo_original>
